<compile_context>
chip_gen: v7x
topology: tpu7x:2x2x1
jax: 0.10.0
libtpu: 0.0.40
codegen_flags: <defaults>
</compile_context>

<pallas_src>
import jax
import jax.numpy as jnp
from jax.experimental import pallas as pl
from jax.experimental.pallas import tpu as pltpu


# ---------------------------------------------------------------------------
# helpers
# ---------------------------------------------------------------------------
def _interleave_rows(u0, u1):
    """(M, C), (M, C) -> (2M, C): even rows from u0, odd rows from u1 (Mosaic-safe ops)."""
    m, c = u0.shape
    r0 = jnp.broadcast_to(u0[:, None, :], (m, 2, c)).reshape(2 * m, c)
    r1 = jnp.broadcast_to(u1[:, None, :], (m, 2, c)).reshape(2 * m, c)
    parity = jax.lax.broadcasted_iota(jnp.int32, (2 * m, 1), 0) % 2
    return jnp.where(parity == 0, r0, r1)


def _make_decoder_kernel(Hc, Wc, Cc, Co):
    """Fused DecoderBlock kernel (one batch element per grid step)."""
    Hf, Wf = 2 * Hc, 2 * Wc          # fine (output) resolution
    Hp, Wp = Hf + 2, Wf + 2          # zero-padded fine resolution
    WfCo = Wf * Co
    WpCo = Wp * Co

    def kernel(x_ref, conn_ref, g_ref, bup_ref, b1c_ref, b1u_ref, b234_ref,
               bconv_ref, o_ref, up, bufa, bufb):
        f32 = jnp.float32

        # Zero ONLY the pad frame of the VMEM activations: interiors are fully rewritten
        # every step, and scratch persists across grid steps / cores, so the frame is
        # re-zeroed every step (cheap: a few rows / 8-lane strips).
        for buf in (up, bufa, bufb):
            buf[0:1, :] = jnp.zeros((1, WpCo), buf.dtype)
            buf[Hp - 1:Hp, :] = jnp.zeros((1, WpCo), buf.dtype)
            buf[:, 0:Co] = jnp.zeros((Hp, Co), buf.dtype)
            buf[:, WpCo - Co:WpCo] = jnp.zeros((Hp, Co), buf.dtype)

        # ---- ConvTranspose2d(k=2, s=2): one MXU matmul against a block-diagonal weight
        # producing both output-row parities lane-dense, then a single row interleave and
        # a single store of the whole upsampled interior.
        y = jnp.dot(x_ref[0], g_ref[...], preferred_element_type=f32) + bup_ref[...]
        u = _interleave_rows(y[:, :WfCo], y[:, WfCo:])          # (Hf, Wf*Co)
        up[1:1 + Hf, Co:WpCo - Co] = u.astype(up.dtype)

        # ---- 'same' 3x3 conv + bias + ReLU as 3 banded matmuls (one per kernel row dy).
        # Operand = rows [dy, dy+Hf) of the padded (Hp, Wp*Ci) activation; result is the
        # (Hf, Wf*Co) interior directly (lane-dense, no pad-column mask needed).
        def conv3x3_relu(sources, bias_row):
            acc = jnp.zeros((Hf, WfCo), f32)
            for src, wsel in sources:
                for dy in range(3):
                    acc = acc + jnp.dot(src(dy), wsel(dy), preferred_element_type=f32)
            return jnp.maximum(acc + bias_row, 0.0)

        # conv_block_1 layer 1: reads the skip connection and the upsampled grid directly
        # (the channel concat is never materialized).
        r = conv3x3_relu(
            [(lambda dy: conn_ref[0, dy:dy + Hf, :], lambda dy: b1c_ref[dy]),
             (lambda dy: up[dy:dy + Hf, :], lambda dy: b1u_ref[dy])],
            bconv_ref[0])
        bufa[1:1 + Hf, Co:WpCo - Co] = r.astype(bufa.dtype)

        # conv_block_1 layer 2 and conv_block_2 layers 1-2; the last layer writes the
        # lane-dense output block with one full store.
        for k, (src, dst) in enumerate(((bufa, bufb), (bufb, bufa), (bufa, None))):
            r = conv3x3_relu(
                [(lambda dy, s=src: s[dy:dy + Hf, :],
                  lambda dy, k=k: b234_ref[k, dy])],
                bconv_ref[k + 1])
            if dst is None:
                o_ref[0] = r.astype(o_ref.dtype)
            else:
                dst[1:1 + Hf, Co:WpCo - Co] = r.astype(dst.dtype)

    return kernel


# ---------------------------------------------------------------------------
# one-time parameter preparation (weight re-layout into banded / block-diag matrices)
# ---------------------------------------------------------------------------
def prepare_params(params, Wc, compute_dtype=jnp.float32):
    cd = compute_dtype
    Wf, Wp = 2 * Wc, 2 * Wc + 2
    up_w, up_b = params["up_w"], params["up_b"]          # IOHW (Cin, Co, 2, 2), (Co,)
    Cin, Co = up_w.shape[0], up_w.shape[1]
    Cc = Cin - Co

    # ConvTranspose2d(k=2,s=2) as one block-diagonal matmul:
    #   G[(j*Cin+i), a*Wf*Co + (2j+b)*Co + o] = up_w[i, o, a, b]
    wt = jnp.transpose(up_w, (0, 2, 3, 1))                                    # (Cin,2,2,Co)
    g = jnp.einsum("jk,iabo->jiakbo", jnp.eye(Wc, dtype=up_w.dtype), wt)
    g = g.reshape(Wc * Cin, 2 * Wf * Co).astype(cd)
    bup = jnp.tile(up_b, 2 * Wf).reshape(1, 2 * Wf * Co).astype(jnp.float32)

    def banded(w_oihw):
        # (3, Wp*Ci, Wf*Co): B[ky][u*Ci+i, w*Co+o] = w[o, i, ky, u-w] if 0 <= u-w <= 2
        co, ci = w_oihw.shape[0], w_oihw.shape[1]
        u = jnp.arange(Wp)[:, None]
        w = jnp.arange(Wf)[None, :]
        d = u - w
        valid = (d >= 0) & (d <= 2)
        dcl = jnp.clip(d, 0, 2)
        mats = []
        for ky in range(3):
            wk = jnp.transpose(w_oihw[:, :, ky, :], (2, 1, 0))                # (3, Ci, Co)
            gk = jnp.where(valid[:, :, None, None], wk[dcl], 0.0)             # (Wp,Wf,Ci,Co)
            mats.append(jnp.transpose(gk, (0, 2, 1, 3)).reshape(Wp * ci, Wf * co))
        return jnp.stack(mats)

    b1c = banded(params["cb1_w1"][:, :Cc]).astype(cd)                         # skip part
    b1u = banded(params["cb1_w1"][:, Cc:]).astype(cd)                         # upconv part
    b234 = jnp.stack([banded(params["cb1_w2"]),
                      banded(params["cb2_w1"]),
                      banded(params["cb2_w2"])]).astype(cd)                   # (3,3,WpCo,WfCo)
    bconv = jnp.stack([jnp.tile(params[k], Wf) for k in
                       ("cb1_b1", "cb1_b2", "cb2_b1", "cb2_b2")]
                      ).reshape(4, 1, Wf * Co).astype(jnp.float32)

    return {"G": g, "bup": bup, "b1c": b1c, "b1u": b1u, "b234": b234, "bconv": bconv,
            "Wc": Wc, "Cc": Cc, "Co": Co, "Cin": Cin, "compute_dtype": cd}


# ---------------------------------------------------------------------------
# forward wrapper (PyTorch NCHW API)
# ---------------------------------------------------------------------------
def decoder_block(prepped, x_nchw, conn_nchw):
    cd = prepped["compute_dtype"]
    Cin, Cc, Co = prepped["Cin"], prepped["Cc"], prepped["Co"]
    N, cin, Hc, Wc = x_nchw.shape
    _, cc, Hf, Wf = conn_nchw.shape
    assert cin == Cin and cc == Cc and Wc == prepped["Wc"]
    assert Hf == 2 * Hc and Wf == 2 * Wc
    Hp, Wp = Hf + 2, Wf + 2

    # TODO(synk): at production scale keep the model NHWC end-to-end so these wrapper
    # transposes and the pad disappear, and add a row-tile grid axis with a 2-row halo.
    x_rows = jnp.transpose(x_nchw, (0, 2, 3, 1)).reshape(N, Hc, Wc * Cin).astype(cd)
    conn_rows = jnp.pad(jnp.transpose(conn_nchw, (0, 2, 3, 1)),
                        ((0, 0), (1, 1), (1, 1), (0, 0))
                        ).reshape(N, Hp, Wp * Cc).astype(cd)

    kernel = _make_decoder_kernel(Hc, Wc, Cc, Co)

    flops_per_n = (2 * Hc * (Wc * Cin) * (2 * Wf * Co)                 # upconv
                   + 2 * 3 * Hf * (Wp * Cc) * (Wf * Co)                # conv1 (skip part)
                   + 4 * 2 * 3 * Hf * (Wp * Co) * (Wf * Co))           # conv1(up)+conv2-4
    bytes_accessed = (x_rows.size * x_rows.dtype.itemsize
                      + conn_rows.size * conn_rows.dtype.itemsize
                      + sum(prepped[k].size * prepped[k].dtype.itemsize
                            for k in ("G", "bup", "b1c", "b1u", "b234", "bconv"))
                      + N * Hf * Wf * Co * 4)

    out = pl.pallas_call(
        kernel,
        out_shape=jax.ShapeDtypeStruct((N, Hf, Wf * Co), jnp.float32),
        grid=(N,),
        in_specs=[
            pl.BlockSpec((1, Hc, Wc * Cin), lambda n: (n, 0, 0)),        # x, lane-dense rows
            pl.BlockSpec((1, Hp, Wp * Cc), lambda n: (n, 0, 0)),         # connection, padded
            pl.BlockSpec((Wc * Cin, 2 * Wf * Co), lambda n: (0, 0)),     # upconv block-diag
            pl.BlockSpec((1, 2 * Wf * Co), lambda n: (0, 0)),            # upconv bias (tiled)
            pl.BlockSpec((3, Wp * Cc, Wf * Co), lambda n: (0, 0, 0)),    # conv1 skip weights
            pl.BlockSpec((3, Wp * Co, Wf * Co), lambda n: (0, 0, 0)),    # conv1 up weights
            pl.BlockSpec((3, 3, Wp * Co, Wf * Co), lambda n: (0, 0, 0, 0)),  # conv2-4 weights
            pl.BlockSpec((4, 1, Wf * Co), lambda n: (0, 0, 0)),          # conv biases (tiled)
        ],
        out_specs=pl.BlockSpec((1, Hf, Wf * Co), lambda n: (n, 0, 0)),   # lane-dense output
        scratch_shapes=[pltpu.VMEM((Hp, Wp * Co), cd),                   # upsampled grid
                        pltpu.VMEM((Hp, Wp * Co), cd),                   # ping
                        pltpu.VMEM((Hp, Wp * Co), cd)],                  # pong
        compiler_params=pltpu.CompilerParams(
            dimension_semantics=("parallel",),
            vmem_limit_bytes=32 * 1024 * 1024,  # footprint ~2 MiB; scale with row tiles
        ),
        cost_estimate=pl.CostEstimate(flops=N * flops_per_n, transcendentals=0,
                                      bytes_accessed=int(bytes_accessed)),
    )(x_rows, conn_rows, prepped["G"], prepped["bup"], prepped["b1c"],
      prepped["b1u"], prepped["b234"], prepped["bconv"])

    return jnp.transpose(out.reshape(N, Hf, Wf, Co), (0, 3, 1, 2))       # -> NCHW


# ---------------------------------------------------------------------------
# Pure-JAX (XLA) reference used only for verification
# ---------------------------------------------------------------------------
def _ref_conv3x3_relu_nchw(x, w_oihw, b):
    y = jax.lax.conv_general_dilated(
        x, w_oihw, window_strides=(1, 1), padding=((1, 1), (1, 1)),
        dimension_numbers=("NCHW", "OIHW", "NCHW"))
    return jnp.maximum(y + b[None, :, None, None], 0.0)


def _ref_upconv_nchw(x, w_iohw, b):
    w_oihw = jnp.flip(w_iohw, axis=(2, 3)).transpose(1, 0, 2, 3)
    y = jax.lax.conv_general_dilated(
        x, w_oihw, window_strides=(1, 1), padding=((1, 1), (1, 1)),
        lhs_dilation=(2, 2), dimension_numbers=("NCHW", "OIHW", "NCHW"))
    return y + b[None, :, None, None]


if __name__ == "__main__":
    in_ch, out_ch = 16, 8
    N, Hc, Wc = 2, 8, 8    # x at coarse resolution; connection is 2x larger

    key = jax.random.PRNGKey(0)
    ks = jax.random.split(key, 12)
    init = lambda k, s: jax.random.normal(k, s, jnp.float32) * 0.1

    params = {
        "up_w":  init(ks[0], (in_ch, out_ch, 2, 2)),   # ConvTranspose2d weight (IOHW)
        "up_b":  init(ks[1], (out_ch,)),
        "cb1_w1": init(ks[2], (out_ch, in_ch, 3, 3)),  # Conv2d weights (OIHW)
        "cb1_b1": init(ks[3], (out_ch,)),
        "cb1_w2": init(ks[4], (out_ch, out_ch, 3, 3)),
        "cb1_b2": init(ks[5], (out_ch,)),
        "cb2_w1": init(ks[6], (out_ch, out_ch, 3, 3)),
        "cb2_b1": init(ks[7], (out_ch,)),
        "cb2_w2": init(ks[8], (out_ch, out_ch, 3, 3)),
        "cb2_b2": init(ks[9], (out_ch,)),
    }

    x = jax.random.normal(ks[10], (N, in_ch, Hc, Wc), jnp.float32)
    conn = jax.random.normal(ks[11], (N, out_ch, 2 * Hc, 2 * Wc), jnp.float32)

    # Pure-JAX reference of the PyTorch forward pass.
    ref = _ref_upconv_nchw(x, params["up_w"], params["up_b"])
    ref = jnp.concatenate([conn, ref], axis=1)
    ref = _ref_conv3x3_relu_nchw(ref, params["cb1_w1"], params["cb1_b1"])
    ref = _ref_conv3x3_relu_nchw(ref, params["cb1_w2"], params["cb1_b2"])
    ref = _ref_conv3x3_relu_nchw(ref, params["cb2_w1"], params["cb2_b1"])
    ref = _ref_conv3x3_relu_nchw(ref, params["cb2_w2"], params["cb2_b2"])

    # f32 compute path: strict check.
    out = decoder_block(prepare_params(params, Wc, jnp.float32), x, conn)
    out = jax.block_until_ready(out)
    assert out.shape == (N, out_ch, 2 * Hc, 2 * Wc)
    assert jnp.allclose(out, ref, rtol=1e-3, atol=1e-3), "f32 mismatch vs reference"

    # bf16 MXU-operand path (halved weight/activation traffic): loose check.
    out16 = decoder_block(prepare_params(params, Wc, jnp.bfloat16), x, conn)
    out16 = jax.block_until_ready(out16)
    assert out16.shape == (N, out_ch, 2 * Hc, 2 * Wc)
    assert float(jnp.max(jnp.abs(out16 - ref))) < 0.2, "bf16 path diverged"

    print("KERNEL_OK")
</pallas_src>

<mosaic_0001>
module attributes {stable_mosaic.version = 11 : i64} {
  func.func @kernel(%arg0: i32, %arg1: memref<1x8x128xf32, #tpu.memory_space<vmem>>, %arg2: memref<1x18x144xf32, #tpu.memory_space<vmem>>, %arg3: memref<128x256xf32, #tpu.memory_space<vmem>>, %arg4: memref<1x256xf32, #tpu.memory_space<vmem>>, %arg5: memref<3x144x128xf32, #tpu.memory_space<vmem>>, %arg6: memref<3x144x128xf32, #tpu.memory_space<vmem>>, %arg7: memref<3x3x144x128xf32, #tpu.memory_space<vmem>>, %arg8: memref<4x1x128xf32, #tpu.memory_space<vmem>>, %arg9: memref<1x16x128xf32, #tpu.memory_space<vmem>>, %arg10: memref<18x144xf32, #tpu.memory_space<vmem>>, %arg11: memref<18x144xf32, #tpu.memory_space<vmem>>, %arg12: memref<18x144xf32, #tpu.memory_space<vmem>>) attributes {dimension_semantics = [#tpu.dimension_semantics<parallel>], iteration_bounds = array<i64: 2>, scalar_prefetch = 0 : i64, scratch_operands = 3 : i64, tpu.core_type = #tpu.core_type<tc>, window_params = [{transform_indices = @transform_0, window_bounds = array<i64: 1, 8, 128>}, {transform_indices = @transform_1, window_bounds = array<i64: 1, 18, 144>}, {pipeline_mode = #tpu.pipeline_mode<synchronous>, transform_indices = @transform_2, window_bounds = array<i64: 128, 256>}, {pipeline_mode = #tpu.pipeline_mode<synchronous>, transform_indices = @transform_3, window_bounds = array<i64: 1, 256>}, {pipeline_mode = #tpu.pipeline_mode<synchronous>, transform_indices = @transform_4, window_bounds = array<i64: 3, 144, 128>}, {pipeline_mode = #tpu.pipeline_mode<synchronous>, transform_indices = @transform_5, window_bounds = array<i64: 3, 144, 128>}, {pipeline_mode = #tpu.pipeline_mode<synchronous>, transform_indices = @transform_6, window_bounds = array<i64: 3, 3, 144, 128>}, {pipeline_mode = #tpu.pipeline_mode<synchronous>, transform_indices = @transform_7, window_bounds = array<i64: 4, 1, 128>}, {transform_indices = @transform_8, window_bounds = array<i64: 1, 16, 128>}]} {
    %cst = arith.constant 0.000000e+00 : f32
    %0 = vector.broadcast %cst : f32 to vector<1x144xf32>
    %c0 = arith.constant 0 : index
    %c0_0 = arith.constant 0 : index
    %1 = vector.load %arg10[%c0, %c0_0] : memref<18x144xf32, #tpu.memory_space<vmem>>, vector<1x144xf32>
    tpu.vector_store %arg10[%c0, %c0_0], %0 {strides = array<i32>} : memref<18x144xf32, #tpu.memory_space<vmem>>, vector<1x144xf32>,
    %cst_1 = arith.constant 0.000000e+00 : f32
    %2 = vector.broadcast %cst_1 : f32 to vector<1x144xf32>
    %c17 = arith.constant 17 : index
    %c0_2 = arith.constant 0 : index
    %3 = vector.load %arg10[%c17, %c0_2] : memref<18x144xf32, #tpu.memory_space<vmem>>, vector<1x144xf32>
    tpu.vector_store %arg10[%c17, %c0_2], %2 {strides = array<i32>} : memref<18x144xf32, #tpu.memory_space<vmem>>, vector<1x144xf32>,
    %cst_3 = arith.constant 0.000000e+00 : f32
    %4 = vector.broadcast %cst_3 : f32 to vector<18x8xf32>
    %c0_4 = arith.constant 0 : index
    %c0_5 = arith.constant 0 : index
    %5 = vector.load %arg10[%c0_4, %c0_5] : memref<18x144xf32, #tpu.memory_space<vmem>>, vector<18x8xf32>
    tpu.vector_store %arg10[%c0_4, %c0_5], %4 {strides = array<i32>} : memref<18x144xf32, #tpu.memory_space<vmem>>, vector<18x8xf32>,
    %cst_6 = arith.constant 0.000000e+00 : f32
    %6 = vector.broadcast %cst_6 : f32 to vector<18x8xf32>
    %c0_7 = arith.constant 0 : index
    %c136 = arith.constant 136 : index
    %7 = vector.load %arg10[%c0_7, %c136] : memref<18x144xf32, #tpu.memory_space<vmem>>, vector<18x8xf32>
    tpu.vector_store %arg10[%c0_7, %c136], %6 {strides = array<i32>} : memref<18x144xf32, #tpu.memory_space<vmem>>, vector<18x8xf32>,
    %cst_8 = arith.constant 0.000000e+00 : f32
    %8 = vector.broadcast %cst_8 : f32 to vector<1x144xf32>
    %c0_9 = arith.constant 0 : index
    %c0_10 = arith.constant 0 : index
    %9 = vector.load %arg11[%c0_9, %c0_10] : memref<18x144xf32, #tpu.memory_space<vmem>>, vector<1x144xf32>
    tpu.vector_store %arg11[%c0_9, %c0_10], %8 {strides = array<i32>} : memref<18x144xf32, #tpu.memory_space<vmem>>, vector<1x144xf32>,
    %cst_11 = arith.constant 0.000000e+00 : f32
    %10 = vector.broadcast %cst_11 : f32 to vector<1x144xf32>
    %c17_12 = arith.constant 17 : index
    %c0_13 = arith.constant 0 : index
    %11 = vector.load %arg11[%c17_12, %c0_13] : memref<18x144xf32, #tpu.memory_space<vmem>>, vector<1x144xf32>
    tpu.vector_store %arg11[%c17_12, %c0_13], %10 {strides = array<i32>} : memref<18x144xf32, #tpu.memory_space<vmem>>, vector<1x144xf32>,
    %cst_14 = arith.constant 0.000000e+00 : f32
    %12 = vector.broadcast %cst_14 : f32 to vector<18x8xf32>
    %c0_15 = arith.constant 0 : index
    %c0_16 = arith.constant 0 : index
    %13 = vector.load %arg11[%c0_15, %c0_16] : memref<18x144xf32, #tpu.memory_space<vmem>>, vector<18x8xf32>
    tpu.vector_store %arg11[%c0_15, %c0_16], %12 {strides = array<i32>} : memref<18x144xf32, #tpu.memory_space<vmem>>, vector<18x8xf32>,
    %cst_17 = arith.constant 0.000000e+00 : f32
    %14 = vector.broadcast %cst_17 : f32 to vector<18x8xf32>
    %c0_18 = arith.constant 0 : index
    %c136_19 = arith.constant 136 : index
    %15 = vector.load %arg11[%c0_18, %c136_19] : memref<18x144xf32, #tpu.memory_space<vmem>>, vector<18x8xf32>
    tpu.vector_store %arg11[%c0_18, %c136_19], %14 {strides = array<i32>} : memref<18x144xf32, #tpu.memory_space<vmem>>, vector<18x8xf32>,
    %cst_20 = arith.constant 0.000000e+00 : f32
    %16 = vector.broadcast %cst_20 : f32 to vector<1x144xf32>
    %c0_21 = arith.constant 0 : index
    %c0_22 = arith.constant 0 : index
    %17 = vector.load %arg12[%c0_21, %c0_22] : memref<18x144xf32, #tpu.memory_space<vmem>>, vector<1x144xf32>
    tpu.vector_store %arg12[%c0_21, %c0_22], %16 {strides = array<i32>} : memref<18x144xf32, #tpu.memory_space<vmem>>, vector<1x144xf32>,
    %cst_23 = arith.constant 0.000000e+00 : f32
    %18 = vector.broadcast %cst_23 : f32 to vector<1x144xf32>
    %c17_24 = arith.constant 17 : index
    %c0_25 = arith.constant 0 : index
    %19 = vector.load %arg12[%c17_24, %c0_25] : memref<18x144xf32, #tpu.memory_space<vmem>>, vector<1x144xf32>
    tpu.vector_store %arg12[%c17_24, %c0_25], %18 {strides = array<i32>} : memref<18x144xf32, #tpu.memory_space<vmem>>, vector<1x144xf32>,
    %cst_26 = arith.constant 0.000000e+00 : f32
    %20 = vector.broadcast %cst_26 : f32 to vector<18x8xf32>
    %c0_27 = arith.constant 0 : index
    %c0_28 = arith.constant 0 : index
    %21 = vector.load %arg12[%c0_27, %c0_28] : memref<18x144xf32, #tpu.memory_space<vmem>>, vector<18x8xf32>
    tpu.vector_store %arg12[%c0_27, %c0_28], %20 {strides = array<i32>} : memref<18x144xf32, #tpu.memory_space<vmem>>, vector<18x8xf32>,
    %cst_29 = arith.constant 0.000000e+00 : f32
    %22 = vector.broadcast %cst_29 : f32 to vector<18x8xf32>
    %c0_30 = arith.constant 0 : index
    %c136_31 = arith.constant 136 : index
    %23 = vector.load %arg12[%c0_30, %c136_31] : memref<18x144xf32, #tpu.memory_space<vmem>>, vector<18x8xf32>
    tpu.vector_store %arg12[%c0_30, %c136_31], %22 {strides = array<i32>} : memref<18x144xf32, #tpu.memory_space<vmem>>, vector<18x8xf32>,
    %c0_32 = arith.constant 0 : index
    %c0_33 = arith.constant 0 : index
    %c0_34 = arith.constant 0 : index
    %24 = vector.load %arg1[%c0_32, %c0_33, %c0_34] : memref<1x8x128xf32, #tpu.memory_space<vmem>>, vector<1x8x128xf32>
    %25 = vector.shape_cast %24 : vector<1x8x128xf32> to vector<8x128xf32>
    %c0_35 = arith.constant 0 : index
    %c0_36 = arith.constant 0 : index
    %26 = vector.load %arg3[%c0_35, %c0_36] : memref<128x256xf32, #tpu.memory_space<vmem>>, vector<128x256xf32>
    %cst_37 = arith.constant dense<0.000000e+00> : vector<8x256xf32>
    %27 = tpu.matmul %25, %26, %cst_37 {dimension_numbers = #tpu.dot_dimension_numbers<[1], [0], [0], [1], [0, 0, 1, 1], [], []>} : vector<8x128xf32>, vector<128x256xf32>, vector<8x256xf32> -> vector<8x256xf32>
    %c0_38 = arith.constant 0 : index
    %c0_39 = arith.constant 0 : index
    %28 = vector.load %arg4[%c0_38, %c0_39] : memref<1x256xf32, #tpu.memory_space<vmem>>, vector<1x256xf32>
    %29 = vector.broadcast %28 : vector<1x256xf32> to vector<8x256xf32>
    %30 = arith.addf %27, %29 : vector<8x256xf32>
    %31 = vector.extract_strided_slice %30 {offsets = [0, 0], sizes = [8, 128], strides = [1, 1]} : vector<8x256xf32> to vector<8x128xf32>
    %32 = vector.extract_strided_slice %30 {offsets = [0, 128], sizes = [8, 128], strides = [1, 1]} : vector<8x256xf32> to vector<8x128xf32>
    %33 = vector.shape_cast %31 : vector<8x128xf32> to vector<8x1x128xf32>
    %34 = vector.shape_cast %33 : vector<8x1x128xf32> to vector<8x1x128xf32>
    %35 = vector.broadcast %34 : vector<8x1x128xf32> to vector<8x2x128xf32>
    %36 = vector.shape_cast %35 : vector<8x2x128xf32> to vector<16x128xf32>
    %37 = vector.shape_cast %32 : vector<8x128xf32> to vector<8x1x128xf32>
    %38 = vector.shape_cast %37 : vector<8x1x128xf32> to vector<8x1x128xf32>
    %39 = vector.broadcast %38 : vector<8x1x128xf32> to vector<8x2x128xf32>
    %40 = vector.shape_cast %39 : vector<8x2x128xf32> to vector<16x128xf32>
    %41 = tpu.iota {dimensions = array<i32: 0>} : vector<16x1xi32>
    %c2_i32 = arith.constant 2 : i32
    %c0_i32 = arith.constant 0 : i32
    %42 = arith.cmpi eq, %c2_i32, %c0_i32 : i32
    %c1_i32 = arith.constant 1 : i32
    %43 = arith.select %42, %c1_i32, %c2_i32 : i32
    %44 = vector.broadcast %43 : i32 to vector<16x1xi32>
    %45 = arith.remsi %41, %44 : vector<16x1xi32>
    %c0_i32_40 = arith.constant 0 : i32
    %46 = vector.broadcast %c0_i32_40 : i32 to vector<16x1xi32>
    %47 = arith.cmpi ne, %45, %46 : vector<16x1xi32>
    %c0_i32_41 = arith.constant 0 : i32
    %48 = vector.broadcast %c0_i32_41 : i32 to vector<16x1xi32>
    %49 = arith.cmpi slt, %45, %48 : vector<16x1xi32>
    %c0_i32_42 = arith.constant 0 : i32
    %50 = arith.cmpi slt, %43, %c0_i32_42 : i32
    %51 = vector.broadcast %50 : i1 to vector<16x1xi1>
    %52 = vector.broadcast %51 : vector<16x1xi1> to vector<16x1xi1>
    %53 = arith.xori %49, %52 : vector<16x1xi1>
    %54 = arith.andi %53, %47 : vector<16x1xi1>
    %55 = vector.broadcast %43 : i32 to vector<16x1xi32>
    %56 = arith.addi %45, %55 : vector<16x1xi32>
    %57 = arith.select %54, %56, %45 : vector<16x1xi1>, vector<16x1xi32>
    %c0_i32_43 = arith.constant 0 : i32
    %58 = vector.broadcast %c0_i32_43 : i32 to vector<16x1xi32>
    %59 = arith.cmpi eq, %57, %58 : vector<16x1xi32>
    %60 = vector.shape_cast %59 : vector<16x1xi1> to vector<16x1xi1>
    %61 = vector.broadcast %60 : vector<16x1xi1> to vector<16x128xi1>
    %62 = arith.select %61, %36, %40 : vector<16x128xi1>, vector<16x128xf32>
    %c1 = arith.constant 1 : index
    %c8 = arith.constant 8 : index
    %63 = vector.load %arg10[%c1, %c8] : memref<18x144xf32, #tpu.memory_space<vmem>>, vector<16x128xf32>
    tpu.vector_store %arg10[%c1, %c8], %62 {strides = array<i32>} : memref<18x144xf32, #tpu.memory_space<vmem>>, vector<16x128xf32>,
    %c0_44 = arith.constant 0 : index
    %c0_45 = arith.constant 0 : index
    %c0_46 = arith.constant 0 : index
    %64 = vector.load %arg8[%c0_44, %c0_45, %c0_46] : memref<4x1x128xf32, #tpu.memory_space<vmem>>, vector<1x1x128xf32>
    %65 = vector.shape_cast %64 : vector<1x1x128xf32> to vector<1x128xf32>
    %cst_47 = arith.constant 0.000000e+00 : f32
    %66 = vector.broadcast %cst_47 : f32 to vector<16x128xf32>
    %c0_48 = arith.constant 0 : index
    %c0_49 = arith.constant 0 : index
    %c0_50 = arith.constant 0 : index
    %67 = vector.load %arg2[%c0_48, %c0_49, %c0_50] : memref<1x18x144xf32, #tpu.memory_space<vmem>>, vector<1x16x144xf32>
    %68 = vector.shape_cast %67 : vector<1x16x144xf32> to vector<16x144xf32>
    %c0_51 = arith.constant 0 : index
    %c0_52 = arith.constant 0 : index
    %c0_53 = arith.constant 0 : index
    %69 = vector.load %arg5[%c0_51, %c0_52, %c0_53] : memref<3x144x128xf32, #tpu.memory_space<vmem>>, vector<1x144x128xf32>
    %70 = vector.shape_cast %69 : vector<1x144x128xf32> to vector<144x128xf32>
    %cst_54 = arith.constant dense<0.000000e+00> : vector<16x128xf32>
    %71 = tpu.matmul %68, %70, %cst_54 {dimension_numbers = #tpu.dot_dimension_numbers<[1], [0], [0], [1], [0, 0, 1, 1], [], []>} : vector<16x144xf32>, vector<144x128xf32>, vector<16x128xf32> -> vector<16x128xf32>
    %72 = arith.addf %66, %71 : vector<16x128xf32>
    %c0_55 = arith.constant 0 : index
    %c1_56 = arith.constant 1 : index
    %c0_57 = arith.constant 0 : index
    %73 = vector.load %arg2[%c0_55, %c1_56, %c0_57] : memref<1x18x144xf32, #tpu.memory_space<vmem>>, vector<1x16x144xf32>
    %74 = vector.shape_cast %73 : vector<1x16x144xf32> to vector<16x144xf32>
    %c1_58 = arith.constant 1 : index
    %c0_59 = arith.constant 0 : index
    %c0_60 = arith.constant 0 : index
    %75 = vector.load %arg5[%c1_58, %c0_59, %c0_60] : memref<3x144x128xf32, #tpu.memory_space<vmem>>, vector<1x144x128xf32>
    %76 = vector.shape_cast %75 : vector<1x144x128xf32> to vector<144x128xf32>
    %cst_61 = arith.constant dense<0.000000e+00> : vector<16x128xf32>
    %77 = tpu.matmul %74, %76, %cst_61 {dimension_numbers = #tpu.dot_dimension_numbers<[1], [0], [0], [1], [0, 0, 1, 1], [], []>} : vector<16x144xf32>, vector<144x128xf32>, vector<16x128xf32> -> vector<16x128xf32>
    %78 = arith.addf %72, %77 : vector<16x128xf32>
    %c0_62 = arith.constant 0 : index
    %c2 = arith.constant 2 : index
    %c0_63 = arith.constant 0 : index
    %79 = vector.load %arg2[%c0_62, %c2, %c0_63] : memref<1x18x144xf32, #tpu.memory_space<vmem>>, vector<1x16x144xf32>
    %80 = vector.shape_cast %79 : vector<1x16x144xf32> to vector<16x144xf32>
    %c2_64 = arith.constant 2 : index
    %c0_65 = arith.constant 0 : index
    %c0_66 = arith.constant 0 : index
    %81 = vector.load %arg5[%c2_64, %c0_65, %c0_66] : memref<3x144x128xf32, #tpu.memory_space<vmem>>, vector<1x144x128xf32>
    %82 = vector.shape_cast %81 : vector<1x144x128xf32> to vector<144x128xf32>
    %cst_67 = arith.constant dense<0.000000e+00> : vector<16x128xf32>
    %83 = tpu.matmul %80, %82, %cst_67 {dimension_numbers = #tpu.dot_dimension_numbers<[1], [0], [0], [1], [0, 0, 1, 1], [], []>} : vector<16x144xf32>, vector<144x128xf32>, vector<16x128xf32> -> vector<16x128xf32>
    %84 = arith.addf %78, %83 : vector<16x128xf32>
    %c0_68 = arith.constant 0 : index
    %c0_69 = arith.constant 0 : index
    %85 = vector.load %arg10[%c0_68, %c0_69] : memref<18x144xf32, #tpu.memory_space<vmem>>, vector<16x144xf32>
    %c0_70 = arith.constant 0 : index
    %c0_71 = arith.constant 0 : index
    %c0_72 = arith.constant 0 : index
    %86 = vector.load %arg6[%c0_70, %c0_71, %c0_72] : memref<3x144x128xf32, #tpu.memory_space<vmem>>, vector<1x144x128xf32>
    %87 = vector.shape_cast %86 : vector<1x144x128xf32> to vector<144x128xf32>
    %cst_73 = arith.constant dense<0.000000e+00> : vector<16x128xf32>
    %88 = tpu.matmul %85, %87, %cst_73 {dimension_numbers = #tpu.dot_dimension_numbers<[1], [0], [0], [1], [0, 0, 1, 1], [], []>} : vector<16x144xf32>, vector<144x128xf32>, vector<16x128xf32> -> vector<16x128xf32>
    %89 = arith.addf %84, %88 : vector<16x128xf32>
    %c1_74 = arith.constant 1 : index
    %c0_75 = arith.constant 0 : index
    %90 = vector.load %arg10[%c1_74, %c0_75] : memref<18x144xf32, #tpu.memory_space<vmem>>, vector<16x144xf32>
    %c1_76 = arith.constant 1 : index
    %c0_77 = arith.constant 0 : index
    %c0_78 = arith.constant 0 : index
    %91 = vector.load %arg6[%c1_76, %c0_77, %c0_78] : memref<3x144x128xf32, #tpu.memory_space<vmem>>, vector<1x144x128xf32>
    %92 = vector.shape_cast %91 : vector<1x144x128xf32> to vector<144x128xf32>
    %cst_79 = arith.constant dense<0.000000e+00> : vector<16x128xf32>
    %93 = tpu.matmul %90, %92, %cst_79 {dimension_numbers = #tpu.dot_dimension_numbers<[1], [0], [0], [1], [0, 0, 1, 1], [], []>} : vector<16x144xf32>, vector<144x128xf32>, vector<16x128xf32> -> vector<16x128xf32>
    %94 = arith.addf %89, %93 : vector<16x128xf32>
    %c2_80 = arith.constant 2 : index
    %c0_81 = arith.constant 0 : index
    %95 = vector.load %arg10[%c2_80, %c0_81] : memref<18x144xf32, #tpu.memory_space<vmem>>, vector<16x144xf32>
    %c2_82 = arith.constant 2 : index
    %c0_83 = arith.constant 0 : index
    %c0_84 = arith.constant 0 : index
    %96 = vector.load %arg6[%c2_82, %c0_83, %c0_84] : memref<3x144x128xf32, #tpu.memory_space<vmem>>, vector<1x144x128xf32>
    %97 = vector.shape_cast %96 : vector<1x144x128xf32> to vector<144x128xf32>
    %cst_85 = arith.constant dense<0.000000e+00> : vector<16x128xf32>
    %98 = tpu.matmul %95, %97, %cst_85 {dimension_numbers = #tpu.dot_dimension_numbers<[1], [0], [0], [1], [0, 0, 1, 1], [], []>} : vector<16x144xf32>, vector<144x128xf32>, vector<16x128xf32> -> vector<16x128xf32>
    %99 = arith.addf %94, %98 : vector<16x128xf32>
    %100 = vector.broadcast %65 : vector<1x128xf32> to vector<16x128xf32>
    %101 = arith.addf %99, %100 : vector<16x128xf32>
    %cst_86 = arith.constant 0.000000e+00 : f32
    %102 = vector.broadcast %cst_86 : f32 to vector<16x128xf32>
    %103 = arith.maximumf %101, %102 : vector<16x128xf32>
    %c1_87 = arith.constant 1 : index
    %c8_88 = arith.constant 8 : index
    %104 = vector.load %arg11[%c1_87, %c8_88] : memref<18x144xf32, #tpu.memory_space<vmem>>, vector<16x128xf32>
    tpu.vector_store %arg11[%c1_87, %c8_88], %103 {strides = array<i32>} : memref<18x144xf32, #tpu.memory_space<vmem>>, vector<16x128xf32>,
    %c1_89 = arith.constant 1 : index
    %c0_90 = arith.constant 0 : index
    %c0_91 = arith.constant 0 : index
    %105 = vector.load %arg8[%c1_89, %c0_90, %c0_91] : memref<4x1x128xf32, #tpu.memory_space<vmem>>, vector<1x1x128xf32>
    %106 = vector.shape_cast %105 : vector<1x1x128xf32> to vector<1x128xf32>
    %cst_92 = arith.constant 0.000000e+00 : f32
    %107 = vector.broadcast %cst_92 : f32 to vector<16x128xf32>
    %c0_93 = arith.constant 0 : index
    %c0_94 = arith.constant 0 : index
    %108 = vector.load %arg11[%c0_93, %c0_94] : memref<18x144xf32, #tpu.memory_space<vmem>>, vector<16x144xf32>
    %c0_95 = arith.constant 0 : index
    %c0_96 = arith.constant 0 : index
    %c0_97 = arith.constant 0 : index
    %c0_98 = arith.constant 0 : index
    %109 = vector.load %arg7[%c0_95, %c0_96, %c0_97, %c0_98] : memref<3x3x144x128xf32, #tpu.memory_space<vmem>>, vector<1x1x144x128xf32>
    %110 = vector.shape_cast %109 : vector<1x1x144x128xf32> to vector<144x128xf32>
    %cst_99 = arith.constant dense<0.000000e+00> : vector<16x128xf32>
    %111 = tpu.matmul %108, %110, %cst_99 {dimension_numbers = #tpu.dot_dimension_numbers<[1], [0], [0], [1], [0, 0, 1, 1], [], []>} : vector<16x144xf32>, vector<144x128xf32>, vector<16x128xf32> -> vector<16x128xf32>
    %112 = arith.addf %107, %111 : vector<16x128xf32>
    %c1_100 = arith.constant 1 : index
    %c0_101 = arith.constant 0 : index
    %113 = vector.load %arg11[%c1_100, %c0_101] : memref<18x144xf32, #tpu.memory_space<vmem>>, vector<16x144xf32>
    %c0_102 = arith.constant 0 : index
    %c1_103 = arith.constant 1 : index
    %c0_104 = arith.constant 0 : index
    %c0_105 = arith.constant 0 : index
    %114 = vector.load %arg7[%c0_102, %c1_103, %c0_104, %c0_105] : memref<3x3x144x128xf32, #tpu.memory_space<vmem>>, vector<1x1x144x128xf32>
    %115 = vector.shape_cast %114 : vector<1x1x144x128xf32> to vector<144x128xf32>
    %cst_106 = arith.constant dense<0.000000e+00> : vector<16x128xf32>
    %116 = tpu.matmul %113, %115, %cst_106 {dimension_numbers = #tpu.dot_dimension_numbers<[1], [0], [0], [1], [0, 0, 1, 1], [], []>} : vector<16x144xf32>, vector<144x128xf32>, vector<16x128xf32> -> vector<16x128xf32>
    %117 = arith.addf %112, %116 : vector<16x128xf32>
    %c2_107 = arith.constant 2 : index
    %c0_108 = arith.constant 0 : index
    %118 = vector.load %arg11[%c2_107, %c0_108] : memref<18x144xf32, #tpu.memory_space<vmem>>, vector<16x144xf32>
    %c0_109 = arith.constant 0 : index
    %c2_110 = arith.constant 2 : index
    %c0_111 = arith.constant 0 : index
    %c0_112 = arith.constant 0 : index
    %119 = vector.load %arg7[%c0_109, %c2_110, %c0_111, %c0_112] : memref<3x3x144x128xf32, #tpu.memory_space<vmem>>, vector<1x1x144x128xf32>
    %120 = vector.shape_cast %119 : vector<1x1x144x128xf32> to vector<144x128xf32>
    %cst_113 = arith.constant dense<0.000000e+00> : vector<16x128xf32>
    %121 = tpu.matmul %118, %120, %cst_113 {dimension_numbers = #tpu.dot_dimension_numbers<[1], [0], [0], [1], [0, 0, 1, 1], [], []>} : vector<16x144xf32>, vector<144x128xf32>, vector<16x128xf32> -> vector<16x128xf32>
    %122 = arith.addf %117, %121 : vector<16x128xf32>
    %123 = vector.broadcast %106 : vector<1x128xf32> to vector<16x128xf32>
    %124 = arith.addf %122, %123 : vector<16x128xf32>
    %cst_114 = arith.constant 0.000000e+00 : f32
    %125 = vector.broadcast %cst_114 : f32 to vector<16x128xf32>
    %126 = arith.maximumf %124, %125 : vector<16x128xf32>
    %c1_115 = arith.constant 1 : index
    %c8_116 = arith.constant 8 : index
    %127 = vector.load %arg12[%c1_115, %c8_116] : memref<18x144xf32, #tpu.memory_space<vmem>>, vector<16x128xf32>
    tpu.vector_store %arg12[%c1_115, %c8_116], %126 {strides = array<i32>} : memref<18x144xf32, #tpu.memory_space<vmem>>, vector<16x128xf32>,
    %c2_117 = arith.constant 2 : index
    %c0_118 = arith.constant 0 : index
    %c0_119 = arith.constant 0 : index
    %128 = vector.load %arg8[%c2_117, %c0_118, %c0_119] : memref<4x1x128xf32, #tpu.memory_space<vmem>>, vector<1x1x128xf32>
    %129 = vector.shape_cast %128 : vector<1x1x128xf32> to vector<1x128xf32>
    %cst_120 = arith.constant 0.000000e+00 : f32
    %130 = vector.broadcast %cst_120 : f32 to vector<16x128xf32>
    %c0_121 = arith.constant 0 : index
    %c0_122 = arith.constant 0 : index
    %131 = vector.load %arg12[%c0_121, %c0_122] : memref<18x144xf32, #tpu.memory_space<vmem>>, vector<16x144xf32>
    %c1_123 = arith.constant 1 : index
    %c0_124 = arith.constant 0 : index
    %c0_125 = arith.constant 0 : index
    %c0_126 = arith.constant 0 : index
    %132 = vector.load %arg7[%c1_123, %c0_124, %c0_125, %c0_126] : memref<3x3x144x128xf32, #tpu.memory_space<vmem>>, vector<1x1x144x128xf32>
    %133 = vector.shape_cast %132 : vector<1x1x144x128xf32> to vector<144x128xf32>
    %cst_127 = arith.constant dense<0.000000e+00> : vector<16x128xf32>
    %134 = tpu.matmul %131, %133, %cst_127 {dimension_numbers = #tpu.dot_dimension_numbers<[1], [0], [0], [1], [0, 0, 1, 1], [], []>} : vector<16x144xf32>, vector<144x128xf32>, vector<16x128xf32> -> vector<16x128xf32>
    %135 = arith.addf %130, %134 : vector<16x128xf32>
    %c1_128 = arith.constant 1 : index
    %c0_129 = arith.constant 0 : index
    %136 = vector.load %arg12[%c1_128, %c0_129] : memref<18x144xf32, #tpu.memory_space<vmem>>, vector<16x144xf32>
    %c1_130 = arith.constant 1 : index
    %c1_131 = arith.constant 1 : index
    %c0_132 = arith.constant 0 : index
    %c0_133 = arith.constant 0 : index
    %137 = vector.load %arg7[%c1_130, %c1_131, %c0_132, %c0_133] : memref<3x3x144x128xf32, #tpu.memory_space<vmem>>, vector<1x1x144x128xf32>
    %138 = vector.shape_cast %137 : vector<1x1x144x128xf32> to vector<144x128xf32>
    %cst_134 = arith.constant dense<0.000000e+00> : vector<16x128xf32>
    %139 = tpu.matmul %136, %138, %cst_134 {dimension_numbers = #tpu.dot_dimension_numbers<[1], [0], [0], [1], [0, 0, 1, 1], [], []>} : vector<16x144xf32>, vector<144x128xf32>, vector<16x128xf32> -> vector<16x128xf32>
    %140 = arith.addf %135, %139 : vector<16x128xf32>
    %c2_135 = arith.constant 2 : index
    %c0_136 = arith.constant 0 : index
    %141 = vector.load %arg12[%c2_135, %c0_136] : memref<18x144xf32, #tpu.memory_space<vmem>>, vector<16x144xf32>
    %c1_137 = arith.constant 1 : index
    %c2_138 = arith.constant 2 : index
    %c0_139 = arith.constant 0 : index
    %c0_140 = arith.constant 0 : index
    %142 = vector.load %arg7[%c1_137, %c2_138, %c0_139, %c0_140] : memref<3x3x144x128xf32, #tpu.memory_space<vmem>>, vector<1x1x144x128xf32>
    %143 = vector.shape_cast %142 : vector<1x1x144x128xf32> to vector<144x128xf32>
    %cst_141 = arith.constant dense<0.000000e+00> : vector<16x128xf32>
    %144 = tpu.matmul %141, %143, %cst_141 {dimension_numbers = #tpu.dot_dimension_numbers<[1], [0], [0], [1], [0, 0, 1, 1], [], []>} : vector<16x144xf32>, vector<144x128xf32>, vector<16x128xf32> -> vector<16x128xf32>
    %145 = arith.addf %140, %144 : vector<16x128xf32>
    %146 = vector.broadcast %129 : vector<1x128xf32> to vector<16x128xf32>
    %147 = arith.addf %145, %146 : vector<16x128xf32>
    %cst_142 = arith.constant 0.000000e+00 : f32
    %148 = vector.broadcast %cst_142 : f32 to vector<16x128xf32>
    %149 = arith.maximumf %147, %148 : vector<16x128xf32>
    %c1_143 = arith.constant 1 : index
    %c8_144 = arith.constant 8 : index
    %150 = vector.load %arg11[%c1_143, %c8_144] : memref<18x144xf32, #tpu.memory_space<vmem>>, vector<16x128xf32>
    tpu.vector_store %arg11[%c1_143, %c8_144], %149 {strides = array<i32>} : memref<18x144xf32, #tpu.memory_space<vmem>>, vector<16x128xf32>,
    %c3 = arith.constant 3 : index
    %c0_145 = arith.constant 0 : index
    %c0_146 = arith.constant 0 : index
    %151 = vector.load %arg8[%c3, %c0_145, %c0_146] : memref<4x1x128xf32, #tpu.memory_space<vmem>>, vector<1x1x128xf32>
    %152 = vector.shape_cast %151 : vector<1x1x128xf32> to vector<1x128xf32>
    %cst_147 = arith.constant 0.000000e+00 : f32
    %153 = vector.broadcast %cst_147 : f32 to vector<16x128xf32>
    %c0_148 = arith.constant 0 : index
    %c0_149 = arith.constant 0 : index
    %154 = vector.load %arg11[%c0_148, %c0_149] : memref<18x144xf32, #tpu.memory_space<vmem>>, vector<16x144xf32>
    %c2_150 = arith.constant 2 : index
    %c0_151 = arith.constant 0 : index
    %c0_152 = arith.constant 0 : index
    %c0_153 = arith.constant 0 : index
    %155 = vector.load %arg7[%c2_150, %c0_151, %c0_152, %c0_153] : memref<3x3x144x128xf32, #tpu.memory_space<vmem>>, vector<1x1x144x128xf32>
    %156 = vector.shape_cast %155 : vector<1x1x144x128xf32> to vector<144x128xf32>
    %cst_154 = arith.constant dense<0.000000e+00> : vector<16x128xf32>
    %157 = tpu.matmul %154, %156, %cst_154 {dimension_numbers = #tpu.dot_dimension_numbers<[1], [0], [0], [1], [0, 0, 1, 1], [], []>} : vector<16x144xf32>, vector<144x128xf32>, vector<16x128xf32> -> vector<16x128xf32>
    %158 = arith.addf %153, %157 : vector<16x128xf32>
    %c1_155 = arith.constant 1 : index
    %c0_156 = arith.constant 0 : index
    %159 = vector.load %arg11[%c1_155, %c0_156] : memref<18x144xf32, #tpu.memory_space<vmem>>, vector<16x144xf32>
    %c2_157 = arith.constant 2 : index
    %c1_158 = arith.constant 1 : index
    %c0_159 = arith.constant 0 : index
    %c0_160 = arith.constant 0 : index
    %160 = vector.load %arg7[%c2_157, %c1_158, %c0_159, %c0_160] : memref<3x3x144x128xf32, #tpu.memory_space<vmem>>, vector<1x1x144x128xf32>
    %161 = vector.shape_cast %160 : vector<1x1x144x128xf32> to vector<144x128xf32>
    %cst_161 = arith.constant dense<0.000000e+00> : vector<16x128xf32>
    %162 = tpu.matmul %159, %161, %cst_161 {dimension_numbers = #tpu.dot_dimension_numbers<[1], [0], [0], [1], [0, 0, 1, 1], [], []>} : vector<16x144xf32>, vector<144x128xf32>, vector<16x128xf32> -> vector<16x128xf32>
    %163 = arith.addf %158, %162 : vector<16x128xf32>
    %c2_162 = arith.constant 2 : index
    %c0_163 = arith.constant 0 : index
    %164 = vector.load %arg11[%c2_162, %c0_163] : memref<18x144xf32, #tpu.memory_space<vmem>>, vector<16x144xf32>
    %c2_164 = arith.constant 2 : index
    %c2_165 = arith.constant 2 : index
    %c0_166 = arith.constant 0 : index
    %c0_167 = arith.constant 0 : index
    %165 = vector.load %arg7[%c2_164, %c2_165, %c0_166, %c0_167] : memref<3x3x144x128xf32, #tpu.memory_space<vmem>>, vector<1x1x144x128xf32>
    %166 = vector.shape_cast %165 : vector<1x1x144x128xf32> to vector<144x128xf32>
    %cst_168 = arith.constant dense<0.000000e+00> : vector<16x128xf32>
    %167 = tpu.matmul %164, %166, %cst_168 {dimension_numbers = #tpu.dot_dimension_numbers<[1], [0], [0], [1], [0, 0, 1, 1], [], []>} : vector<16x144xf32>, vector<144x128xf32>, vector<16x128xf32> -> vector<16x128xf32>
    %168 = arith.addf %163, %167 : vector<16x128xf32>
    %169 = vector.broadcast %152 : vector<1x128xf32> to vector<16x128xf32>
    %170 = arith.addf %168, %169 : vector<16x128xf32>
    %cst_169 = arith.constant 0.000000e+00 : f32
    %171 = vector.broadcast %cst_169 : f32 to vector<16x128xf32>
    %172 = arith.maximumf %170, %171 : vector<16x128xf32>
    %c0_170 = arith.constant 0 : index
    %c0_171 = arith.constant 0 : index
    %c0_172 = arith.constant 0 : index
    %173 = vector.load %arg9[%c0_170, %c0_171, %c0_172] : memref<1x16x128xf32, #tpu.memory_space<vmem>>, vector<1x16x128xf32>
    %174 = vector.shape_cast %173 : vector<1x16x128xf32> to vector<16x128xf32>
    %175 = vector.shape_cast %172 : vector<16x128xf32> to vector<1x16x128xf32>
    tpu.vector_store %arg9[%c0_170, %c0_171, %c0_172], %175 {strides = array<i32>} : memref<1x16x128xf32, #tpu.memory_space<vmem>>, vector<1x16x128xf32>,
    return
  }
  func.func @transform_0(%arg0: i32) -> (i32, i32, i32) {
    %c0_i32 = arith.constant 0 : i32
    %c0_i32_0 = arith.constant 0 : i32
    %c0_i32_1 = arith.constant 0 : i32
    return %arg0, %c0_i32, %c0_i32_0 : i32, i32, i32
  }
  func.func @transform_1(%arg0: i32) -> (i32, i32, i32) {
    %c0_i32 = arith.constant 0 : i32
    %c0_i32_0 = arith.constant 0 : i32
    %c0_i32_1 = arith.constant 0 : i32
    return %arg0, %c0_i32, %c0_i32_0 : i32, i32, i32
  }
  func.func @transform_2(%arg0: i32) -> (i32, i32) {
    %c0_i32 = arith.constant 0 : i32
    %c0_i32_0 = arith.constant 0 : i32
    %c0_i32_1 = arith.constant 0 : i32
    return %c0_i32, %c0_i32_0 : i32, i32
  }
  func.func @transform_3(%arg0: i32) -> (i32, i32) {
    %c0_i32 = arith.constant 0 : i32
    %c0_i32_0 = arith.constant 0 : i32
    %c0_i32_1 = arith.constant 0 : i32
    return %c0_i32, %c0_i32_0 : i32, i32
  }
  func.func @transform_4(%arg0: i32) -> (i32, i32, i32) {
    %c0_i32 = arith.constant 0 : i32
    %c0_i32_0 = arith.constant 0 : i32
    %c0_i32_1 = arith.constant 0 : i32
    %c0_i32_2 = arith.constant 0 : i32
    return %c0_i32, %c0_i32_0, %c0_i32_1 : i32, i32, i32
  }
  func.func @transform_5(%arg0: i32) -> (i32, i32, i32) {
    %c0_i32 = arith.constant 0 : i32
    %c0_i32_0 = arith.constant 0 : i32
    %c0_i32_1 = arith.constant 0 : i32
    %c0_i32_2 = arith.constant 0 : i32
    return %c0_i32, %c0_i32_0, %c0_i32_1 : i32, i32, i32
  }
  func.func @transform_6(%arg0: i32) -> (i32, i32, i32, i32) {
    %c0_i32 = arith.constant 0 : i32
    %c0_i32_0 = arith.constant 0 : i32
    %c0_i32_1 = arith.constant 0 : i32
    %c0_i32_2 = arith.constant 0 : i32
    %c0_i32_3 = arith.constant 0 : i32
    return %c0_i32, %c0_i32_0, %c0_i32_1, %c0_i32_2 : i32, i32, i32, i32
  }
  func.func @transform_7(%arg0: i32) -> (i32, i32, i32) {
    %c0_i32 = arith.constant 0 : i32
    %c0_i32_0 = arith.constant 0 : i32
    %c0_i32_1 = arith.constant 0 : i32
    %c0_i32_2 = arith.constant 0 : i32
    return %c0_i32, %c0_i32_0, %c0_i32_1 : i32, i32, i32
  }
  func.func @transform_8(%arg0: i32) -> (i32, i32, i32) {
    %c0_i32 = arith.constant 0 : i32
    %c0_i32_0 = arith.constant 0 : i32
    %c0_i32_1 = arith.constant 0 : i32
    return %arg0, %c0_i32, %c0_i32_0 : i32, i32, i32
  }
}

</mosaic_0001>

<llo_original>
// kernel: tpu_custom_call.1
$region0: #{tpu_custom_call.1}
  #allocation0 [shape = 'u32[]', space=smem, size = 0x4, offset = 0x4, fixed_abs, tag = 'smem constant byte address 0x4 - core index']
  #allocation1 [shape = 'u32[144,128]{1,0:T(1,128)}', space=vmem, size = 0x12000, scoped, tag = 'internal scratch']
  #allocation2 [shape = 'f32[18,144]{1,0:T(8,128)}', space=vmem, size = 0x6000, scoped, tag = 'scratch operand']
  #allocation3 [shape = 'f32[18,144]{1,0:T(8,128)}', space=vmem, size = 0x6000, scoped, tag = 'scratch operand']
  #allocation4 [shape = 'f32[18,144]{1,0:T(8,128)}', space=vmem, size = 0x6000, scoped, tag = 'scratch operand']
  %s0 = inlined_call_operand.vmem [shape: f32[2,8,128], index: 0, kind: input, shape index: {}]
  %s1 = inlined_call_operand.vmem [shape: f32[2,18,144], index: 1, kind: input, shape index: {}]
  %s2 = inlined_call_operand.hbm [shape: f32[128,256], index: 2, kind: input, shape index: {}]
  %s3 = inlined_call_operand.vmem [shape: f32[1,256], index: 3, kind: input, shape index: {}]
  %s4 = inlined_call_operand.hbm [shape: f32[3,144,128], index: 4, kind: input, shape index: {}]
  %s5 = inlined_call_operand.hbm [shape: f32[3,144,128], index: 5, kind: input, shape index: {}]
  %s6 = inlined_call_operand.hbm [shape: f32[3,3,144,128], index: 6, kind: input, shape index: {}]
  %s7 = inlined_call_operand.vmem [shape: f32[4,1,128], index: 7, kind: input, shape index: {}]
  %s8 = inlined_call_operand.hbm [shape: f32[2,16,128], index: 8, kind: output, shape index: {}]
  %s9 = sld [smem:[#allocation0]]
  $region81: #{tpu_custom_call.1} parent=0
    _
  %s11 = ssub.s32 1, %s9
  %s12 = scalar_select 0, %s11, %s9
  $region1: #{tpu_custom_call.1} parent=0
    #allocation5 [shape = 'u8[131072]{0}', space=vmem, size = 0x20000, scoped, tag = 'input window, operand 2, single buffered']
    #allocation6 [shape = 's32[2]{0}', space=sflag, size = 0x8, scoped, tag = 'scoped memory for tpu_custom_call.1']
    #allocation7 [shape = 's32[2]{0}', space=sflag, size = 0x8, scoped, tag = 'scoped memory for tpu_custom_call.1']
    #allocation8 [shape = 'u8[221184]{0}', space=vmem, size = 0x36000, scoped, tag = 'input window, operand 4, single buffered']
    #allocation9 [shape = 's32[1]{0}', space=sflag, size = 0x4, scoped, tag = 'scoped memory for tpu_custom_call.1']
    #allocation10 [shape = 'u8[221184]{0}', space=vmem, size = 0x36000, scoped, tag = 'input window, operand 5, single buffered']
    #allocation11 [shape = 'u8[663552]{0}', space=vmem, size = 0xa2000, scoped, tag = 'input window, operand 6, single buffered']
    #allocation12 [shape = 's32[1]{0}', space=sflag, size = 0x4, scoped, tag = 'scoped memory for tpu_custom_call.1']
    #allocation13 [shape = 'u8[16384]{0}', space=vmem, size = 0x4000, scoped, tag = 'output window, operand 0']
    %13 = vsyncpa [#allocation6], 0
    %14 = vsyncpa [#allocation9], 0
    %15 = vsyncpa [#allocation12], 0
    %16 = vsyncpa [#allocation7], 0
    %s17 = scalar_lea.sflag [#allocation7], 1
    %18 = vsyncpa %s17, 0
    loop: start=0, step=1, limit=4
    $region2: #{tpu_custom_call.1} parent=1 // loop_pre_header
      _
    $region3: #{tpu_custom_call.1} parent=1 // loop_header
      %s20 = sphi 0, %s24
      %p21 = scmp.ge.s32.totalorder %s20, 4
      %s30 = sphi 0, %s32
      %s33 = sphi 0, %s30
      %s34 = sphi 0, %s33
      %s50 = sphi 0, %s34
      %s56 = sphi 0, %s58
      %s59 = sphi 0, %s56
      %s60 = sphi 0, %s59
      %s76 = sphi 0, %s60
      %s80 = sphi 0, %s80
      %s82 = sphi 0, %s80
      %s83 = sphi 0, %s82
      %s97 = sphi 0, %s83
      %s101 = sphi 0, %s101
      %s103 = sphi 0, %s101
      %s104 = sphi 0, %s103
      %s118 = sphi 0, %s104
      %s122 = sphi 0, %s122
      %s124 = sphi 0, %s122
      %s125 = sphi 0, %s124
      %s139 = sphi 0, %s125
      %s143 = sphi 0, %s143
      %s145 = sphi 0, %s143
      %s146 = sphi 0, %s145
      %s160 = sphi 0, %s146
      %s164 = sphi 0, %s164
      %s166 = sphi 0, %s164
      %s167 = sphi 0, %s166
      %s181 = sphi 0, %s167
      %s185 = sphi 0, %s185
      %s187 = sphi 0, %s185
      %s188 = sphi 0, %s187
      %s202 = sphi 0, %s188
      %s208 = sphi 0, %s210
      %s211 = sphi 0, %s208
      %s212 = sphi 0, %s211
      %s228 = sphi 0, %s212
    $region4: #{tpu_custom_call.1} parent=1 // loop_header_branch
      %23 = sbr.rel (%p21) target = $region8
    $region5: #{tpu_custom_call.1} parent=1 // loop_body
      %s25 = ssub.s32 %s20, 1
      %s26 = ssub.s32 %s20, 2
      %s27 = sadd.s32 %s20, 1
      %s28 = ssub.s32 %s20, %s27
      %p29 = scmp.eq.s32.totalorder %s28, 0
      %s31 = sadd.s32 %s30, 1
      %s32 = scalar_select %p29, %s30, %s31
      %p35 = pneg %p29
      %p36 = scmp.eq.s32.totalorder %s20, 1
      %p37 = por %p35, %p36
      %p38 = scmp.ne.s32.totalorder %s30, %s33
      %p39 = scmp.eq.s32.totalorder %s20, 0
      %p40 = por %p38, %p39
      %p41 = scmp.ne.s32.totalorder %s30, %s33
      %p42 = scmp.eq.s32.totalorder %s25, 1
      %p43 = por %p41, %p42
      %p44 = scmp.ne.s32.totalorder %s33, %s34
      %p45 = scmp.eq.s32.totalorder %s25, 0
      %p46 = por %p44, %p45
      %p47 = scmp.ne.s32.totalorder %s33, %s34
      %p48 = scmp.eq.s32.totalorder %s26, 1
      %p49 = por %p47, %p48
      %p51 = scmp.ne.s32.totalorder %s34, %s50
      %p52 = scmp.eq.s32.totalorder %s26, 0
      %p53 = por %p51, %p52
      %s54 = ssub.s32 %s20, %s27
      %p55 = scmp.eq.s32.totalorder %s54, 0
      %s57 = sadd.s32 %s56, 1
      %s58 = scalar_select %p55, %s56, %s57
      %p61 = pneg %p55
      %p62 = scmp.eq.s32.totalorder %s20, 1
      %p63 = por %p61, %p62
      %p64 = scmp.ne.s32.totalorder %s56, %s59
      %p65 = scmp.eq.s32.totalorder %s20, 0
      %p66 = por %p64, %p65
      %p67 = scmp.ne.s32.totalorder %s56, %s59
      %p68 = scmp.eq.s32.totalorder %s25, 1
      %p69 = por %p67, %p68
      %p70 = scmp.ne.s32.totalorder %s59, %s60
      %p71 = scmp.eq.s32.totalorder %s25, 0
      %p72 = por %p70, %p71
      %p73 = scmp.ne.s32.totalorder %s59, %s60
      %p74 = scmp.eq.s32.totalorder %s26, 1
      %p75 = por %p73, %p74
      %p77 = scmp.ne.s32.totalorder %s60, %s76
      %p78 = scmp.eq.s32.totalorder %s26, 0
      %p79 = por %p77, %p78
      %s81 = sadd.s32 %s80, 1
      %p84 = scmp.eq.s32.totalorder %s20, 1
      %p85 = scmp.ne.s32.totalorder %s80, %s82
      %p86 = scmp.eq.s32.totalorder %s20, 0
      %p87 = por %p85, %p86
      %p88 = scmp.ne.s32.totalorder %s80, %s82
      %p89 = scmp.eq.s32.totalorder %s25, 1
      %p90 = por %p88, %p89
      %p91 = scmp.ne.s32.totalorder %s82, %s83
      %p92 = scmp.eq.s32.totalorder %s25, 0
      %p93 = por %p91, %p92
      %p94 = scmp.ne.s32.totalorder %s82, %s83
      %p95 = scmp.eq.s32.totalorder %s26, 1
      %p96 = por %p94, %p95
      %p98 = scmp.ne.s32.totalorder %s83, %s97
      %p99 = scmp.eq.s32.totalorder %s26, 0
      %p100 = por %p98, %p99
      %s102 = sadd.s32 %s101, 1
      %p105 = scmp.eq.s32.totalorder %s20, 1
      %p106 = scmp.ne.s32.totalorder %s101, %s103
      %p107 = scmp.eq.s32.totalorder %s20, 0
      %p108 = por %p106, %p107
      %p109 = scmp.ne.s32.totalorder %s101, %s103
      %p110 = scmp.eq.s32.totalorder %s25, 1
      %p111 = por %p109, %p110
      %p112 = scmp.ne.s32.totalorder %s103, %s104
      %p113 = scmp.eq.s32.totalorder %s25, 0
      %p114 = por %p112, %p113
      %p115 = scmp.ne.s32.totalorder %s103, %s104
      %p116 = scmp.eq.s32.totalorder %s26, 1
      %p117 = por %p115, %p116
      %p119 = scmp.ne.s32.totalorder %s104, %s118
      %p120 = scmp.eq.s32.totalorder %s26, 0
      %p121 = por %p119, %p120
      %s123 = sadd.s32 %s122, 1
      %p126 = scmp.eq.s32.totalorder %s20, 1
      %p127 = scmp.ne.s32.totalorder %s122, %s124
      %p128 = scmp.eq.s32.totalorder %s20, 0
      %p129 = por %p127, %p128
      %p130 = scmp.ne.s32.totalorder %s122, %s124
      %p131 = scmp.eq.s32.totalorder %s25, 1
      %p132 = por %p130, %p131
      %p133 = scmp.ne.s32.totalorder %s124, %s125
      %p134 = scmp.eq.s32.totalorder %s25, 0
      %p135 = por %p133, %p134
      %p136 = scmp.ne.s32.totalorder %s124, %s125
      %p137 = scmp.eq.s32.totalorder %s26, 1
      %p138 = por %p136, %p137
      %p140 = scmp.ne.s32.totalorder %s125, %s139
      %p141 = scmp.eq.s32.totalorder %s26, 0
      %p142 = por %p140, %p141
      %s144 = sadd.s32 %s143, 1
      %p147 = scmp.eq.s32.totalorder %s20, 1
      %p148 = scmp.ne.s32.totalorder %s143, %s145
      %p149 = scmp.eq.s32.totalorder %s20, 0
      %p150 = por %p148, %p149
      %p151 = scmp.ne.s32.totalorder %s143, %s145
      %p152 = scmp.eq.s32.totalorder %s25, 1
      %p153 = por %p151, %p152
      %p154 = scmp.ne.s32.totalorder %s145, %s146
      %p155 = scmp.eq.s32.totalorder %s25, 0
      %p156 = por %p154, %p155
      %p157 = scmp.ne.s32.totalorder %s145, %s146
      %p158 = scmp.eq.s32.totalorder %s26, 1
      %p159 = por %p157, %p158
      %p161 = scmp.ne.s32.totalorder %s146, %s160
      %p162 = scmp.eq.s32.totalorder %s26, 0
      %p163 = por %p161, %p162
      %s165 = sadd.s32 %s164, 1
      %p168 = scmp.eq.s32.totalorder %s20, 1
      %p169 = scmp.ne.s32.totalorder %s164, %s166
      %p170 = scmp.eq.s32.totalorder %s20, 0
      %p171 = por %p169, %p170
      %p172 = scmp.ne.s32.totalorder %s164, %s166
      %p173 = scmp.eq.s32.totalorder %s25, 1
      %p174 = por %p172, %p173
      %p175 = scmp.ne.s32.totalorder %s166, %s167
      %p176 = scmp.eq.s32.totalorder %s25, 0
      %p177 = por %p175, %p176
      %p178 = scmp.ne.s32.totalorder %s166, %s167
      %p179 = scmp.eq.s32.totalorder %s26, 1
      %p180 = por %p178, %p179
      %p182 = scmp.ne.s32.totalorder %s167, %s181
      %p183 = scmp.eq.s32.totalorder %s26, 0
      %p184 = por %p182, %p183
      %s186 = sadd.s32 %s185, 1
      %p189 = scmp.eq.s32.totalorder %s20, 1
      %p190 = scmp.ne.s32.totalorder %s185, %s187
      %p191 = scmp.eq.s32.totalorder %s20, 0
      %p192 = por %p190, %p191
      %p193 = scmp.ne.s32.totalorder %s185, %s187
      %p194 = scmp.eq.s32.totalorder %s25, 1
      %p195 = por %p193, %p194
      %p196 = scmp.ne.s32.totalorder %s187, %s188
      %p197 = scmp.eq.s32.totalorder %s25, 0
      %p198 = por %p196, %p197
      %p199 = scmp.ne.s32.totalorder %s187, %s188
      %p200 = scmp.eq.s32.totalorder %s26, 1
      %p201 = por %p199, %p200
      %p203 = scmp.ne.s32.totalorder %s188, %s202
      %p204 = scmp.eq.s32.totalorder %s26, 0
      %p205 = por %p203, %p204
      %s206 = ssub.s32 %s20, %s27
      %p207 = scmp.eq.s32.totalorder %s206, 0
      %s209 = sadd.s32 %s208, 1
      %s210 = scalar_select %p207, %s208, %s209
      %p213 = pneg %p207
      %p214 = scmp.eq.s32.totalorder %s20, 1
      %p215 = por %p213, %p214
      %p216 = scmp.ne.s32.totalorder %s208, %s211
      %p217 = scmp.eq.s32.totalorder %s20, 0
      %p218 = por %p216, %p217
      %p219 = scmp.ne.s32.totalorder %s208, %s211
      %p220 = scmp.eq.s32.totalorder %s25, 1
      %p221 = por %p219, %p220
      %p222 = scmp.ne.s32.totalorder %s211, %s212
      %p223 = scmp.eq.s32.totalorder %s25, 0
      %p224 = por %p222, %p223
      %p225 = scmp.ne.s32.totalorder %s211, %s212
      %p226 = scmp.eq.s32.totalorder %s26, 1
      %p227 = por %p225, %p226
      %p229 = scmp.ne.s32.totalorder %s212, %s228
      %p230 = scmp.eq.s32.totalorder %s26, 0
      %p231 = por %p229, %p230
      %p232 = scmp.le.s32.totalorder 1, %s20
      %p233 = scmp.lt.s32.totalorder %s20, 3
      %p234 = pnand %p232, %p233
      %p235 = pneg %p234
      // Predicated region
      $region9: #{tpu_custom_call.1} parent=5 // pred_check
        _
      $region10: #{tpu_custom_call.1} parent=5 // pred_check_branch
        %237 = sbr.rel (%p234) target = $region12
      $region11: #{tpu_custom_call.1} parent=5 // pred_region
        %s238 = ssub.s32 %s20, 1
        // Predicated region
        $region13: #{tpu_custom_call.1} parent=11 // pred_check
          %p239 = pneg %p93
        $region14: #{tpu_custom_call.1} parent=11 // pred_check_branch
          %241 = sbr.rel (%p239) target = $region16
        $region15: #{tpu_custom_call.1} parent=11 // pred_region
          %s243 = ssub.s32 4096, 4096
          %244 = vsyncadd [#allocation6], %s243
          %s245 = sshll.u32 [#allocation5], 4
          %s246 = int_to_ptr.vmem [resolvable:$true] %s245
          %251 = dma.hbm_to_vmem [thread:$0]  %s2, 4096, %s246, [#allocation6], 256, 256, 16
        $region16: #{tpu_custom_call.1} parent=11 // pred_fallthru
          _
        // Predicated region
        $region17: #{tpu_custom_call.1} parent=11 // pred_check
          %p252 = pneg %p114
        $region18: #{tpu_custom_call.1} parent=11 // pred_check_branch
          %254 = sbr.rel (%p252) target = $region20
        $region19: #{tpu_custom_call.1} parent=11 // pred_region
          _
        $region20: #{tpu_custom_call.1} parent=11 // pred_fallthru
          _
        // Predicated region
        $region21: #{tpu_custom_call.1} parent=11 // pred_check
          %p255 = pneg %p135
        $region22: #{tpu_custom_call.1} parent=11 // pred_check_branch
          %257 = sbr.rel (%p255) target = $region24
        $region23: #{tpu_custom_call.1} parent=11 // pred_region
          %s259 = ssub.s32 6912, 6912
          %260 = vsyncadd [#allocation9], %s259
          %s261 = sshll.u32 [#allocation8], 4
          %s262 = int_to_ptr.vmem [resolvable:$true] %s261
          %267 = dma.hbm_to_vmem [thread:$0]  %s4, 6912, %s262, [#allocation9], 128, 128, 8
        $region24: #{tpu_custom_call.1} parent=11 // pred_fallthru
          _
        // Predicated region
        $region25: #{tpu_custom_call.1} parent=11 // pred_check
          %p268 = pneg %p156
        $region26: #{tpu_custom_call.1} parent=11 // pred_check_branch
          %270 = sbr.rel (%p268) target = $region28
        $region27: #{tpu_custom_call.1} parent=11 // pred_region
          %s272 = ssub.s32 6912, 6912
          %273 = vsyncadd [#allocation9], %s272
          %s274 = sshll.u32 [#allocation10], 4
          %s275 = int_to_ptr.vmem [resolvable:$true] %s274
          %280 = dma.hbm_to_vmem [thread:$0]  %s5, 6912, %s275, [#allocation9], 128, 128, 8
        $region28: #{tpu_custom_call.1} parent=11 // pred_fallthru
          _
        // Predicated region
        $region29: #{tpu_custom_call.1} parent=11 // pred_check
          %p281 = pneg %p177
        $region30: #{tpu_custom_call.1} parent=11 // pred_check_branch
          %283 = sbr.rel (%p281) target = $region32
        $region31: #{tpu_custom_call.1} parent=11 // pred_region
          %s285 = ssub.s32 20736, 20736
          %286 = vsyncadd [#allocation12], %s285
          %s287 = sshll.u32 [#allocation11], 4
          %s288 = int_to_ptr.vmem [resolvable:$true] %s287
          %293 = dma.hbm_to_vmem [thread:$0]  %s6, 20736, %s288, [#allocation12], 128, 128, 8
        $region32: #{tpu_custom_call.1} parent=11 // pred_fallthru
          _
        // Predicated region
        $region33: #{tpu_custom_call.1} parent=11 // pred_check
          %p294 = pneg %p198
        $region34: #{tpu_custom_call.1} parent=11 // pred_check_branch
          %296 = sbr.rel (%p294) target = $region36
        $region35: #{tpu_custom_call.1} parent=11 // pred_region
          _
        $region36: #{tpu_custom_call.1} parent=11 // pred_fallthru
          _
      $region12: #{tpu_custom_call.1} parent=5 // pred_fallthru
        _
      %p297 = scmp.lt.s32.totalorder %s20, 2
      // Predicated region
      $region37: #{tpu_custom_call.1} parent=5 // pred_check
        %p298 = pneg %p297
      $region38: #{tpu_custom_call.1} parent=5 // pred_check_branch
        %300 = sbr.rel (%p298) target = $region40
      $region39: #{tpu_custom_call.1} parent=5 // pred_region
        // Predicated region
        $region41: #{tpu_custom_call.1} parent=39 // pred_check
          %p301 = pneg %p40
        $region42: #{tpu_custom_call.1} parent=39 // pred_check_branch
          %303 = sbr.rel (%p301) target = $region44
        $region43: #{tpu_custom_call.1} parent=39 // pred_region
          %p304 = scmp.lt.s32.totalorder %s20, 1
          %s305 = scalar_select %p304, %s20, 1
          %s306 = smul.addr %s305, 8
          %s307 = scalar_lea.vmem %s0, %s306
        $region44: #{tpu_custom_call.1} parent=39 // pred_fallthru
          _
        // Predicated region
        $region45: #{tpu_custom_call.1} parent=39 // pred_check
          %p308 = pneg %p66
        $region46: #{tpu_custom_call.1} parent=39 // pred_check_branch
          %310 = sbr.rel (%p308) target = $region48
        $region47: #{tpu_custom_call.1} parent=39 // pred_region
          %p311 = scmp.lt.s32.totalorder %s20, 1
          %s312 = scalar_select %p311, %s20, 1
          %s313 = smul.addr %s312, 6
          %s314 = smul.addr %s313, 8
          %s315 = scalar_lea.vmem %s1, %s314
        $region48: #{tpu_custom_call.1} parent=39 // pred_fallthru
          _
      $region40: #{tpu_custom_call.1} parent=5 // pred_fallthru
        _
      %p316 = scmp.le.s32.totalorder 1, %s20
      %p317 = scmp.lt.s32.totalorder %s20, 3
      %p318 = pnand %p316, %p317
      %p319 = pneg %p318
      // Predicated region
      $region49: #{tpu_custom_call.1} parent=5 // pred_check
        _
      $region50: #{tpu_custom_call.1} parent=5 // pred_check_branch
        %321 = sbr.rel (%p318) target = $region52
      $region51: #{tpu_custom_call.1} parent=5 // pred_region
        %s322 = ssub.s32 %s20, 1
        // Predicated region
        $region53: #{tpu_custom_call.1} parent=51 // pred_check
          %p323 = pneg %p93
        $region54: #{tpu_custom_call.1} parent=51 // pred_check_branch
          %325 = sbr.rel (%p323) target = $region56
        $region55: #{tpu_custom_call.1} parent=51 // pred_region
          %326 = dma.done [#allocation6], 4096
        $region56: #{tpu_custom_call.1} parent=51 // pred_fallthru
          _
        // Predicated region
        $region57: #{tpu_custom_call.1} parent=51 // pred_check
          %p327 = pneg %p135
        $region58: #{tpu_custom_call.1} parent=51 // pred_check_branch
          %329 = sbr.rel (%p327) target = $region60
        $region59: #{tpu_custom_call.1} parent=51 // pred_region
          %330 = dma.done [#allocation9], 6912
        $region60: #{tpu_custom_call.1} parent=51 // pred_fallthru
          _
        // Predicated region
        $region61: #{tpu_custom_call.1} parent=51 // pred_check
          %p331 = pneg %p156
        $region62: #{tpu_custom_call.1} parent=51 // pred_check_branch
          %333 = sbr.rel (%p331) target = $region64
        $region63: #{tpu_custom_call.1} parent=51 // pred_region
          %334 = dma.done [#allocation9], 6912
        $region64: #{tpu_custom_call.1} parent=51 // pred_fallthru
          _
        // Predicated region
        $region65: #{tpu_custom_call.1} parent=51 // pred_check
          %p335 = pneg %p177
        $region66: #{tpu_custom_call.1} parent=51 // pred_check_branch
          %337 = sbr.rel (%p335) target = $region68
        $region67: #{tpu_custom_call.1} parent=51 // pred_region
          %338 = dma.done [#allocation12], 20736
        $region68: #{tpu_custom_call.1} parent=51 // pred_fallthru
          _
        %p339 = scmp.lt.s32.totalorder %s25, 1
        %s340 = scalar_select %p339, %s25, 1
        %s341 = smul.addr %s340, 8
        %s342 = scalar_lea.vmem %s0, %s341
        %p343 = pneg %p46
        %p344 = pneg %p43
        %p345 = scmp.lt.s32.totalorder %s25, 1
        %s346 = scalar_select %p345, %s25, 1
        %s347 = smul.addr %s346, 6
        %s348 = smul.addr %s347, 8
        %s349 = scalar_lea.vmem %s1, %s348
        %p350 = pneg %p72
        %p351 = pneg %p69
        %p352 = pneg %p93
        %p353 = pneg %p90
        %p354 = pneg %p114
        %p355 = pneg %p111
        %p356 = pneg %p135
        %p357 = pneg %p132
        %p358 = pneg %p156
        %p359 = pneg %p153
        %p360 = pneg %p177
        %p361 = pneg %p174
        %p362 = pneg %p198
        %p363 = pneg %p195
        %p364 = pneg %p224
        %p365 = pneg %p221
        %s366 = sand.u32 %s211, 1
        %s367 = scalar_lea.sflag [#allocation7], %s366
        %s368 = sand.u32 %s211, 1
        %s369 = smul.addr %s368, 16
        %s370 = scalar_lea.vmem [#allocation13], %s369
        %p371 = scmp.lt.s32.totalorder %s25, 1
        %s372 = scalar_select %p371, %s25, 1
        %s373 = smul.addr %s372, 8
        %s374 = scalar_lea.vmem %s0, %s373
        %p375 = scmp.lt.s32.totalorder %s25, 1
        %s376 = scalar_select %p375, %s25, 1
        %s377 = smul.addr %s376, 6
        %s378 = smul.addr %s377, 8
        %s379 = scalar_lea.vmem %s1, %s378
        %v380 = vlaneseq
        %vm381 = vcmp.ge.s32.totalorder %v380, 0
        %vm382 = vcmp.lt.s32.totalorder %v380, 144
        %vm383 = vmand %vm381, %vm382
        %384 = vst.msk [vmem:[#allocation2] ss:$8 sm:$0x3] %vm383, 0.0
        %385 = vst.msk [vmem:[#allocation2] ss:$8 sm:$0x0] %vm383, 0.0
        %s386 = scalar_lea.vmem [#allocation2], 33
        %387 = vst.msk [vmem:[%s386] ss:$8 sm:$0x3] %vm383, 0.0
        %388 = vst.msk [vmem:[%s386] ss:$8 sm:$0x0] %vm383, 0.0
        %vm389 = vcmask 64512
        %390 = vst.msk [vmem:[#allocation2] sm:$0xff] %vm389, 0.0
        %391 = vst.msk [vmem:[#allocation2 + $0x10] sm:$0xff] %vm389, 0.0
        %vm392 = vcmask 58368
        %393 = vst.msk [vmem:[#allocation2 + $0x20] sm:$0x3] %vm392, 0.0
        %vm394 = vcmask 130112
        %395 = vst.msk [vmem:[#allocation2 + $0x8] sm:$0xff] %vm394, 0.0
        %396 = vst.msk [vmem:[#allocation2 + $0x18] sm:$0xff] %vm394, 0.0
        %vm397 = vcmask 123968
        %398 = vst.msk [vmem:[#allocation2 + $0x28] sm:$0x3] %vm397, 0.0
        %399 = vst.msk [vmem:[#allocation3] ss:$8 sm:$0x3] %vm383, 0.0
        %400 = vst.msk [vmem:[#allocation3] ss:$8 sm:$0x0] %vm383, 0.0
        %s401 = scalar_lea.vmem [#allocation3], 33
        %402 = vst.msk [vmem:[%s401] ss:$8 sm:$0x3] %vm383, 0.0
        %403 = vst.msk [vmem:[%s401] ss:$8 sm:$0x0] %vm383, 0.0
        %404 = vst.msk [vmem:[#allocation3] sm:$0xff] %vm389, 0.0
        %405 = vst.msk [vmem:[#allocation3 + $0x10] sm:$0xff] %vm389, 0.0
        %406 = vst.msk [vmem:[#allocation3 + $0x20] sm:$0x3] %vm392, 0.0
        %407 = vst.msk [vmem:[#allocation3 + $0x8] sm:$0xff] %vm394, 0.0
        %408 = vst.msk [vmem:[#allocation3 + $0x18] sm:$0xff] %vm394, 0.0
        %409 = vst.msk [vmem:[#allocation3 + $0x28] sm:$0x3] %vm397, 0.0
        %410 = vst.msk [vmem:[#allocation4] ss:$8 sm:$0x3] %vm383, 0.0
        %411 = vst.msk [vmem:[#allocation4] ss:$8 sm:$0x0] %vm383, 0.0
        %s412 = scalar_lea.vmem [#allocation4], 33
        %413 = vst.msk [vmem:[%s412] ss:$8 sm:$0x3] %vm383, 0.0
        %414 = vst.msk [vmem:[%s412] ss:$8 sm:$0x0] %vm383, 0.0
        %415 = vst.msk [vmem:[#allocation4] sm:$0xff] %vm389, 0.0
        %416 = vst.msk [vmem:[#allocation4 + $0x10] sm:$0xff] %vm389, 0.0
        %417 = vst.msk [vmem:[#allocation4 + $0x20] sm:$0x3] %vm392, 0.0
        %418 = vst.msk [vmem:[#allocation4 + $0x8] sm:$0xff] %vm394, 0.0
        %419 = vst.msk [vmem:[#allocation4 + $0x18] sm:$0xff] %vm394, 0.0
        %420 = vst.msk [vmem:[#allocation4 + $0x28] sm:$0x3] %vm397, 0.0
        %v421 = vld [vmem:[%s374] sm:$0xff]
        %v422 = vld [vmem:[#allocation5] sm:$0xff]
        %v423 = vld [vmem:[#allocation5 + $0x8] sm:$0xff]
        %v424 = vld [vmem:[#allocation5 + $0x10] sm:$0xff]
        %v425 = vld [vmem:[#allocation5 + $0x18] sm:$0xff]
        %v426 = vld [vmem:[#allocation5 + $0x20] sm:$0xff]
        %v427 = vld [vmem:[#allocation5 + $0x28] sm:$0xff]
        %v428 = vld [vmem:[#allocation5 + $0x30] sm:$0xff]
        %v429 = vld [vmem:[#allocation5 + $0x38] sm:$0xff]
        %v430 = vld [vmem:[#allocation5 + $0x40] sm:$0xff]
        %v431 = vld [vmem:[#allocation5 + $0x48] sm:$0xff]
        %v432 = vld [vmem:[#allocation5 + $0x50] sm:$0xff]
        %v433 = vld [vmem:[#allocation5 + $0x58] sm:$0xff]
        %v434 = vld [vmem:[#allocation5 + $0x60] sm:$0xff]
        %v435 = vld [vmem:[#allocation5 + $0x68] sm:$0xff]
        %v436 = vld [vmem:[#allocation5 + $0x70] sm:$0xff]
        %v437 = vld [vmem:[#allocation5 + $0x78] sm:$0xff]
        %v438 = vld [vmem:[#allocation5 + $0x80] sm:$0xff]
        %v439 = vld [vmem:[#allocation5 + $0x88] sm:$0xff]
        %v440 = vld [vmem:[#allocation5 + $0x90] sm:$0xff]
        %v441 = vld [vmem:[#allocation5 + $0x98] sm:$0xff]
        %v442 = vld [vmem:[#allocation5 + $0xa0] sm:$0xff]
        %v443 = vld [vmem:[#allocation5 + $0xa8] sm:$0xff]
        %v444 = vld [vmem:[#allocation5 + $0xb0] sm:$0xff]
        %v445 = vld [vmem:[#allocation5 + $0xb8] sm:$0xff]
        %v446 = vld [vmem:[#allocation5 + $0xc0] sm:$0xff]
        %v447 = vld [vmem:[#allocation5 + $0xc8] sm:$0xff]
        %v448 = vld [vmem:[#allocation5 + $0xd0] sm:$0xff]
        %v449 = vld [vmem:[#allocation5 + $0xd8] sm:$0xff]
        %v450 = vld [vmem:[#allocation5 + $0xe0] sm:$0xff]
        %v451 = vld [vmem:[#allocation5 + $0xe8] sm:$0xff]
        %v452 = vld [vmem:[#allocation5 + $0xf0] sm:$0xff]
        %v453 = vld [vmem:[#allocation5 + $0xf8] sm:$0xff]
        %v454 = vld [vmem:[%s3] sm:$0x3]
        %v456 = vlaneseq
        %v457 = vshrl.u32 %v456, 7
        %v458 = vsub.s32 0, %v457
        %v459 = vrot.slane %v454, %v458
        %v460 = vlaneseq
        %v461 = vshrl.u32 %v460, 7
        %v462 = vsub.s32 1, %v461
        %v463 = vrot.slane %v454, %v462
        %466 = vmatprep.subr.mxu0 %v423
        %467 = vmatpush1.msra.mxu0 %v422
        %468 = vmatprep.subr.mxu0 %v425
        %469 = vmatpush1.msra.mxu0 %v424
        %470 = vmatprep.subr.mxu0 %v427
        %471 = vmatpush1.msra.mxu0 %v426
        %472 = vmatprep.subr.mxu0 %v429
        %473 = vmatpush1.msra.mxu0 %v428
        %474 = vmatprep.subr.mxu0 %v431
        %475 = vmatpush1.msra.mxu0 %v430
        %476 = vmatprep.subr.mxu0 %v433
        %477 = vmatpush1.msra.mxu0 %v432
        %478 = vmatprep.subr.mxu0 %v435
        %479 = vmatpush1.msra.mxu0 %v434
        %480 = vmatprep.subr.mxu0 %v437
        %481 = vmatpush1.msra.mxu0 %v436
        %482 = vmatprep.subr.mxu0 %v439
        %483 = vmatpush1.msra.mxu0 %v438
        %484 = vmatprep.subr.mxu0 %v441
        %485 = vmatpush1.msra.mxu0 %v440
        %486 = vmatprep.subr.mxu0 %v443
        %487 = vmatpush1.msra.mxu0 %v442
        %488 = vmatprep.subr.mxu0 %v445
        %489 = vmatpush1.msra.mxu0 %v444
        %490 = vmatprep.subr.mxu0 %v447
        %491 = vmatpush1.msra.mxu0 %v446
        %492 = vmatprep.subr.mxu0 %v449
        %493 = vmatpush1.msra.mxu0 %v448
        %494 = vmatprep.subr.mxu0 %v451
        %495 = vmatpush1.msra.mxu0 %v450
        %496 = vmatprep.subr.mxu0 %v453
        %497 = vmatpush1.msra.mxu0 %v452
        %498 = vmatprep.subr.mxu0 0.0
        %499 = vmatpush1.msra.mxu0 0.0
        %500 = vmatprep.subr.mxu0 0.0
        %501 = vmatpush1.msra.mxu0 0.0
        %502 = vmatprep.subr.mxu0 0.0
        %503 = vmatpush1.msra.mxu0 0.0
        %504 = vmatprep.subr.mxu0 0.0
        %505 = vmatpush1.msra.mxu0 0.0
        %506 = vmatprep.subr.mxu0 0.0
        %507 = vmatpush1.msra.mxu0 0.0
        %508 = vmatprep.subr.mxu0 0.0
        %509 = vmatpush1.msra.mxu0 0.0
        %510 = vmatprep.subr.mxu0 0.0
        %511 = vmatpush1.msra.mxu0 0.0
        %512 = vmatprep.subr.mxu0 0.0
        %513 = vmatpush1.msra.mxu0 0.0
        %514 = vmatprep.subr.mxu0 0.0
        %515 = vmatpush1.msra.mxu0 0.0
        %516 = vmatprep.subr.mxu0 0.0
        %517 = vmatpush1.msra.mxu0 0.0
        %518 = vmatprep.subr.mxu0 0.0
        %519 = vmatpush1.msra.mxu0 0.0
        %520 = vmatprep.subr.mxu0 0.0
        %521 = vmatpush1.msra.mxu0 0.0
        %522 = vmatprep.subr.mxu0 0.0
        %523 = vmatpush1.msra.mxu0 0.0
        %524 = vmatprep.subr.mxu0 0.0
        %525 = vmatpush1.msra.mxu0 0.0
        %526 = vmatprep.subr.mxu0 0.0
        %527 = vmatpush1.msra.mxu0 0.0
        %528 = vmatprep.subr.mxu0 0.0
        %529 = vmatpush1.msra.mxu0 0.0
        %530 = vmatprep.mubr.f32.mxu0 0.0
        %531 = vmatmul.mubr.f32.gmra.mrb[0].mxu0 %v421
        %v532 = vpop.f32.mrb[0].mxu0
        %v533 = vadd.f32 %v459, %v532
        %v534 = vpop.f32.mrb[0].mxu0
        %v535 = vadd.f32 %v463, %v534
        %536 = vdwg.mxu0
        %v538 = vcombine.high %v533, %v533
        %v540 = vunpack.c.l.s4 1966171168
        %v541 = vunpack.c.0.s8 %v540
        %v542 = vlaneseq
        %v543 = vshrl.u32 %v542, 7
        %v544 = vsub.s32 %v541, %v543
        %v545 = vrot.slane %v533, %v544
        %v547 = vunpack.c.l.s4 1966171168
        %v548 = vunpack.c.0.s8 %v547
        %v549 = vlaneseq
        %v550 = vshrl.u32 %v549, 7
        %v551 = vsub.s32 %v548, %v550
        %v552 = vrot.slane %v538, %v551
        %v553 = vcombine.high %v545, %v545
        %v554 = vcombine.high %v552, %v552
        %v556 = vunpack.c.l.s4 1966171168
        %v557 = vunpack.c.0.s8 %v556
        %v558 = vlaneseq
        %v559 = vshrl.u32 %v558, 7
        %v560 = vsub.s32 %v557, %v559
        %v561 = vrot.slane %v545, %v560
        %v563 = vunpack.c.l.s4 1966171168
        %v564 = vunpack.c.0.s8 %v563
        %v565 = vlaneseq
        %v566 = vshrl.u32 %v565, 7
        %v567 = vsub.s32 %v564, %v566
        %v568 = vrot.slane %v552, %v567
        %v570 = vunpack.c.l.s4 1966171168
        %v571 = vunpack.c.0.s8 %v570
        %v572 = vlaneseq
        %v573 = vshrl.u32 %v572, 7
        %v574 = vsub.s32 %v571, %v573
        %v575 = vrot.slane %v553, %v574
        %v577 = vunpack.c.l.s4 1966171168
        %v578 = vunpack.c.0.s8 %v577
        %v579 = vlaneseq
        %v580 = vshrl.u32 %v579, 7
        %v581 = vsub.s32 %v578, %v580
        %v582 = vrot.slane %v554, %v581
        %v583 = vcombine.high %v561, %v561
        %v584 = vcombine.high %v568, %v568
        %v585 = vcombine.high %v575, %v575
        %v586 = vcombine.high %v582, %v582
        %v587 = vlaneseq
        %v588 = vshrl.u32 %v587, 7
        %v589 = vsub.s32 0, %v588
        %v590 = vrot.slane %v561, %v589
        %v591 = vlaneseq
        %v592 = vshrl.u32 %v591, 7
        %v593 = vsub.s32 0, %v592
        %v594 = vrot.slane %v575, %v593
        %v595 = vlaneseq
        %v596 = vshrl.u32 %v595, 7
        %v597 = vsub.s32 0, %v596
        %v598 = vrot.slane %v583, %v597
        %v599 = vlaneseq
        %v600 = vshrl.u32 %v599, 7
        %v601 = vsub.s32 0, %v600
        %v602 = vrot.slane %v585, %v601
        %v603 = vlaneseq
        %v604 = vshrl.u32 %v603, 7
        %v605 = vsub.s32 0, %v604
        %v606 = vrot.slane %v568, %v605
        %v607 = vlaneseq
        %v608 = vshrl.u32 %v607, 7
        %v609 = vsub.s32 0, %v608
        %v610 = vrot.slane %v582, %v609
        %v611 = vlaneseq
        %v612 = vshrl.u32 %v611, 7
        %v613 = vsub.s32 0, %v612
        %v614 = vrot.slane %v584, %v613
        %v615 = vlaneseq
        %v616 = vshrl.u32 %v615, 7
        %v617 = vsub.s32 0, %v616
        %v618 = vrot.slane %v586, %v617
        %v620 = vcombine.high %v535, %v535
        %v622 = vunpack.c.l.s4 1966171168
        %v623 = vunpack.c.0.s8 %v622
        %v624 = vlaneseq
        %v625 = vshrl.u32 %v624, 7
        %v626 = vsub.s32 %v623, %v625
        %v627 = vrot.slane %v535, %v626
        %v629 = vunpack.c.l.s4 1966171168
        %v630 = vunpack.c.0.s8 %v629
        %v631 = vlaneseq
        %v632 = vshrl.u32 %v631, 7
        %v633 = vsub.s32 %v630, %v632
        %v634 = vrot.slane %v620, %v633
        %v635 = vcombine.high %v627, %v627
        %v636 = vcombine.high %v634, %v634
        %v638 = vunpack.c.l.s4 1966171168
        %v639 = vunpack.c.0.s8 %v638
        %v640 = vlaneseq
        %v641 = vshrl.u32 %v640, 7
        %v642 = vsub.s32 %v639, %v641
        %v643 = vrot.slane %v627, %v642
        %v645 = vunpack.c.l.s4 1966171168
        %v646 = vunpack.c.0.s8 %v645
        %v647 = vlaneseq
        %v648 = vshrl.u32 %v647, 7
        %v649 = vsub.s32 %v646, %v648
        %v650 = vrot.slane %v634, %v649
        %v652 = vunpack.c.l.s4 1966171168
        %v653 = vunpack.c.0.s8 %v652
        %v654 = vlaneseq
        %v655 = vshrl.u32 %v654, 7
        %v656 = vsub.s32 %v653, %v655
        %v657 = vrot.slane %v635, %v656
        %v659 = vunpack.c.l.s4 1966171168
        %v660 = vunpack.c.0.s8 %v659
        %v661 = vlaneseq
        %v662 = vshrl.u32 %v661, 7
        %v663 = vsub.s32 %v660, %v662
        %v664 = vrot.slane %v636, %v663
        %v665 = vcombine.high %v643, %v643
        %v666 = vcombine.high %v650, %v650
        %v667 = vcombine.high %v657, %v657
        %v668 = vcombine.high %v664, %v664
        %v669 = vlaneseq
        %v670 = vshrl.u32 %v669, 7
        %v671 = vsub.s32 0, %v670
        %v672 = vrot.slane %v643, %v671
        %v673 = vlaneseq
        %v674 = vshrl.u32 %v673, 7
        %v675 = vsub.s32 0, %v674
        %v676 = vrot.slane %v657, %v675
        %v677 = vlaneseq
        %v678 = vshrl.u32 %v677, 7
        %v679 = vsub.s32 0, %v678
        %v680 = vrot.slane %v665, %v679
        %v681 = vlaneseq
        %v682 = vshrl.u32 %v681, 7
        %v683 = vsub.s32 0, %v682
        %v684 = vrot.slane %v667, %v683
        %v685 = vlaneseq
        %v686 = vshrl.u32 %v685, 7
        %v687 = vsub.s32 0, %v686
        %v688 = vrot.slane %v650, %v687
        %v689 = vlaneseq
        %v690 = vshrl.u32 %v689, 7
        %v691 = vsub.s32 0, %v690
        %v692 = vrot.slane %v664, %v691
        %v693 = vlaneseq
        %v694 = vshrl.u32 %v693, 7
        %v695 = vsub.s32 0, %v694
        %v696 = vrot.slane %v666, %v695
        %v697 = vlaneseq
        %v698 = vshrl.u32 %v697, 7
        %v699 = vsub.s32 0, %v698
        %v700 = vrot.slane %v668, %v699
        %v701 = vlaneseq
        %v702 = vshrl.u32 %v701, 7
        %v703 = vadd.s32 %v702, 8
        %vm704 = vcmp.lt.s32.totalorder %v702, 0
        %v705 = vsub.s32 0, %v702
        %v706 = vsel %vm704, %v705, %v702
        %v707 = vshrl.u32 %v706, 1
        %v708 = vand.u32 %v706, 1
        %v709 = vsub.s32 0, %v708
        %v710 = vsel %vm704, %v709, %v708
        %vm711 = vcmp.lt.s32.totalorder %v703, 0
        %v712 = vsub.s32 0, %v703
        %v713 = vsel %vm711, %v712, %v703
        %v714 = vshrl.u32 %v713, 1
        %v715 = vand.u32 %v713, 1
        %v716 = vsub.s32 0, %v715
        %v717 = vsel %vm711, %v716, %v715
        %vm718 = vcmp.ne.s32.totalorder %v710, 0
        %vm719 = vcmp.ne.s32.totalorder %v717, 0
        %vm720 = vcmp.lt.s32.totalorder %v710, 0
        %vm721 = vcmp.lt.s32.totalorder %v717, 0
        %vm722 = vmand %vm720, %vm718
        %vm723 = vmand %vm721, %vm719
        %v724 = vadd.s32 %v710, 2
        %v725 = vadd.s32 %v717, 2
        %v726 = vsel %vm722, %v724, %v710
        %v727 = vsel %vm723, %v725, %v717
        %vm728 = vcmp.eq.s32.totalorder %v726, 0
        %vm729 = vcmp.eq.s32.totalorder %v727, 0
        %v730 = vsel %vm728, 1, 0
        %v731 = vsel %vm729, 1, 0
        %vm732 = vcmp.eq.s32.totalorder %v730, 1
        %vm733 = vcmp.eq.s32.totalorder %v731, 1
        %v734 = vcombine.low %v590, %v594
        %v735 = vcombine.low %v598, %v602
        %v737 = vunpack.c.l.s4 1983009808
        %v738 = vunpack.c.0.s8 %v737
        %v739 = vlaneseq
        %v740 = vshrl.u32 %v739, 7
        %v741 = vsub.s32 %v738, %v740
        %v742 = vrot.slane %v734, %v741
        %v744 = vunpack.c.l.s4 1983009808
        %v745 = vunpack.c.0.s8 %v744
        %v746 = vlaneseq
        %v747 = vshrl.u32 %v746, 7
        %v748 = vsub.s32 %v745, %v747
        %v749 = vrot.slane %v735, %v748
        %v750 = vcombine.low %v742, %v749
        %v751 = vcombine.low %v606, %v610
        %v752 = vcombine.low %v614, %v618
        %v754 = vunpack.c.l.s4 1983009808
        %v755 = vunpack.c.0.s8 %v754
        %v756 = vlaneseq
        %v757 = vshrl.u32 %v756, 7
        %v758 = vsub.s32 %v755, %v757
        %v759 = vrot.slane %v751, %v758
        %v761 = vunpack.c.l.s4 1983009808
        %v762 = vunpack.c.0.s8 %v761
        %v763 = vlaneseq
        %v764 = vshrl.u32 %v763, 7
        %v765 = vsub.s32 %v762, %v764
        %v766 = vrot.slane %v752, %v765
        %v767 = vcombine.low %v759, %v766
        %v770 = vcombine.low %v672, %v676
        %v771 = vcombine.low %v680, %v684
        %v773 = vunpack.c.l.s4 1983009808
        %v774 = vunpack.c.0.s8 %v773
        %v775 = vlaneseq
        %v776 = vshrl.u32 %v775, 7
        %v777 = vsub.s32 %v774, %v776
        %v778 = vrot.slane %v770, %v777
        %v780 = vunpack.c.l.s4 1983009808
        %v781 = vunpack.c.0.s8 %v780
        %v782 = vlaneseq
        %v783 = vshrl.u32 %v782, 7
        %v784 = vsub.s32 %v781, %v783
        %v785 = vrot.slane %v771, %v784
        %v786 = vcombine.low %v778, %v785
        %v787 = vcombine.low %v688, %v692
        %v788 = vcombine.low %v696, %v700
        %v790 = vunpack.c.l.s4 1983009808
        %v791 = vunpack.c.0.s8 %v790
        %v792 = vlaneseq
        %v793 = vshrl.u32 %v792, 7
        %v794 = vsub.s32 %v791, %v793
        %v795 = vrot.slane %v787, %v794
        %v797 = vunpack.c.l.s4 1983009808
        %v798 = vunpack.c.0.s8 %v797
        %v799 = vlaneseq
        %v800 = vshrl.u32 %v799, 7
        %v801 = vsub.s32 %v798, %v800
        %v802 = vrot.slane %v788, %v801
        %v803 = vcombine.low %v795, %v802
        %v806 = vsel %vm732, %v750, %v786
        %v807 = vsel %vm733, %v767, %v803
        %vm810 = vcmask 1040384
        %v811 = vrot.slane %v806, 7
        %v812 = vrot.slane %v807, 7
        %v813 = vsel %vm810, %v811, %v812
        %814 = vrot.lane.b32.xlu0 %v811, 8
        %v815 = vpop.permute.xlu0 %814
        %816 = vrot.lane.b32.xlu0 %v813, 8
        %v817 = vpop.permute.xlu0 %816
        %818 = vrot.lane.b32.xlu0 %v812, 8
        %v819 = vpop.permute.xlu0 %818
        %vm823 = vcmask 1047617
        %824 = vst.msk [vmem:[#allocation2] sm:$0xfe] %vm823, %v815
        %vm825 = vcmask 64513
        %826 = vst.msk [vmem:[#allocation2 + $0x8] sm:$0xfe] %vm825, %v815
        %vm827 = vcmask 1047616
        %828 = vst.msk [vmem:[#allocation2 + $0x10] sm:$0xff] %vm827, %v817
        %829 = vst.msk [vmem:[#allocation2 + $0x18] sm:$0xff] %vm389, %v817
        %vm830 = vcmask 1040448
        %831 = vst.msk [vmem:[#allocation2 + $0x20] sm:$0x1] %vm830, %v819
        %vm832 = vcmask 57344
        %833 = vst.msk [vmem:[#allocation2 + $0x28] sm:$0x1] %vm832, %v819
        %v834 = vld [vmem:[%s7] sm:$0x1]
        %v835 = vld [vmem:[%s379] sm:$0xff]
        %v836 = vld [vmem:[%s379 + $0x8] sm:$0xff]
        %v837 = vld [vmem:[%s379 + $0x10] sm:$0xff]
        %v838 = vld [vmem:[%s379 + $0x18] sm:$0xff]
        %v839 = vld [vmem:[#allocation8] sm:$0xff]
        %v840 = vld [vmem:[#allocation8 + $0x8] sm:$0xff]
        %v841 = vld [vmem:[#allocation8 + $0x10] sm:$0xff]
        %v842 = vld [vmem:[#allocation8 + $0x18] sm:$0xff]
        %v843 = vld [vmem:[#allocation8 + $0x20] sm:$0xff]
        %v844 = vld [vmem:[#allocation8 + $0x28] sm:$0xff]
        %v845 = vld [vmem:[#allocation8 + $0x30] sm:$0xff]
        %v846 = vld [vmem:[#allocation8 + $0x38] sm:$0xff]
        %v847 = vld [vmem:[#allocation8 + $0x40] sm:$0xff]
        %v848 = vld [vmem:[#allocation8 + $0x48] sm:$0xff]
        %v849 = vld [vmem:[#allocation8 + $0x50] sm:$0xff]
        %v850 = vld [vmem:[#allocation8 + $0x58] sm:$0xff]
        %v851 = vld [vmem:[#allocation8 + $0x60] sm:$0xff]
        %v852 = vld [vmem:[#allocation8 + $0x68] sm:$0xff]
        %v853 = vld [vmem:[#allocation8 + $0x70] sm:$0xff]
        %v854 = vld [vmem:[#allocation8 + $0x78] sm:$0xff]
        %v855 = vld [vmem:[#allocation8 + $0x80] sm:$0xff]
        %v856 = vld [vmem:[#allocation8 + $0x88] sm:$0xff]
        %v857 = vld [vmem:[%s379] sm:$0xfe]
        %v858 = vld [vmem:[%s379 + $0x8] sm:$0xfe]
        %v859 = vld [vmem:[%s379 + $0x20] sm:$0x1]
        %v860 = vld [vmem:[%s379 + $0x28] sm:$0x1]
        %s861 = scalar_lea.vmem [#allocation8], 144
        %v862 = vld [vmem:[%s861] sm:$0xff]
        %v863 = vld [vmem:[%s861 + $0x8] sm:$0xff]
        %v864 = vld [vmem:[%s861 + $0x10] sm:$0xff]
        %v865 = vld [vmem:[%s861 + $0x18] sm:$0xff]
        %v866 = vld [vmem:[%s861 + $0x20] sm:$0xff]
        %v867 = vld [vmem:[%s861 + $0x28] sm:$0xff]
        %v868 = vld [vmem:[%s861 + $0x30] sm:$0xff]
        %v869 = vld [vmem:[%s861 + $0x38] sm:$0xff]
        %v870 = vld [vmem:[%s861 + $0x40] sm:$0xff]
        %v871 = vld [vmem:[%s861 + $0x48] sm:$0xff]
        %v872 = vld [vmem:[%s861 + $0x50] sm:$0xff]
        %v873 = vld [vmem:[%s861 + $0x58] sm:$0xff]
        %v874 = vld [vmem:[%s861 + $0x60] sm:$0xff]
        %v875 = vld [vmem:[%s861 + $0x68] sm:$0xff]
        %v876 = vld [vmem:[%s861 + $0x70] sm:$0xff]
        %v877 = vld [vmem:[%s861 + $0x78] sm:$0xff]
        %v878 = vld [vmem:[%s861 + $0x80] sm:$0xff]
        %v879 = vld [vmem:[%s861 + $0x88] sm:$0xff]
        %vm886 = vcmask 1046528
        %v887 = vrot.slane %v857, 1
        %v888 = vrot.slane %v837, 1
        %v889 = vsel %vm886, %v887, %v888
        %v890 = vrot.slane %v858, 1
        %v891 = vrot.slane %v838, 1
        %v892 = vsel %vm886, %v890, %v891
        %v893 = vrot.slane %v859, 1
        %v894 = vsel %vm886, %v888, %v893
        %v895 = vrot.slane %v860, 1
        %v896 = vsel %vm886, %v891, %v895
        %vm899 = vcmask 130048
        %v900 = vsel %vm899, %v892, 0
        %v902 = vsel %vm899, %v896, 0
        %904 = vmatprep.subr.mxu0 0.0
        %905 = vmatpush1.msra.mxu0 %v862
        %906 = vmatprep.subr.mxu0 0.0
        %907 = vmatpush1.msra.mxu0 %v863
        %908 = vmatprep.subr.mxu0 0.0
        %909 = vmatpush1.msra.mxu0 %v864
        %910 = vmatprep.subr.mxu0 0.0
        %911 = vmatpush1.msra.mxu0 %v865
        %912 = vmatprep.subr.mxu0 0.0
        %913 = vmatpush1.msra.mxu0 %v866
        %914 = vmatprep.subr.mxu0 0.0
        %915 = vmatpush1.msra.mxu0 %v867
        %916 = vmatprep.subr.mxu0 0.0
        %917 = vmatpush1.msra.mxu0 %v868
        %918 = vmatprep.subr.mxu0 0.0
        %919 = vmatpush1.msra.mxu0 %v869
        %920 = vmatprep.subr.mxu0 0.0
        %921 = vmatpush1.msra.mxu0 %v870
        %922 = vmatprep.subr.mxu0 0.0
        %923 = vmatpush1.msra.mxu0 %v871
        %924 = vmatprep.subr.mxu0 0.0
        %925 = vmatpush1.msra.mxu0 %v872
        %926 = vmatprep.subr.mxu0 0.0
        %927 = vmatpush1.msra.mxu0 %v873
        %928 = vmatprep.subr.mxu0 0.0
        %929 = vmatpush1.msra.mxu0 %v874
        %930 = vmatprep.subr.mxu0 0.0
        %931 = vmatpush1.msra.mxu0 %v875
        %932 = vmatprep.subr.mxu0 0.0
        %933 = vmatpush1.msra.mxu0 %v876
        %934 = vmatprep.subr.mxu0 0.0
        %935 = vmatpush1.msra.mxu0 %v877
        %936 = vmatprep.subr.mxu0 0.0
        %937 = vmatpush1.msra.mxu0 %v878
        %938 = vmatprep.subr.mxu0 0.0
        %939 = vmatpush1.msra.mxu0 %v879
        %940 = vmatprep.subr.mxu0 0.0
        %941 = vmatpush1.msra.mxu0 0.0
        %942 = vmatprep.subr.mxu0 0.0
        %943 = vmatpush1.msra.mxu0 0.0
        %944 = vmatprep.subr.mxu0 0.0
        %945 = vmatpush1.msra.mxu0 0.0
        %946 = vmatprep.subr.mxu0 0.0
        %947 = vmatpush1.msra.mxu0 0.0
        %948 = vmatprep.subr.mxu0 0.0
        %949 = vmatpush1.msra.mxu0 0.0
        %950 = vmatprep.subr.mxu0 0.0
        %951 = vmatpush1.msra.mxu0 0.0
        %952 = vmatprep.subr.mxu0 0.0
        %953 = vmatpush1.msra.mxu0 0.0
        %954 = vmatprep.subr.mxu0 0.0
        %955 = vmatpush1.msra.mxu0 0.0
        %956 = vmatprep.subr.mxu0 0.0
        %957 = vmatpush1.msra.mxu0 0.0
        %958 = vmatprep.subr.mxu0 0.0
        %959 = vmatpush1.msra.mxu0 0.0
        %960 = vmatprep.subr.mxu0 0.0
        %961 = vmatpush1.msra.mxu0 0.0
        %962 = vmatprep.subr.mxu0 0.0
        %963 = vmatpush1.msra.mxu0 0.0
        %964 = vmatprep.subr.mxu0 0.0
        %965 = vmatpush1.msra.mxu0 0.0
        %966 = vmatprep.subr.mxu0 0.0
        %967 = vmatpush1.msra.mxu0 0.0
        %968 = vmatprep.mubr.f32.mxu0 %v900
        %969 = vmatmul.mubr.f32.gmra.mrb[0].mxu0 %v889
        %v970 = vpop.f32.mrb[0].mxu0
        %v971 = vadd.f32 0.0, %v970
        %v972 = vpop.f32.mrb[0].mxu0
        %973 = vmatprep.mubr.f32.mxu0 %v902
        %974 = vmatmul.mubr.f32.gmra.mrb[0].mxu0 %v894
        %v975 = vpop.f32.mrb[0].mxu0
        %v976 = vadd.f32 0.0, %v975
        %v977 = vpop.f32.mrb[0].mxu0
        %978 = vdwg.mxu0
        %v980 = vsel %vm899, %v836, 0
        %v982 = vsel %vm899, %v838, 0
        %984 = vmatprep.subr.mxu0 0.0
        %985 = vmatpush1.msra.mxu0 %v839
        %986 = vmatprep.subr.mxu0 0.0
        %987 = vmatpush1.msra.mxu0 %v840
        %988 = vmatprep.subr.mxu0 0.0
        %989 = vmatpush1.msra.mxu0 %v841
        %990 = vmatprep.subr.mxu0 0.0
        %991 = vmatpush1.msra.mxu0 %v842
        %992 = vmatprep.subr.mxu0 0.0
        %993 = vmatpush1.msra.mxu0 %v843
        %994 = vmatprep.subr.mxu0 0.0
        %995 = vmatpush1.msra.mxu0 %v844
        %996 = vmatprep.subr.mxu0 0.0
        %997 = vmatpush1.msra.mxu0 %v845
        %998 = vmatprep.subr.mxu0 0.0
        %999 = vmatpush1.msra.mxu0 %v846
        %1000 = vmatprep.subr.mxu0 0.0
        %1001 = vmatpush1.msra.mxu0 %v847
        %1002 = vmatprep.subr.mxu0 0.0
        %1003 = vmatpush1.msra.mxu0 %v848
        %1004 = vmatprep.subr.mxu0 0.0
        %1005 = vmatpush1.msra.mxu0 %v849
        %1006 = vmatprep.subr.mxu0 0.0
        %1007 = vmatpush1.msra.mxu0 %v850
        %1008 = vmatprep.subr.mxu0 0.0
        %1009 = vmatpush1.msra.mxu0 %v851
        %1010 = vmatprep.subr.mxu0 0.0
        %1011 = vmatpush1.msra.mxu0 %v852
        %1012 = vmatprep.subr.mxu0 0.0
        %1013 = vmatpush1.msra.mxu0 %v853
        %1014 = vmatprep.subr.mxu0 0.0
        %1015 = vmatpush1.msra.mxu0 %v854
        %1016 = vmatprep.subr.mxu0 0.0
        %1017 = vmatpush1.msra.mxu0 %v855
        %1018 = vmatprep.subr.mxu0 0.0
        %1019 = vmatpush1.msra.mxu0 %v856
        %1020 = vmatprep.subr.mxu0 0.0
        %1021 = vmatpush1.msra.mxu0 0.0
        %1022 = vmatprep.subr.mxu0 0.0
        %1023 = vmatpush1.msra.mxu0 0.0
        %1024 = vmatprep.subr.mxu0 0.0
        %1025 = vmatpush1.msra.mxu0 0.0
        %1026 = vmatprep.subr.mxu0 0.0
        %1027 = vmatpush1.msra.mxu0 0.0
        %1028 = vmatprep.subr.mxu0 0.0
        %1029 = vmatpush1.msra.mxu0 0.0
        %1030 = vmatprep.subr.mxu0 0.0
        %1031 = vmatpush1.msra.mxu0 0.0
        %1032 = vmatprep.subr.mxu0 0.0
        %1033 = vmatpush1.msra.mxu0 0.0
        %1034 = vmatprep.subr.mxu0 0.0
        %1035 = vmatpush1.msra.mxu0 0.0
        %1036 = vmatprep.subr.mxu0 0.0
        %1037 = vmatpush1.msra.mxu0 0.0
        %1038 = vmatprep.subr.mxu0 0.0
        %1039 = vmatpush1.msra.mxu0 0.0
        %1040 = vmatprep.subr.mxu0 0.0
        %1041 = vmatpush1.msra.mxu0 0.0
        %1042 = vmatprep.subr.mxu0 0.0
        %1043 = vmatpush1.msra.mxu0 0.0
        %1044 = vmatprep.subr.mxu0 0.0
        %1045 = vmatpush1.msra.mxu0 0.0
        %1046 = vmatprep.subr.mxu0 0.0
        %1047 = vmatpush1.msra.mxu0 0.0
        %1048 = vmatprep.mubr.f32.mxu0 %v980
        %1049 = vmatmul.mubr.f32.gmra.mrb[0].mxu0 %v835
        %v1050 = vpop.f32.mrb[0].mxu0
        %v1051 = vadd.f32 %v971, %v1050
        %v1052 = vpop.f32.mrb[0].mxu0
        %1053 = vmatprep.mubr.f32.mxu0 %v982
        %1054 = vmatmul.mubr.f32.gmra.mrb[0].mxu0 %v837
        %v1055 = vpop.f32.mrb[0].mxu0
        %v1056 = vadd.f32 %v976, %v1055
        %v1057 = vpop.f32.mrb[0].mxu0
        %1058 = vdwg.mxu0
        %v1059 = vld [vmem:[%s379] sm:$0xfc]
        %v1060 = vld [vmem:[%s379 + $0x8] sm:$0xfc]
        %v1061 = vld [vmem:[%s379 + $0x20] sm:$0x3]
        %v1062 = vld [vmem:[%s379 + $0x28] sm:$0x3]
        %s1063 = scalar_lea.vmem [#allocation8], 288
        %v1064 = vld [vmem:[%s1063] sm:$0xff]
        %v1065 = vld [vmem:[%s1063 + $0x8] sm:$0xff]
        %v1066 = vld [vmem:[%s1063 + $0x10] sm:$0xff]
        %v1067 = vld [vmem:[%s1063 + $0x18] sm:$0xff]
        %v1068 = vld [vmem:[%s1063 + $0x20] sm:$0xff]
        %v1069 = vld [vmem:[%s1063 + $0x28] sm:$0xff]
        %v1070 = vld [vmem:[%s1063 + $0x30] sm:$0xff]
        %v1071 = vld [vmem:[%s1063 + $0x38] sm:$0xff]
        %v1072 = vld [vmem:[%s1063 + $0x40] sm:$0xff]
        %v1073 = vld [vmem:[%s1063 + $0x48] sm:$0xff]
        %v1074 = vld [vmem:[%s1063 + $0x50] sm:$0xff]
        %v1075 = vld [vmem:[%s1063 + $0x58] sm:$0xff]
        %v1076 = vld [vmem:[%s1063 + $0x60] sm:$0xff]
        %v1077 = vld [vmem:[%s1063 + $0x68] sm:$0xff]
        %v1078 = vld [vmem:[%s1063 + $0x70] sm:$0xff]
        %v1079 = vld [vmem:[%s1063 + $0x78] sm:$0xff]
        %v1080 = vld [vmem:[%s1063 + $0x80] sm:$0xff]
        %v1081 = vld [vmem:[%s1063 + $0x88] sm:$0xff]
        %vm1086 = vcmask 1045504
        %v1087 = vrot.slane %v1059, 2
        %v1088 = vrot.slane %v837, 2
        %v1089 = vsel %vm1086, %v1087, %v1088
        %v1090 = vrot.slane %v1060, 2
        %v1091 = vrot.slane %v838, 2
        %v1092 = vsel %vm1086, %v1090, %v1091
        %v1093 = vrot.slane %v1061, 2
        %v1094 = vsel %vm1086, %v1088, %v1093
        %v1095 = vrot.slane %v1062, 2
        %v1096 = vsel %vm1086, %v1091, %v1095
        %v1099 = vsel %vm899, %v1092, 0
        %v1101 = vsel %vm899, %v1096, 0
        %1103 = vmatprep.subr.mxu0 0.0
        %1104 = vmatpush1.msra.mxu0 %v1064
        %1105 = vmatprep.subr.mxu0 0.0
        %1106 = vmatpush1.msra.mxu0 %v1065
        %1107 = vmatprep.subr.mxu0 0.0
        %1108 = vmatpush1.msra.mxu0 %v1066
        %1109 = vmatprep.subr.mxu0 0.0
        %1110 = vmatpush1.msra.mxu0 %v1067
        %1111 = vmatprep.subr.mxu0 0.0
        %1112 = vmatpush1.msra.mxu0 %v1068
        %1113 = vmatprep.subr.mxu0 0.0
        %1114 = vmatpush1.msra.mxu0 %v1069
        %1115 = vmatprep.subr.mxu0 0.0
        %1116 = vmatpush1.msra.mxu0 %v1070
        %1117 = vmatprep.subr.mxu0 0.0
        %1118 = vmatpush1.msra.mxu0 %v1071
        %1119 = vmatprep.subr.mxu0 0.0
        %1120 = vmatpush1.msra.mxu0 %v1072
        %1121 = vmatprep.subr.mxu0 0.0
        %1122 = vmatpush1.msra.mxu0 %v1073
        %1123 = vmatprep.subr.mxu0 0.0
        %1124 = vmatpush1.msra.mxu0 %v1074
        %1125 = vmatprep.subr.mxu0 0.0
        %1126 = vmatpush1.msra.mxu0 %v1075
        %1127 = vmatprep.subr.mxu0 0.0
        %1128 = vmatpush1.msra.mxu0 %v1076
        %1129 = vmatprep.subr.mxu0 0.0
        %1130 = vmatpush1.msra.mxu0 %v1077
        %1131 = vmatprep.subr.mxu0 0.0
        %1132 = vmatpush1.msra.mxu0 %v1078
        %1133 = vmatprep.subr.mxu0 0.0
        %1134 = vmatpush1.msra.mxu0 %v1079
        %1135 = vmatprep.subr.mxu0 0.0
        %1136 = vmatpush1.msra.mxu0 %v1080
        %1137 = vmatprep.subr.mxu0 0.0
        %1138 = vmatpush1.msra.mxu0 %v1081
        %1139 = vmatprep.subr.mxu0 0.0
        %1140 = vmatpush1.msra.mxu0 0.0
        %1141 = vmatprep.subr.mxu0 0.0
        %1142 = vmatpush1.msra.mxu0 0.0
        %1143 = vmatprep.subr.mxu0 0.0
        %1144 = vmatpush1.msra.mxu0 0.0
        %1145 = vmatprep.subr.mxu0 0.0
        %1146 = vmatpush1.msra.mxu0 0.0
        %1147 = vmatprep.subr.mxu0 0.0
        %1148 = vmatpush1.msra.mxu0 0.0
        %1149 = vmatprep.subr.mxu0 0.0
        %1150 = vmatpush1.msra.mxu0 0.0
        %1151 = vmatprep.subr.mxu0 0.0
        %1152 = vmatpush1.msra.mxu0 0.0
        %1153 = vmatprep.subr.mxu0 0.0
        %1154 = vmatpush1.msra.mxu0 0.0
        %1155 = vmatprep.subr.mxu0 0.0
        %1156 = vmatpush1.msra.mxu0 0.0
        %1157 = vmatprep.subr.mxu0 0.0
        %1158 = vmatpush1.msra.mxu0 0.0
        %1159 = vmatprep.subr.mxu0 0.0
        %1160 = vmatpush1.msra.mxu0 0.0
        %1161 = vmatprep.subr.mxu0 0.0
        %1162 = vmatpush1.msra.mxu0 0.0
        %1163 = vmatprep.subr.mxu0 0.0
        %1164 = vmatpush1.msra.mxu0 0.0
        %1165 = vmatprep.subr.mxu0 0.0
        %1166 = vmatpush1.msra.mxu0 0.0
        %1167 = vmatprep.mubr.f32.mxu0 %v1099
        %1168 = vmatmul.mubr.f32.gmra.mrb[0].mxu0 %v1089
        %v1169 = vpop.f32.mrb[0].mxu0
        %v1170 = vadd.f32 0.0, %v1169
        %v1171 = vpop.f32.mrb[0].mxu0
        %1172 = vmatprep.mubr.f32.mxu0 %v1101
        %1173 = vmatmul.mubr.f32.gmra.mrb[0].mxu0 %v1094
        %v1174 = vpop.f32.mrb[0].mxu0
        %v1175 = vadd.f32 0.0, %v1174
        %v1176 = vpop.f32.mrb[0].mxu0
        %1177 = vdwg.mxu0
        %v1178 = vadd.f32 %v1051, %v1170
        %v1179 = vadd.f32 %v1056, %v1175
        %v1180 = vld [vmem:[#allocation2] sm:$0xff]
        %v1181 = vld [vmem:[#allocation2 + $0x8] sm:$0xff]
        %v1182 = vld [vmem:[#allocation2 + $0x10] sm:$0xff]
        %v1183 = vld [vmem:[#allocation2 + $0x18] sm:$0xff]
        %v1184 = vld [vmem:[#allocation10] sm:$0xff]
        %v1185 = vld [vmem:[#allocation10 + $0x8] sm:$0xff]
        %v1186 = vld [vmem:[#allocation10 + $0x10] sm:$0xff]
        %v1187 = vld [vmem:[#allocation10 + $0x18] sm:$0xff]
        %v1188 = vld [vmem:[#allocation10 + $0x20] sm:$0xff]
        %v1189 = vld [vmem:[#allocation10 + $0x28] sm:$0xff]
        %v1190 = vld [vmem:[#allocation10 + $0x30] sm:$0xff]
        %v1191 = vld [vmem:[#allocation10 + $0x38] sm:$0xff]
        %v1192 = vld [vmem:[#allocation10 + $0x40] sm:$0xff]
        %v1193 = vld [vmem:[#allocation10 + $0x48] sm:$0xff]
        %v1194 = vld [vmem:[#allocation10 + $0x50] sm:$0xff]
        %v1195 = vld [vmem:[#allocation10 + $0x58] sm:$0xff]
        %v1196 = vld [vmem:[#allocation10 + $0x60] sm:$0xff]
        %v1197 = vld [vmem:[#allocation10 + $0x68] sm:$0xff]
        %v1198 = vld [vmem:[#allocation10 + $0x70] sm:$0xff]
        %v1199 = vld [vmem:[#allocation10 + $0x78] sm:$0xff]
        %v1200 = vld [vmem:[#allocation10 + $0x80] sm:$0xff]
        %v1201 = vld [vmem:[#allocation10 + $0x88] sm:$0xff]
        %v1203 = vsel %vm899, %v1181, 0
        %v1206 = vsel %vm899, %v1183, 0
        %1208 = vmatprep.subr.mxu0 0.0
        %1209 = vmatpush1.msra.mxu0 %v1184
        %1210 = vmatprep.subr.mxu0 0.0
        %1211 = vmatpush1.msra.mxu0 %v1185
        %1212 = vmatprep.subr.mxu0 0.0
        %1213 = vmatpush1.msra.mxu0 %v1186
        %1214 = vmatprep.subr.mxu0 0.0
        %1215 = vmatpush1.msra.mxu0 %v1187
        %1216 = vmatprep.subr.mxu0 0.0
        %1217 = vmatpush1.msra.mxu0 %v1188
        %1218 = vmatprep.subr.mxu0 0.0
        %1219 = vmatpush1.msra.mxu0 %v1189
        %1220 = vmatprep.subr.mxu0 0.0
        %1221 = vmatpush1.msra.mxu0 %v1190
        %1222 = vmatprep.subr.mxu0 0.0
        %1223 = vmatpush1.msra.mxu0 %v1191
        %1224 = vmatprep.subr.mxu0 0.0
        %1225 = vmatpush1.msra.mxu0 %v1192
        %1226 = vmatprep.subr.mxu0 0.0
        %1227 = vmatpush1.msra.mxu0 %v1193
        %1228 = vmatprep.subr.mxu0 0.0
        %1229 = vmatpush1.msra.mxu0 %v1194
        %1230 = vmatprep.subr.mxu0 0.0
        %1231 = vmatpush1.msra.mxu0 %v1195
        %1232 = vmatprep.subr.mxu0 0.0
        %1233 = vmatpush1.msra.mxu0 %v1196
        %1234 = vmatprep.subr.mxu0 0.0
        %1235 = vmatpush1.msra.mxu0 %v1197
        %1236 = vmatprep.subr.mxu0 0.0
        %1237 = vmatpush1.msra.mxu0 %v1198
        %1238 = vmatprep.subr.mxu0 0.0
        %1239 = vmatpush1.msra.mxu0 %v1199
        %1240 = vmatprep.subr.mxu0 0.0
        %1241 = vmatpush1.msra.mxu0 %v1200
        %1242 = vmatprep.subr.mxu0 0.0
        %1243 = vmatpush1.msra.mxu0 %v1201
        %1244 = vmatprep.subr.mxu0 0.0
        %1245 = vmatpush1.msra.mxu0 0.0
        %1246 = vmatprep.subr.mxu0 0.0
        %1247 = vmatpush1.msra.mxu0 0.0
        %1248 = vmatprep.subr.mxu0 0.0
        %1249 = vmatpush1.msra.mxu0 0.0
        %1250 = vmatprep.subr.mxu0 0.0
        %1251 = vmatpush1.msra.mxu0 0.0
        %1252 = vmatprep.subr.mxu0 0.0
        %1253 = vmatpush1.msra.mxu0 0.0
        %1254 = vmatprep.subr.mxu0 0.0
        %1255 = vmatpush1.msra.mxu0 0.0
        %1256 = vmatprep.subr.mxu0 0.0
        %1257 = vmatpush1.msra.mxu0 0.0
        %1258 = vmatprep.subr.mxu0 0.0
        %1259 = vmatpush1.msra.mxu0 0.0
        %1260 = vmatprep.subr.mxu0 0.0
        %1261 = vmatpush1.msra.mxu0 0.0
        %1262 = vmatprep.subr.mxu0 0.0
        %1263 = vmatpush1.msra.mxu0 0.0
        %1264 = vmatprep.subr.mxu0 0.0
        %1265 = vmatpush1.msra.mxu0 0.0
        %1266 = vmatprep.subr.mxu0 0.0
        %1267 = vmatpush1.msra.mxu0 0.0
        %1268 = vmatprep.subr.mxu0 0.0
        %1269 = vmatpush1.msra.mxu0 0.0
        %1270 = vmatprep.subr.mxu0 0.0
        %1271 = vmatpush1.msra.mxu0 0.0
        %1272 = vmatprep.mubr.f32.mxu0 %v1203
        %1273 = vmatmul.mubr.f32.gmra.mrb[0].mxu0 %v1180
        %v1274 = vpop.f32.mrb[0].mxu0
        %v1275 = vadd.f32 0.0, %v1274
        %v1276 = vpop.f32.mrb[0].mxu0
        %1277 = vmatprep.mubr.f32.mxu0 %v1206
        %1278 = vmatmul.mubr.f32.gmra.mrb[0].mxu0 %v1182
        %v1279 = vpop.f32.mrb[0].mxu0
        %v1280 = vadd.f32 0.0, %v1279
        %v1281 = vpop.f32.mrb[0].mxu0
        %1282 = vdwg.mxu0
        %v1283 = vadd.f32 %v1178, %v1275
        %v1284 = vadd.f32 %v1179, %v1280
        %v1285 = vld [vmem:[#allocation2] sm:$0xfe]
        %v1286 = vld [vmem:[#allocation2 + $0x8] sm:$0xfe]
        %v1287 = vld [vmem:[#allocation2 + $0x10] sm:$0xff]
        %v1288 = vld [vmem:[#allocation2 + $0x18] sm:$0xff]
        %v1289 = vld [vmem:[#allocation2 + $0x20] sm:$0x1]
        %v1290 = vld [vmem:[#allocation2 + $0x28] sm:$0x1]
        %s1291 = scalar_lea.vmem [#allocation10], 144
        %v1292 = vld [vmem:[%s1291] sm:$0xff]
        %v1293 = vld [vmem:[%s1291 + $0x8] sm:$0xff]
        %v1294 = vld [vmem:[%s1291 + $0x10] sm:$0xff]
        %v1295 = vld [vmem:[%s1291 + $0x18] sm:$0xff]
        %v1296 = vld [vmem:[%s1291 + $0x20] sm:$0xff]
        %v1297 = vld [vmem:[%s1291 + $0x28] sm:$0xff]
        %v1298 = vld [vmem:[%s1291 + $0x30] sm:$0xff]
        %v1299 = vld [vmem:[%s1291 + $0x38] sm:$0xff]
        %v1300 = vld [vmem:[%s1291 + $0x40] sm:$0xff]
        %v1301 = vld [vmem:[%s1291 + $0x48] sm:$0xff]
        %v1302 = vld [vmem:[%s1291 + $0x50] sm:$0xff]
        %v1303 = vld [vmem:[%s1291 + $0x58] sm:$0xff]
        %v1304 = vld [vmem:[%s1291 + $0x60] sm:$0xff]
        %v1305 = vld [vmem:[%s1291 + $0x68] sm:$0xff]
        %v1306 = vld [vmem:[%s1291 + $0x70] sm:$0xff]
        %v1307 = vld [vmem:[%s1291 + $0x78] sm:$0xff]
        %v1308 = vld [vmem:[%s1291 + $0x80] sm:$0xff]
        %v1309 = vld [vmem:[%s1291 + $0x88] sm:$0xff]
        %v1316 = vrot.slane %v1285, 1
        %v1317 = vrot.slane %v1287, 1
        %v1318 = vsel %vm886, %v1316, %v1317
        %v1319 = vrot.slane %v1286, 1
        %v1320 = vrot.slane %v1288, 1
        %v1321 = vsel %vm886, %v1319, %v1320
        %v1322 = vrot.slane %v1289, 1
        %v1323 = vsel %vm886, %v1317, %v1322
        %v1324 = vrot.slane %v1290, 1
        %v1325 = vsel %vm886, %v1320, %v1324
        %v1328 = vsel %vm899, %v1321, 0
        %v1330 = vsel %vm899, %v1325, 0
        %1332 = vmatprep.subr.mxu0 0.0
        %1333 = vmatpush1.msra.mxu0 %v1292
        %1334 = vmatprep.subr.mxu0 0.0
        %1335 = vmatpush1.msra.mxu0 %v1293
        %1336 = vmatprep.subr.mxu0 0.0
        %1337 = vmatpush1.msra.mxu0 %v1294
        %1338 = vmatprep.subr.mxu0 0.0
        %1339 = vmatpush1.msra.mxu0 %v1295
        %1340 = vmatprep.subr.mxu0 0.0
        %1341 = vmatpush1.msra.mxu0 %v1296
        %1342 = vmatprep.subr.mxu0 0.0
        %1343 = vmatpush1.msra.mxu0 %v1297
        %1344 = vmatprep.subr.mxu0 0.0
        %1345 = vmatpush1.msra.mxu0 %v1298
        %1346 = vmatprep.subr.mxu0 0.0
        %1347 = vmatpush1.msra.mxu0 %v1299
        %1348 = vmatprep.subr.mxu0 0.0
        %1349 = vmatpush1.msra.mxu0 %v1300
        %1350 = vmatprep.subr.mxu0 0.0
        %1351 = vmatpush1.msra.mxu0 %v1301
        %1352 = vmatprep.subr.mxu0 0.0
        %1353 = vmatpush1.msra.mxu0 %v1302
        %1354 = vmatprep.subr.mxu0 0.0
        %1355 = vmatpush1.msra.mxu0 %v1303
        %1356 = vmatprep.subr.mxu0 0.0
        %1357 = vmatpush1.msra.mxu0 %v1304
        %1358 = vmatprep.subr.mxu0 0.0
        %1359 = vmatpush1.msra.mxu0 %v1305
        %1360 = vmatprep.subr.mxu0 0.0
        %1361 = vmatpush1.msra.mxu0 %v1306
        %1362 = vmatprep.subr.mxu0 0.0
        %1363 = vmatpush1.msra.mxu0 %v1307
        %1364 = vmatprep.subr.mxu0 0.0
        %1365 = vmatpush1.msra.mxu0 %v1308
        %1366 = vmatprep.subr.mxu0 0.0
        %1367 = vmatpush1.msra.mxu0 %v1309
        %1368 = vmatprep.subr.mxu0 0.0
        %1369 = vmatpush1.msra.mxu0 0.0
        %1370 = vmatprep.subr.mxu0 0.0
        %1371 = vmatpush1.msra.mxu0 0.0
        %1372 = vmatprep.subr.mxu0 0.0
        %1373 = vmatpush1.msra.mxu0 0.0
        %1374 = vmatprep.subr.mxu0 0.0
        %1375 = vmatpush1.msra.mxu0 0.0
        %1376 = vmatprep.subr.mxu0 0.0
        %1377 = vmatpush1.msra.mxu0 0.0
        %1378 = vmatprep.subr.mxu0 0.0
        %1379 = vmatpush1.msra.mxu0 0.0
        %1380 = vmatprep.subr.mxu0 0.0
        %1381 = vmatpush1.msra.mxu0 0.0
        %1382 = vmatprep.subr.mxu0 0.0
        %1383 = vmatpush1.msra.mxu0 0.0
        %1384 = vmatprep.subr.mxu0 0.0
        %1385 = vmatpush1.msra.mxu0 0.0
        %1386 = vmatprep.subr.mxu0 0.0
        %1387 = vmatpush1.msra.mxu0 0.0
        %1388 = vmatprep.subr.mxu0 0.0
        %1389 = vmatpush1.msra.mxu0 0.0
        %1390 = vmatprep.subr.mxu0 0.0
        %1391 = vmatpush1.msra.mxu0 0.0
        %1392 = vmatprep.subr.mxu0 0.0
        %1393 = vmatpush1.msra.mxu0 0.0
        %1394 = vmatprep.subr.mxu0 0.0
        %1395 = vmatpush1.msra.mxu0 0.0
        %1396 = vmatprep.mubr.f32.mxu0 %v1328
        %1397 = vmatmul.mubr.f32.gmra.mrb[0].mxu0 %v1318
        %v1398 = vpop.f32.mrb[0].mxu0
        %v1399 = vadd.f32 0.0, %v1398
        %v1400 = vpop.f32.mrb[0].mxu0
        %1401 = vmatprep.mubr.f32.mxu0 %v1330
        %1402 = vmatmul.mubr.f32.gmra.mrb[0].mxu0 %v1323
        %v1403 = vpop.f32.mrb[0].mxu0
        %v1404 = vadd.f32 0.0, %v1403
        %v1405 = vpop.f32.mrb[0].mxu0
        %1406 = vdwg.mxu0
        %v1407 = vadd.f32 %v1283, %v1399
        %v1408 = vadd.f32 %v1284, %v1404
        %v1409 = vld [vmem:[#allocation2] sm:$0xfc]
        %v1410 = vld [vmem:[#allocation2 + $0x8] sm:$0xfc]
        %v1411 = vld [vmem:[#allocation2 + $0x20] sm:$0x3]
        %v1412 = vld [vmem:[#allocation2 + $0x28] sm:$0x3]
        %s1413 = scalar_lea.vmem [#allocation10], 288
        %v1414 = vld [vmem:[%s1413] sm:$0xff]
        %v1415 = vld [vmem:[%s1413 + $0x8] sm:$0xff]
        %v1416 = vld [vmem:[%s1413 + $0x10] sm:$0xff]
        %v1417 = vld [vmem:[%s1413 + $0x18] sm:$0xff]
        %v1418 = vld [vmem:[%s1413 + $0x20] sm:$0xff]
        %v1419 = vld [vmem:[%s1413 + $0x28] sm:$0xff]
        %v1420 = vld [vmem:[%s1413 + $0x30] sm:$0xff]
        %v1421 = vld [vmem:[%s1413 + $0x38] sm:$0xff]
        %v1422 = vld [vmem:[%s1413 + $0x40] sm:$0xff]
        %v1423 = vld [vmem:[%s1413 + $0x48] sm:$0xff]
        %v1424 = vld [vmem:[%s1413 + $0x50] sm:$0xff]
        %v1425 = vld [vmem:[%s1413 + $0x58] sm:$0xff]
        %v1426 = vld [vmem:[%s1413 + $0x60] sm:$0xff]
        %v1427 = vld [vmem:[%s1413 + $0x68] sm:$0xff]
        %v1428 = vld [vmem:[%s1413 + $0x70] sm:$0xff]
        %v1429 = vld [vmem:[%s1413 + $0x78] sm:$0xff]
        %v1430 = vld [vmem:[%s1413 + $0x80] sm:$0xff]
        %v1431 = vld [vmem:[%s1413 + $0x88] sm:$0xff]
        %v1436 = vrot.slane %v1409, 2
        %v1437 = vrot.slane %v1287, 2
        %v1438 = vsel %vm1086, %v1436, %v1437
        %v1439 = vrot.slane %v1410, 2
        %v1440 = vrot.slane %v1288, 2
        %v1441 = vsel %vm1086, %v1439, %v1440
        %v1442 = vrot.slane %v1411, 2
        %v1443 = vsel %vm1086, %v1437, %v1442
        %v1444 = vrot.slane %v1412, 2
        %v1445 = vsel %vm1086, %v1440, %v1444
        %v1448 = vsel %vm899, %v1441, 0
        %v1450 = vsel %vm899, %v1445, 0
        %1452 = vmatprep.subr.mxu0 0.0
        %1453 = vmatpush1.msra.mxu0 %v1414
        %1454 = vmatprep.subr.mxu0 0.0
        %1455 = vmatpush1.msra.mxu0 %v1415
        %1456 = vmatprep.subr.mxu0 0.0
        %1457 = vmatpush1.msra.mxu0 %v1416
        %1458 = vmatprep.subr.mxu0 0.0
        %1459 = vmatpush1.msra.mxu0 %v1417
        %1460 = vmatprep.subr.mxu0 0.0
        %1461 = vmatpush1.msra.mxu0 %v1418
        %1462 = vmatprep.subr.mxu0 0.0
        %1463 = vmatpush1.msra.mxu0 %v1419
        %1464 = vmatprep.subr.mxu0 0.0
        %1465 = vmatpush1.msra.mxu0 %v1420
        %1466 = vmatprep.subr.mxu0 0.0
        %1467 = vmatpush1.msra.mxu0 %v1421
        %1468 = vmatprep.subr.mxu0 0.0
        %1469 = vmatpush1.msra.mxu0 %v1422
        %1470 = vmatprep.subr.mxu0 0.0
        %1471 = vmatpush1.msra.mxu0 %v1423
        %1472 = vmatprep.subr.mxu0 0.0
        %1473 = vmatpush1.msra.mxu0 %v1424
        %1474 = vmatprep.subr.mxu0 0.0
        %1475 = vmatpush1.msra.mxu0 %v1425
        %1476 = vmatprep.subr.mxu0 0.0
        %1477 = vmatpush1.msra.mxu0 %v1426
        %1478 = vmatprep.subr.mxu0 0.0
        %1479 = vmatpush1.msra.mxu0 %v1427
        %1480 = vmatprep.subr.mxu0 0.0
        %1481 = vmatpush1.msra.mxu0 %v1428
        %1482 = vmatprep.subr.mxu0 0.0
        %1483 = vmatpush1.msra.mxu0 %v1429
        %1484 = vmatprep.subr.mxu0 0.0
        %1485 = vmatpush1.msra.mxu0 %v1430
        %1486 = vmatprep.subr.mxu0 0.0
        %1487 = vmatpush1.msra.mxu0 %v1431
        %1488 = vmatprep.subr.mxu0 0.0
        %1489 = vmatpush1.msra.mxu0 0.0
        %1490 = vmatprep.subr.mxu0 0.0
        %1491 = vmatpush1.msra.mxu0 0.0
        %1492 = vmatprep.subr.mxu0 0.0
        %1493 = vmatpush1.msra.mxu0 0.0
        %1494 = vmatprep.subr.mxu0 0.0
        %1495 = vmatpush1.msra.mxu0 0.0
        %1496 = vmatprep.subr.mxu0 0.0
        %1497 = vmatpush1.msra.mxu0 0.0
        %1498 = vmatprep.subr.mxu0 0.0
        %1499 = vmatpush1.msra.mxu0 0.0
        %1500 = vmatprep.subr.mxu0 0.0
        %1501 = vmatpush1.msra.mxu0 0.0
        %1502 = vmatprep.subr.mxu0 0.0
        %1503 = vmatpush1.msra.mxu0 0.0
        %1504 = vmatprep.subr.mxu0 0.0
        %1505 = vmatpush1.msra.mxu0 0.0
        %1506 = vmatprep.subr.mxu0 0.0
        %1507 = vmatpush1.msra.mxu0 0.0
        %1508 = vmatprep.subr.mxu0 0.0
        %1509 = vmatpush1.msra.mxu0 0.0
        %1510 = vmatprep.subr.mxu0 0.0
        %1511 = vmatpush1.msra.mxu0 0.0
        %1512 = vmatprep.subr.mxu0 0.0
        %1513 = vmatpush1.msra.mxu0 0.0
        %1514 = vmatprep.subr.mxu0 0.0
        %1515 = vmatpush1.msra.mxu0 0.0
        %1516 = vmatprep.mubr.f32.mxu0 %v1448
        %1517 = vmatmul.mubr.f32.gmra.mrb[0].mxu0 %v1438
        %v1518 = vpop.f32.mrb[0].mxu0
        %v1519 = vadd.f32 0.0, %v1518
        %v1520 = vpop.f32.mrb[0].mxu0
        %1521 = vmatprep.mubr.f32.mxu0 %v1450
        %1522 = vmatmul.mubr.f32.gmra.mrb[0].mxu0 %v1443
        %v1523 = vpop.f32.mrb[0].mxu0
        %v1524 = vadd.f32 0.0, %v1523
        %v1525 = vpop.f32.mrb[0].mxu0
        %1526 = vdwg.mxu0
        %v1527 = vadd.f32 %v1407, %v1519
        %v1528 = vadd.f32 %v1408, %v1524
        %v1530 = vlaneseq
        %v1531 = vshrl.u32 %v1530, 7
        %v1532 = vsub.s32 0, %v1531
        %v1533 = vrot.slane %v834, %v1532
        %v1535 = vadd.f32 %v1527, %v1533
        %v1536 = vadd.f32 %v1528, %v1533
        %v1537 = vmax.f32 %v1535, 0.0
        %v1538 = vmax.f32 %v1536, 0.0
        %v1541 = vrot.slane %v1537, 7
        %v1542 = vrot.slane %v1538, 7
        %v1543 = vsel %vm810, %v1541, %v1542
        %1544 = vrot.lane.b32.xlu0 %v1541, 8
        %v1545 = vpop.permute.xlu0 %1544
        %1546 = vrot.lane.b32.xlu0 %v1543, 8
        %v1547 = vpop.permute.xlu0 %1546
        %1548 = vrot.lane.b32.xlu0 %v1542, 8
        %v1549 = vpop.permute.xlu0 %1548
        %1553 = vst.msk [vmem:[#allocation3] sm:$0xfe] %vm823, %v1545
        %1554 = vst.msk [vmem:[#allocation3 + $0x8] sm:$0xfe] %vm825, %v1545
        %1555 = vst.msk [vmem:[#allocation3 + $0x10] sm:$0xff] %vm827, %v1547
        %1556 = vst.msk [vmem:[#allocation3 + $0x18] sm:$0xff] %vm389, %v1547
        %1557 = vst.msk [vmem:[#allocation3 + $0x20] sm:$0x1] %vm830, %v1549
        %1558 = vst.msk [vmem:[#allocation3 + $0x28] sm:$0x1] %vm832, %v1549
        %s1559 = scalar_lea.vmem %s7, 1
        %v1560 = vld [vmem:[%s1559] sm:$0x1]
        %v1561 = vld [vmem:[#allocation3] sm:$0xff]
        %v1562 = vld [vmem:[#allocation3 + $0x8] sm:$0xff]
        %v1563 = vld [vmem:[#allocation3 + $0x10] sm:$0xff]
        %v1564 = vld [vmem:[#allocation3 + $0x18] sm:$0xff]
        %v1565 = vld [vmem:[#allocation11] sm:$0xff]
        %v1566 = vld [vmem:[#allocation11 + $0x8] sm:$0xff]
        %v1567 = vld [vmem:[#allocation11 + $0x10] sm:$0xff]
        %v1568 = vld [vmem:[#allocation11 + $0x18] sm:$0xff]
        %v1569 = vld [vmem:[#allocation11 + $0x20] sm:$0xff]
        %v1570 = vld [vmem:[#allocation11 + $0x28] sm:$0xff]
        %v1571 = vld [vmem:[#allocation11 + $0x30] sm:$0xff]
        %v1572 = vld [vmem:[#allocation11 + $0x38] sm:$0xff]
        %v1573 = vld [vmem:[#allocation11 + $0x40] sm:$0xff]
        %v1574 = vld [vmem:[#allocation11 + $0x48] sm:$0xff]
        %v1575 = vld [vmem:[#allocation11 + $0x50] sm:$0xff]
        %v1576 = vld [vmem:[#allocation11 + $0x58] sm:$0xff]
        %v1577 = vld [vmem:[#allocation11 + $0x60] sm:$0xff]
        %v1578 = vld [vmem:[#allocation11 + $0x68] sm:$0xff]
        %v1579 = vld [vmem:[#allocation11 + $0x70] sm:$0xff]
        %v1580 = vld [vmem:[#allocation11 + $0x78] sm:$0xff]
        %v1581 = vld [vmem:[#allocation11 + $0x80] sm:$0xff]
        %v1582 = vld [vmem:[#allocation11 + $0x88] sm:$0xff]
        %v1583 = vld [vmem:[#allocation3] sm:$0xfe]
        %v1584 = vld [vmem:[#allocation3 + $0x8] sm:$0xfe]
        %v1585 = vld [vmem:[#allocation3 + $0x20] sm:$0x1]
        %v1586 = vld [vmem:[#allocation3 + $0x28] sm:$0x1]
        %s1587 = scalar_lea.vmem [#allocation11], 144
        %v1588 = vld [vmem:[%s1587] sm:$0xff]
        %v1589 = vld [vmem:[%s1587 + $0x8] sm:$0xff]
        %v1590 = vld [vmem:[%s1587 + $0x10] sm:$0xff]
        %v1591 = vld [vmem:[%s1587 + $0x18] sm:$0xff]
        %v1592 = vld [vmem:[%s1587 + $0x20] sm:$0xff]
        %v1593 = vld [vmem:[%s1587 + $0x28] sm:$0xff]
        %v1594 = vld [vmem:[%s1587 + $0x30] sm:$0xff]
        %v1595 = vld [vmem:[%s1587 + $0x38] sm:$0xff]
        %v1596 = vld [vmem:[%s1587 + $0x40] sm:$0xff]
        %v1597 = vld [vmem:[%s1587 + $0x48] sm:$0xff]
        %v1598 = vld [vmem:[%s1587 + $0x50] sm:$0xff]
        %v1599 = vld [vmem:[%s1587 + $0x58] sm:$0xff]
        %v1600 = vld [vmem:[%s1587 + $0x60] sm:$0xff]
        %v1601 = vld [vmem:[%s1587 + $0x68] sm:$0xff]
        %v1602 = vld [vmem:[%s1587 + $0x70] sm:$0xff]
        %v1603 = vld [vmem:[%s1587 + $0x78] sm:$0xff]
        %v1604 = vld [vmem:[%s1587 + $0x80] sm:$0xff]
        %v1605 = vld [vmem:[%s1587 + $0x88] sm:$0xff]
        %v1612 = vrot.slane %v1583, 1
        %v1613 = vrot.slane %v1563, 1
        %v1614 = vsel %vm886, %v1612, %v1613
        %v1615 = vrot.slane %v1584, 1
        %v1616 = vrot.slane %v1564, 1
        %v1617 = vsel %vm886, %v1615, %v1616
        %v1618 = vrot.slane %v1585, 1
        %v1619 = vsel %vm886, %v1613, %v1618
        %v1620 = vrot.slane %v1586, 1
        %v1621 = vsel %vm886, %v1616, %v1620
        %v1624 = vsel %vm899, %v1617, 0
        %v1626 = vsel %vm899, %v1621, 0
        %1628 = vmatprep.subr.mxu0 0.0
        %1629 = vmatpush1.msra.mxu0 %v1588
        %1630 = vmatprep.subr.mxu0 0.0
        %1631 = vmatpush1.msra.mxu0 %v1589
        %1632 = vmatprep.subr.mxu0 0.0
        %1633 = vmatpush1.msra.mxu0 %v1590
        %1634 = vmatprep.subr.mxu0 0.0
        %1635 = vmatpush1.msra.mxu0 %v1591
        %1636 = vmatprep.subr.mxu0 0.0
        %1637 = vmatpush1.msra.mxu0 %v1592
        %1638 = vmatprep.subr.mxu0 0.0
        %1639 = vmatpush1.msra.mxu0 %v1593
        %1640 = vmatprep.subr.mxu0 0.0
        %1641 = vmatpush1.msra.mxu0 %v1594
        %1642 = vmatprep.subr.mxu0 0.0
        %1643 = vmatpush1.msra.mxu0 %v1595
        %1644 = vmatprep.subr.mxu0 0.0
        %1645 = vmatpush1.msra.mxu0 %v1596
        %1646 = vmatprep.subr.mxu0 0.0
        %1647 = vmatpush1.msra.mxu0 %v1597
        %1648 = vmatprep.subr.mxu0 0.0
        %1649 = vmatpush1.msra.mxu0 %v1598
        %1650 = vmatprep.subr.mxu0 0.0
        %1651 = vmatpush1.msra.mxu0 %v1599
        %1652 = vmatprep.subr.mxu0 0.0
        %1653 = vmatpush1.msra.mxu0 %v1600
        %1654 = vmatprep.subr.mxu0 0.0
        %1655 = vmatpush1.msra.mxu0 %v1601
        %1656 = vmatprep.subr.mxu0 0.0
        %1657 = vmatpush1.msra.mxu0 %v1602
        %1658 = vmatprep.subr.mxu0 0.0
        %1659 = vmatpush1.msra.mxu0 %v1603
        %1660 = vmatprep.subr.mxu0 0.0
        %1661 = vmatpush1.msra.mxu0 %v1604
        %1662 = vmatprep.subr.mxu0 0.0
        %1663 = vmatpush1.msra.mxu0 %v1605
        %1664 = vmatprep.subr.mxu0 0.0
        %1665 = vmatpush1.msra.mxu0 0.0
        %1666 = vmatprep.subr.mxu0 0.0
        %1667 = vmatpush1.msra.mxu0 0.0
        %1668 = vmatprep.subr.mxu0 0.0
        %1669 = vmatpush1.msra.mxu0 0.0
        %1670 = vmatprep.subr.mxu0 0.0
        %1671 = vmatpush1.msra.mxu0 0.0
        %1672 = vmatprep.subr.mxu0 0.0
        %1673 = vmatpush1.msra.mxu0 0.0
        %1674 = vmatprep.subr.mxu0 0.0
        %1675 = vmatpush1.msra.mxu0 0.0
        %1676 = vmatprep.subr.mxu0 0.0
        %1677 = vmatpush1.msra.mxu0 0.0
        %1678 = vmatprep.subr.mxu0 0.0
        %1679 = vmatpush1.msra.mxu0 0.0
        %1680 = vmatprep.subr.mxu0 0.0
        %1681 = vmatpush1.msra.mxu0 0.0
        %1682 = vmatprep.subr.mxu0 0.0
        %1683 = vmatpush1.msra.mxu0 0.0
        %1684 = vmatprep.subr.mxu0 0.0
        %1685 = vmatpush1.msra.mxu0 0.0
        %1686 = vmatprep.subr.mxu0 0.0
        %1687 = vmatpush1.msra.mxu0 0.0
        %1688 = vmatprep.subr.mxu0 0.0
        %1689 = vmatpush1.msra.mxu0 0.0
        %1690 = vmatprep.subr.mxu0 0.0
        %1691 = vmatpush1.msra.mxu0 0.0
        %1692 = vmatprep.mubr.f32.mxu0 %v1624
        %1693 = vmatmul.mubr.f32.gmra.mrb[0].mxu0 %v1614
        %v1694 = vpop.f32.mrb[0].mxu0
        %v1695 = vadd.f32 0.0, %v1694
        %v1696 = vpop.f32.mrb[0].mxu0
        %1697 = vmatprep.mubr.f32.mxu0 %v1626
        %1698 = vmatmul.mubr.f32.gmra.mrb[0].mxu0 %v1619
        %v1699 = vpop.f32.mrb[0].mxu0
        %v1700 = vadd.f32 0.0, %v1699
        %v1701 = vpop.f32.mrb[0].mxu0
        %1702 = vdwg.mxu0
        %v1704 = vsel %vm899, %v1562, 0
        %v1706 = vsel %vm899, %v1564, 0
        %1708 = vmatprep.subr.mxu0 0.0
        %1709 = vmatpush1.msra.mxu0 %v1565
        %1710 = vmatprep.subr.mxu0 0.0
        %1711 = vmatpush1.msra.mxu0 %v1566
        %1712 = vmatprep.subr.mxu0 0.0
        %1713 = vmatpush1.msra.mxu0 %v1567
        %1714 = vmatprep.subr.mxu0 0.0
        %1715 = vmatpush1.msra.mxu0 %v1568
        %1716 = vmatprep.subr.mxu0 0.0
        %1717 = vmatpush1.msra.mxu0 %v1569
        %1718 = vmatprep.subr.mxu0 0.0
        %1719 = vmatpush1.msra.mxu0 %v1570
        %1720 = vmatprep.subr.mxu0 0.0
        %1721 = vmatpush1.msra.mxu0 %v1571
        %1722 = vmatprep.subr.mxu0 0.0
        %1723 = vmatpush1.msra.mxu0 %v1572
        %1724 = vmatprep.subr.mxu0 0.0
        %1725 = vmatpush1.msra.mxu0 %v1573
        %1726 = vmatprep.subr.mxu0 0.0
        %1727 = vmatpush1.msra.mxu0 %v1574
        %1728 = vmatprep.subr.mxu0 0.0
        %1729 = vmatpush1.msra.mxu0 %v1575
        %1730 = vmatprep.subr.mxu0 0.0
        %1731 = vmatpush1.msra.mxu0 %v1576
        %1732 = vmatprep.subr.mxu0 0.0
        %1733 = vmatpush1.msra.mxu0 %v1577
        %1734 = vmatprep.subr.mxu0 0.0
        %1735 = vmatpush1.msra.mxu0 %v1578
        %1736 = vmatprep.subr.mxu0 0.0
        %1737 = vmatpush1.msra.mxu0 %v1579
        %1738 = vmatprep.subr.mxu0 0.0
        %1739 = vmatpush1.msra.mxu0 %v1580
        %1740 = vmatprep.subr.mxu0 0.0
        %1741 = vmatpush1.msra.mxu0 %v1581
        %1742 = vmatprep.subr.mxu0 0.0
        %1743 = vmatpush1.msra.mxu0 %v1582
        %1744 = vmatprep.subr.mxu0 0.0
        %1745 = vmatpush1.msra.mxu0 0.0
        %1746 = vmatprep.subr.mxu0 0.0
        %1747 = vmatpush1.msra.mxu0 0.0
        %1748 = vmatprep.subr.mxu0 0.0
        %1749 = vmatpush1.msra.mxu0 0.0
        %1750 = vmatprep.subr.mxu0 0.0
        %1751 = vmatpush1.msra.mxu0 0.0
        %1752 = vmatprep.subr.mxu0 0.0
        %1753 = vmatpush1.msra.mxu0 0.0
        %1754 = vmatprep.subr.mxu0 0.0
        %1755 = vmatpush1.msra.mxu0 0.0
        %1756 = vmatprep.subr.mxu0 0.0
        %1757 = vmatpush1.msra.mxu0 0.0
        %1758 = vmatprep.subr.mxu0 0.0
        %1759 = vmatpush1.msra.mxu0 0.0
        %1760 = vmatprep.subr.mxu0 0.0
        %1761 = vmatpush1.msra.mxu0 0.0
        %1762 = vmatprep.subr.mxu0 0.0
        %1763 = vmatpush1.msra.mxu0 0.0
        %1764 = vmatprep.subr.mxu0 0.0
        %1765 = vmatpush1.msra.mxu0 0.0
        %1766 = vmatprep.subr.mxu0 0.0
        %1767 = vmatpush1.msra.mxu0 0.0
        %1768 = vmatprep.subr.mxu0 0.0
        %1769 = vmatpush1.msra.mxu0 0.0
        %1770 = vmatprep.subr.mxu0 0.0
        %1771 = vmatpush1.msra.mxu0 0.0
        %1772 = vmatprep.mubr.f32.mxu0 %v1704
        %1773 = vmatmul.mubr.f32.gmra.mrb[0].mxu0 %v1561
        %v1774 = vpop.f32.mrb[0].mxu0
        %v1775 = vadd.f32 %v1695, %v1774
        %v1776 = vpop.f32.mrb[0].mxu0
        %1777 = vmatprep.mubr.f32.mxu0 %v1706
        %1778 = vmatmul.mubr.f32.gmra.mrb[0].mxu0 %v1563
        %v1779 = vpop.f32.mrb[0].mxu0
        %v1780 = vadd.f32 %v1700, %v1779
        %v1781 = vpop.f32.mrb[0].mxu0
        %1782 = vdwg.mxu0
        %v1783 = vld [vmem:[#allocation3] sm:$0xfc]
        %v1784 = vld [vmem:[#allocation3 + $0x8] sm:$0xfc]
        %v1785 = vld [vmem:[#allocation3 + $0x20] sm:$0x3]
        %v1786 = vld [vmem:[#allocation3 + $0x28] sm:$0x3]
        %s1787 = scalar_lea.vmem [#allocation11], 288
        %v1788 = vld [vmem:[%s1787] sm:$0xff]
        %v1789 = vld [vmem:[%s1787 + $0x8] sm:$0xff]
        %v1790 = vld [vmem:[%s1787 + $0x10] sm:$0xff]
        %v1791 = vld [vmem:[%s1787 + $0x18] sm:$0xff]
        %v1792 = vld [vmem:[%s1787 + $0x20] sm:$0xff]
        %v1793 = vld [vmem:[%s1787 + $0x28] sm:$0xff]
        %v1794 = vld [vmem:[%s1787 + $0x30] sm:$0xff]
        %v1795 = vld [vmem:[%s1787 + $0x38] sm:$0xff]
        %v1796 = vld [vmem:[%s1787 + $0x40] sm:$0xff]
        %v1797 = vld [vmem:[%s1787 + $0x48] sm:$0xff]
        %v1798 = vld [vmem:[%s1787 + $0x50] sm:$0xff]
        %v1799 = vld [vmem:[%s1787 + $0x58] sm:$0xff]
        %v1800 = vld [vmem:[%s1787 + $0x60] sm:$0xff]
        %v1801 = vld [vmem:[%s1787 + $0x68] sm:$0xff]
        %v1802 = vld [vmem:[%s1787 + $0x70] sm:$0xff]
        %v1803 = vld [vmem:[%s1787 + $0x78] sm:$0xff]
        %v1804 = vld [vmem:[%s1787 + $0x80] sm:$0xff]
        %v1805 = vld [vmem:[%s1787 + $0x88] sm:$0xff]
        %v1810 = vrot.slane %v1783, 2
        %v1811 = vrot.slane %v1563, 2
        %v1812 = vsel %vm1086, %v1810, %v1811
        %v1813 = vrot.slane %v1784, 2
        %v1814 = vrot.slane %v1564, 2
        %v1815 = vsel %vm1086, %v1813, %v1814
        %v1816 = vrot.slane %v1785, 2
        %v1817 = vsel %vm1086, %v1811, %v1816
        %v1818 = vrot.slane %v1786, 2
        %v1819 = vsel %vm1086, %v1814, %v1818
        %v1822 = vsel %vm899, %v1815, 0
        %v1824 = vsel %vm899, %v1819, 0
        %1826 = vmatprep.subr.mxu0 0.0
        %1827 = vmatpush1.msra.mxu0 %v1788
        %1828 = vmatprep.subr.mxu0 0.0
        %1829 = vmatpush1.msra.mxu0 %v1789
        %1830 = vmatprep.subr.mxu0 0.0
        %1831 = vmatpush1.msra.mxu0 %v1790
        %1832 = vmatprep.subr.mxu0 0.0
        %1833 = vmatpush1.msra.mxu0 %v1791
        %1834 = vmatprep.subr.mxu0 0.0
        %1835 = vmatpush1.msra.mxu0 %v1792
        %1836 = vmatprep.subr.mxu0 0.0
        %1837 = vmatpush1.msra.mxu0 %v1793
        %1838 = vmatprep.subr.mxu0 0.0
        %1839 = vmatpush1.msra.mxu0 %v1794
        %1840 = vmatprep.subr.mxu0 0.0
        %1841 = vmatpush1.msra.mxu0 %v1795
        %1842 = vmatprep.subr.mxu0 0.0
        %1843 = vmatpush1.msra.mxu0 %v1796
        %1844 = vmatprep.subr.mxu0 0.0
        %1845 = vmatpush1.msra.mxu0 %v1797
        %1846 = vmatprep.subr.mxu0 0.0
        %1847 = vmatpush1.msra.mxu0 %v1798
        %1848 = vmatprep.subr.mxu0 0.0
        %1849 = vmatpush1.msra.mxu0 %v1799
        %1850 = vmatprep.subr.mxu0 0.0
        %1851 = vmatpush1.msra.mxu0 %v1800
        %1852 = vmatprep.subr.mxu0 0.0
        %1853 = vmatpush1.msra.mxu0 %v1801
        %1854 = vmatprep.subr.mxu0 0.0
        %1855 = vmatpush1.msra.mxu0 %v1802
        %1856 = vmatprep.subr.mxu0 0.0
        %1857 = vmatpush1.msra.mxu0 %v1803
        %1858 = vmatprep.subr.mxu0 0.0
        %1859 = vmatpush1.msra.mxu0 %v1804
        %1860 = vmatprep.subr.mxu0 0.0
        %1861 = vmatpush1.msra.mxu0 %v1805
        %1862 = vmatprep.subr.mxu0 0.0
        %1863 = vmatpush1.msra.mxu0 0.0
        %1864 = vmatprep.subr.mxu0 0.0
        %1865 = vmatpush1.msra.mxu0 0.0
        %1866 = vmatprep.subr.mxu0 0.0
        %1867 = vmatpush1.msra.mxu0 0.0
        %1868 = vmatprep.subr.mxu0 0.0
        %1869 = vmatpush1.msra.mxu0 0.0
        %1870 = vmatprep.subr.mxu0 0.0
        %1871 = vmatpush1.msra.mxu0 0.0
        %1872 = vmatprep.subr.mxu0 0.0
        %1873 = vmatpush1.msra.mxu0 0.0
        %1874 = vmatprep.subr.mxu0 0.0
        %1875 = vmatpush1.msra.mxu0 0.0
        %1876 = vmatprep.subr.mxu0 0.0
        %1877 = vmatpush1.msra.mxu0 0.0
        %1878 = vmatprep.subr.mxu0 0.0
        %1879 = vmatpush1.msra.mxu0 0.0
        %1880 = vmatprep.subr.mxu0 0.0
        %1881 = vmatpush1.msra.mxu0 0.0
        %1882 = vmatprep.subr.mxu0 0.0
        %1883 = vmatpush1.msra.mxu0 0.0
        %1884 = vmatprep.subr.mxu0 0.0
        %1885 = vmatpush1.msra.mxu0 0.0
        %1886 = vmatprep.subr.mxu0 0.0
        %1887 = vmatpush1.msra.mxu0 0.0
        %1888 = vmatprep.subr.mxu0 0.0
        %1889 = vmatpush1.msra.mxu0 0.0
        %1890 = vmatprep.mubr.f32.mxu0 %v1822
        %1891 = vmatmul.mubr.f32.gmra.mrb[0].mxu0 %v1812
        %v1892 = vpop.f32.mrb[0].mxu0
        %v1893 = vadd.f32 0.0, %v1892
        %v1894 = vpop.f32.mrb[0].mxu0
        %1895 = vmatprep.mubr.f32.mxu0 %v1824
        %1896 = vmatmul.mubr.f32.gmra.mrb[0].mxu0 %v1817
        %v1897 = vpop.f32.mrb[0].mxu0
        %v1898 = vadd.f32 0.0, %v1897
        %v1899 = vpop.f32.mrb[0].mxu0
        %1900 = vdwg.mxu0
        %v1901 = vadd.f32 %v1775, %v1893
        %v1902 = vadd.f32 %v1780, %v1898
        %v1904 = vlaneseq
        %v1905 = vshrl.u32 %v1904, 7
        %v1906 = vsub.s32 0, %v1905
        %v1907 = vrot.slane %v1560, %v1906
        %v1909 = vadd.f32 %v1901, %v1907
        %v1910 = vadd.f32 %v1902, %v1907
        %v1911 = vmax.f32 %v1909, 0.0
        %v1912 = vmax.f32 %v1910, 0.0
        %v1915 = vrot.slane %v1911, 7
        %v1916 = vrot.slane %v1912, 7
        %v1917 = vsel %vm810, %v1915, %v1916
        %1918 = vrot.lane.b32.xlu0 %v1915, 8
        %v1919 = vpop.permute.xlu0 %1918
        %1920 = vrot.lane.b32.xlu0 %v1917, 8
        %v1921 = vpop.permute.xlu0 %1920
        %1922 = vrot.lane.b32.xlu0 %v1916, 8
        %v1923 = vpop.permute.xlu0 %1922
        %1927 = vst.msk [vmem:[#allocation4] sm:$0xfe] %vm823, %v1919
        %1928 = vst.msk [vmem:[#allocation4 + $0x8] sm:$0xfe] %vm825, %v1919
        %1929 = vst.msk [vmem:[#allocation4 + $0x10] sm:$0xff] %vm827, %v1921
        %1930 = vst.msk [vmem:[#allocation4 + $0x18] sm:$0xff] %vm389, %v1921
        %1931 = vst.msk [vmem:[#allocation4 + $0x20] sm:$0x1] %vm830, %v1923
        %1932 = vst.msk [vmem:[#allocation4 + $0x28] sm:$0x1] %vm832, %v1923
        %s1933 = scalar_lea.vmem %s7, 2
        %v1934 = vld [vmem:[%s1933] sm:$0x1]
        %v1935 = vld [vmem:[#allocation4] sm:$0xff]
        %v1936 = vld [vmem:[#allocation4 + $0x8] sm:$0xff]
        %v1937 = vld [vmem:[#allocation4 + $0x10] sm:$0xff]
        %v1938 = vld [vmem:[#allocation4 + $0x18] sm:$0xff]
        %s1939 = scalar_lea.vmem [#allocation11], 432
        %v1940 = vld [vmem:[%s1939] sm:$0xff]
        %v1941 = vld [vmem:[%s1939 + $0x8] sm:$0xff]
        %v1942 = vld [vmem:[%s1939 + $0x10] sm:$0xff]
        %v1943 = vld [vmem:[%s1939 + $0x18] sm:$0xff]
        %v1944 = vld [vmem:[%s1939 + $0x20] sm:$0xff]
        %v1945 = vld [vmem:[%s1939 + $0x28] sm:$0xff]
        %v1946 = vld [vmem:[%s1939 + $0x30] sm:$0xff]
        %v1947 = vld [vmem:[%s1939 + $0x38] sm:$0xff]
        %v1948 = vld [vmem:[%s1939 + $0x40] sm:$0xff]
        %v1949 = vld [vmem:[%s1939 + $0x48] sm:$0xff]
        %v1950 = vld [vmem:[%s1939 + $0x50] sm:$0xff]
        %v1951 = vld [vmem:[%s1939 + $0x58] sm:$0xff]
        %v1952 = vld [vmem:[%s1939 + $0x60] sm:$0xff]
        %v1953 = vld [vmem:[%s1939 + $0x68] sm:$0xff]
        %v1954 = vld [vmem:[%s1939 + $0x70] sm:$0xff]
        %v1955 = vld [vmem:[%s1939 + $0x78] sm:$0xff]
        %v1956 = vld [vmem:[%s1939 + $0x80] sm:$0xff]
        %v1957 = vld [vmem:[%s1939 + $0x88] sm:$0xff]
        %v1958 = vld [vmem:[#allocation4] sm:$0xfe]
        %v1959 = vld [vmem:[#allocation4 + $0x8] sm:$0xfe]
        %v1960 = vld [vmem:[#allocation4 + $0x20] sm:$0x1]
        %v1961 = vld [vmem:[#allocation4 + $0x28] sm:$0x1]
        %s1962 = scalar_lea.vmem [#allocation11], 576
        %v1963 = vld [vmem:[%s1962] sm:$0xff]
        %v1964 = vld [vmem:[%s1962 + $0x8] sm:$0xff]
        %v1965 = vld [vmem:[%s1962 + $0x10] sm:$0xff]
        %v1966 = vld [vmem:[%s1962 + $0x18] sm:$0xff]
        %v1967 = vld [vmem:[%s1962 + $0x20] sm:$0xff]
        %v1968 = vld [vmem:[%s1962 + $0x28] sm:$0xff]
        %v1969 = vld [vmem:[%s1962 + $0x30] sm:$0xff]
        %v1970 = vld [vmem:[%s1962 + $0x38] sm:$0xff]
        %v1971 = vld [vmem:[%s1962 + $0x40] sm:$0xff]
        %v1972 = vld [vmem:[%s1962 + $0x48] sm:$0xff]
        %v1973 = vld [vmem:[%s1962 + $0x50] sm:$0xff]
        %v1974 = vld [vmem:[%s1962 + $0x58] sm:$0xff]
        %v1975 = vld [vmem:[%s1962 + $0x60] sm:$0xff]
        %v1976 = vld [vmem:[%s1962 + $0x68] sm:$0xff]
        %v1977 = vld [vmem:[%s1962 + $0x70] sm:$0xff]
        %v1978 = vld [vmem:[%s1962 + $0x78] sm:$0xff]
        %v1979 = vld [vmem:[%s1962 + $0x80] sm:$0xff]
        %v1980 = vld [vmem:[%s1962 + $0x88] sm:$0xff]
        %v1987 = vrot.slane %v1958, 1
        %v1988 = vrot.slane %v1937, 1
        %v1989 = vsel %vm886, %v1987, %v1988
        %v1990 = vrot.slane %v1959, 1
        %v1991 = vrot.slane %v1938, 1
        %v1992 = vsel %vm886, %v1990, %v1991
        %v1993 = vrot.slane %v1960, 1
        %v1994 = vsel %vm886, %v1988, %v1993
        %v1995 = vrot.slane %v1961, 1
        %v1996 = vsel %vm886, %v1991, %v1995
        %v1999 = vsel %vm899, %v1992, 0
        %v2001 = vsel %vm899, %v1996, 0
        %2003 = vmatprep.subr.mxu0 0.0
        %2004 = vmatpush1.msra.mxu0 %v1963
        %2005 = vmatprep.subr.mxu0 0.0
        %2006 = vmatpush1.msra.mxu0 %v1964
        %2007 = vmatprep.subr.mxu0 0.0
        %2008 = vmatpush1.msra.mxu0 %v1965
        %2009 = vmatprep.subr.mxu0 0.0
        %2010 = vmatpush1.msra.mxu0 %v1966
        %2011 = vmatprep.subr.mxu0 0.0
        %2012 = vmatpush1.msra.mxu0 %v1967
        %2013 = vmatprep.subr.mxu0 0.0
        %2014 = vmatpush1.msra.mxu0 %v1968
        %2015 = vmatprep.subr.mxu0 0.0
        %2016 = vmatpush1.msra.mxu0 %v1969
        %2017 = vmatprep.subr.mxu0 0.0
        %2018 = vmatpush1.msra.mxu0 %v1970
        %2019 = vmatprep.subr.mxu0 0.0
        %2020 = vmatpush1.msra.mxu0 %v1971
        %2021 = vmatprep.subr.mxu0 0.0
        %2022 = vmatpush1.msra.mxu0 %v1972
        %2023 = vmatprep.subr.mxu0 0.0
        %2024 = vmatpush1.msra.mxu0 %v1973
        %2025 = vmatprep.subr.mxu0 0.0
        %2026 = vmatpush1.msra.mxu0 %v1974
        %2027 = vmatprep.subr.mxu0 0.0
        %2028 = vmatpush1.msra.mxu0 %v1975
        %2029 = vmatprep.subr.mxu0 0.0
        %2030 = vmatpush1.msra.mxu0 %v1976
        %2031 = vmatprep.subr.mxu0 0.0
        %2032 = vmatpush1.msra.mxu0 %v1977
        %2033 = vmatprep.subr.mxu0 0.0
        %2034 = vmatpush1.msra.mxu0 %v1978
        %2035 = vmatprep.subr.mxu0 0.0
        %2036 = vmatpush1.msra.mxu0 %v1979
        %2037 = vmatprep.subr.mxu0 0.0
        %2038 = vmatpush1.msra.mxu0 %v1980
        %2039 = vmatprep.subr.mxu0 0.0
        %2040 = vmatpush1.msra.mxu0 0.0
        %2041 = vmatprep.subr.mxu0 0.0
        %2042 = vmatpush1.msra.mxu0 0.0
        %2043 = vmatprep.subr.mxu0 0.0
        %2044 = vmatpush1.msra.mxu0 0.0
        %2045 = vmatprep.subr.mxu0 0.0
        %2046 = vmatpush1.msra.mxu0 0.0
        %2047 = vmatprep.subr.mxu0 0.0
        %2048 = vmatpush1.msra.mxu0 0.0
        %2049 = vmatprep.subr.mxu0 0.0
        %2050 = vmatpush1.msra.mxu0 0.0
        %2051 = vmatprep.subr.mxu0 0.0
        %2052 = vmatpush1.msra.mxu0 0.0
        %2053 = vmatprep.subr.mxu0 0.0
        %2054 = vmatpush1.msra.mxu0 0.0
        %2055 = vmatprep.subr.mxu0 0.0
        %2056 = vmatpush1.msra.mxu0 0.0
        %2057 = vmatprep.subr.mxu0 0.0
        %2058 = vmatpush1.msra.mxu0 0.0
        %2059 = vmatprep.subr.mxu0 0.0
        %2060 = vmatpush1.msra.mxu0 0.0
        %2061 = vmatprep.subr.mxu0 0.0
        %2062 = vmatpush1.msra.mxu0 0.0
        %2063 = vmatprep.subr.mxu0 0.0
        %2064 = vmatpush1.msra.mxu0 0.0
        %2065 = vmatprep.subr.mxu0 0.0
        %2066 = vmatpush1.msra.mxu0 0.0
        %2067 = vmatprep.mubr.f32.mxu0 %v1999
        %2068 = vmatmul.mubr.f32.gmra.mrb[0].mxu0 %v1989
        %v2069 = vpop.f32.mrb[0].mxu0
        %v2070 = vadd.f32 0.0, %v2069
        %v2071 = vpop.f32.mrb[0].mxu0
        %2072 = vmatprep.mubr.f32.mxu0 %v2001
        %2073 = vmatmul.mubr.f32.gmra.mrb[0].mxu0 %v1994
        %v2074 = vpop.f32.mrb[0].mxu0
        %v2075 = vadd.f32 0.0, %v2074
        %v2076 = vpop.f32.mrb[0].mxu0
        %2077 = vdwg.mxu0
        %v2079 = vsel %vm899, %v1936, 0
        %v2081 = vsel %vm899, %v1938, 0
        %2083 = vmatprep.subr.mxu0 0.0
        %2084 = vmatpush1.msra.mxu0 %v1940
        %2085 = vmatprep.subr.mxu0 0.0
        %2086 = vmatpush1.msra.mxu0 %v1941
        %2087 = vmatprep.subr.mxu0 0.0
        %2088 = vmatpush1.msra.mxu0 %v1942
        %2089 = vmatprep.subr.mxu0 0.0
        %2090 = vmatpush1.msra.mxu0 %v1943
        %2091 = vmatprep.subr.mxu0 0.0
        %2092 = vmatpush1.msra.mxu0 %v1944
        %2093 = vmatprep.subr.mxu0 0.0
        %2094 = vmatpush1.msra.mxu0 %v1945
        %2095 = vmatprep.subr.mxu0 0.0
        %2096 = vmatpush1.msra.mxu0 %v1946
        %2097 = vmatprep.subr.mxu0 0.0
        %2098 = vmatpush1.msra.mxu0 %v1947
        %2099 = vmatprep.subr.mxu0 0.0
        %2100 = vmatpush1.msra.mxu0 %v1948
        %2101 = vmatprep.subr.mxu0 0.0
        %2102 = vmatpush1.msra.mxu0 %v1949
        %2103 = vmatprep.subr.mxu0 0.0
        %2104 = vmatpush1.msra.mxu0 %v1950
        %2105 = vmatprep.subr.mxu0 0.0
        %2106 = vmatpush1.msra.mxu0 %v1951
        %2107 = vmatprep.subr.mxu0 0.0
        %2108 = vmatpush1.msra.mxu0 %v1952
        %2109 = vmatprep.subr.mxu0 0.0
        %2110 = vmatpush1.msra.mxu0 %v1953
        %2111 = vmatprep.subr.mxu0 0.0
        %2112 = vmatpush1.msra.mxu0 %v1954
        %2113 = vmatprep.subr.mxu0 0.0
        %2114 = vmatpush1.msra.mxu0 %v1955
        %2115 = vmatprep.subr.mxu0 0.0
        %2116 = vmatpush1.msra.mxu0 %v1956
        %2117 = vmatprep.subr.mxu0 0.0
        %2118 = vmatpush1.msra.mxu0 %v1957
        %2119 = vmatprep.subr.mxu0 0.0
        %2120 = vmatpush1.msra.mxu0 0.0
        %2121 = vmatprep.subr.mxu0 0.0
        %2122 = vmatpush1.msra.mxu0 0.0
        %2123 = vmatprep.subr.mxu0 0.0
        %2124 = vmatpush1.msra.mxu0 0.0
        %2125 = vmatprep.subr.mxu0 0.0
        %2126 = vmatpush1.msra.mxu0 0.0
        %2127 = vmatprep.subr.mxu0 0.0
        %2128 = vmatpush1.msra.mxu0 0.0
        %2129 = vmatprep.subr.mxu0 0.0
        %2130 = vmatpush1.msra.mxu0 0.0
        %2131 = vmatprep.subr.mxu0 0.0
        %2132 = vmatpush1.msra.mxu0 0.0
        %2133 = vmatprep.subr.mxu0 0.0
        %2134 = vmatpush1.msra.mxu0 0.0
        %2135 = vmatprep.subr.mxu0 0.0
        %2136 = vmatpush1.msra.mxu0 0.0
        %2137 = vmatprep.subr.mxu0 0.0
        %2138 = vmatpush1.msra.mxu0 0.0
        %2139 = vmatprep.subr.mxu0 0.0
        %2140 = vmatpush1.msra.mxu0 0.0
        %2141 = vmatprep.subr.mxu0 0.0
        %2142 = vmatpush1.msra.mxu0 0.0
        %2143 = vmatprep.subr.mxu0 0.0
        %2144 = vmatpush1.msra.mxu0 0.0
        %2145 = vmatprep.subr.mxu0 0.0
        %2146 = vmatpush1.msra.mxu0 0.0
        %2147 = vmatprep.mubr.f32.mxu0 %v2079
        %2148 = vmatmul.mubr.f32.gmra.mrb[0].mxu0 %v1935
        %v2149 = vpop.f32.mrb[0].mxu0
        %v2150 = vadd.f32 %v2070, %v2149
        %v2151 = vpop.f32.mrb[0].mxu0
        %2152 = vmatprep.mubr.f32.mxu0 %v2081
        %2153 = vmatmul.mubr.f32.gmra.mrb[0].mxu0 %v1937
        %v2154 = vpop.f32.mrb[0].mxu0
        %v2155 = vadd.f32 %v2075, %v2154
        %v2156 = vpop.f32.mrb[0].mxu0
        %2157 = vdwg.mxu0
        %v2158 = vld [vmem:[#allocation4] sm:$0xfc]
        %v2159 = vld [vmem:[#allocation4 + $0x8] sm:$0xfc]
        %v2160 = vld [vmem:[#allocation4 + $0x20] sm:$0x3]
        %v2161 = vld [vmem:[#allocation4 + $0x28] sm:$0x3]
        %s2162 = scalar_lea.vmem [#allocation11], 720
        %v2163 = vld [vmem:[%s2162] sm:$0xff]
        %v2164 = vld [vmem:[%s2162 + $0x8] sm:$0xff]
        %v2165 = vld [vmem:[%s2162 + $0x10] sm:$0xff]
        %v2166 = vld [vmem:[%s2162 + $0x18] sm:$0xff]
        %v2167 = vld [vmem:[%s2162 + $0x20] sm:$0xff]
        %v2168 = vld [vmem:[%s2162 + $0x28] sm:$0xff]
        %v2169 = vld [vmem:[%s2162 + $0x30] sm:$0xff]
        %v2170 = vld [vmem:[%s2162 + $0x38] sm:$0xff]
        %v2171 = vld [vmem:[%s2162 + $0x40] sm:$0xff]
        %v2172 = vld [vmem:[%s2162 + $0x48] sm:$0xff]
        %v2173 = vld [vmem:[%s2162 + $0x50] sm:$0xff]
        %v2174 = vld [vmem:[%s2162 + $0x58] sm:$0xff]
        %v2175 = vld [vmem:[%s2162 + $0x60] sm:$0xff]
        %v2176 = vld [vmem:[%s2162 + $0x68] sm:$0xff]
        %v2177 = vld [vmem:[%s2162 + $0x70] sm:$0xff]
        %v2178 = vld [vmem:[%s2162 + $0x78] sm:$0xff]
        %v2179 = vld [vmem:[%s2162 + $0x80] sm:$0xff]
        %v2180 = vld [vmem:[%s2162 + $0x88] sm:$0xff]
        %v2185 = vrot.slane %v2158, 2
        %v2186 = vrot.slane %v1937, 2
        %v2187 = vsel %vm1086, %v2185, %v2186
        %v2188 = vrot.slane %v2159, 2
        %v2189 = vrot.slane %v1938, 2
        %v2190 = vsel %vm1086, %v2188, %v2189
        %v2191 = vrot.slane %v2160, 2
        %v2192 = vsel %vm1086, %v2186, %v2191
        %v2193 = vrot.slane %v2161, 2
        %v2194 = vsel %vm1086, %v2189, %v2193
        %v2197 = vsel %vm899, %v2190, 0
        %v2199 = vsel %vm899, %v2194, 0
        %2201 = vmatprep.subr.mxu0 0.0
        %2202 = vmatpush1.msra.mxu0 %v2163
        %2203 = vmatprep.subr.mxu0 0.0
        %2204 = vmatpush1.msra.mxu0 %v2164
        %2205 = vmatprep.subr.mxu0 0.0
        %2206 = vmatpush1.msra.mxu0 %v2165
        %2207 = vmatprep.subr.mxu0 0.0
        %2208 = vmatpush1.msra.mxu0 %v2166
        %2209 = vmatprep.subr.mxu0 0.0
        %2210 = vmatpush1.msra.mxu0 %v2167
        %2211 = vmatprep.subr.mxu0 0.0
        %2212 = vmatpush1.msra.mxu0 %v2168
        %2213 = vmatprep.subr.mxu0 0.0
        %2214 = vmatpush1.msra.mxu0 %v2169
        %2215 = vmatprep.subr.mxu0 0.0
        %2216 = vmatpush1.msra.mxu0 %v2170
        %2217 = vmatprep.subr.mxu0 0.0
        %2218 = vmatpush1.msra.mxu0 %v2171
        %2219 = vmatprep.subr.mxu0 0.0
        %2220 = vmatpush1.msra.mxu0 %v2172
        %2221 = vmatprep.subr.mxu0 0.0
        %2222 = vmatpush1.msra.mxu0 %v2173
        %2223 = vmatprep.subr.mxu0 0.0
        %2224 = vmatpush1.msra.mxu0 %v2174
        %2225 = vmatprep.subr.mxu0 0.0
        %2226 = vmatpush1.msra.mxu0 %v2175
        %2227 = vmatprep.subr.mxu0 0.0
        %2228 = vmatpush1.msra.mxu0 %v2176
        %2229 = vmatprep.subr.mxu0 0.0
        %2230 = vmatpush1.msra.mxu0 %v2177
        %2231 = vmatprep.subr.mxu0 0.0
        %2232 = vmatpush1.msra.mxu0 %v2178
        %2233 = vmatprep.subr.mxu0 0.0
        %2234 = vmatpush1.msra.mxu0 %v2179
        %2235 = vmatprep.subr.mxu0 0.0
        %2236 = vmatpush1.msra.mxu0 %v2180
        %2237 = vmatprep.subr.mxu0 0.0
        %2238 = vmatpush1.msra.mxu0 0.0
        %2239 = vmatprep.subr.mxu0 0.0
        %2240 = vmatpush1.msra.mxu0 0.0
        %2241 = vmatprep.subr.mxu0 0.0
        %2242 = vmatpush1.msra.mxu0 0.0
        %2243 = vmatprep.subr.mxu0 0.0
        %2244 = vmatpush1.msra.mxu0 0.0
        %2245 = vmatprep.subr.mxu0 0.0
        %2246 = vmatpush1.msra.mxu0 0.0
        %2247 = vmatprep.subr.mxu0 0.0
        %2248 = vmatpush1.msra.mxu0 0.0
        %2249 = vmatprep.subr.mxu0 0.0
        %2250 = vmatpush1.msra.mxu0 0.0
        %2251 = vmatprep.subr.mxu0 0.0
        %2252 = vmatpush1.msra.mxu0 0.0
        %2253 = vmatprep.subr.mxu0 0.0
        %2254 = vmatpush1.msra.mxu0 0.0
        %2255 = vmatprep.subr.mxu0 0.0
        %2256 = vmatpush1.msra.mxu0 0.0
        %2257 = vmatprep.subr.mxu0 0.0
        %2258 = vmatpush1.msra.mxu0 0.0
        %2259 = vmatprep.subr.mxu0 0.0
        %2260 = vmatpush1.msra.mxu0 0.0
        %2261 = vmatprep.subr.mxu0 0.0
        %2262 = vmatpush1.msra.mxu0 0.0
        %2263 = vmatprep.subr.mxu0 0.0
        %2264 = vmatpush1.msra.mxu0 0.0
        %2265 = vmatprep.mubr.f32.mxu0 %v2197
        %2266 = vmatmul.mubr.f32.gmra.mrb[0].mxu0 %v2187
        %v2267 = vpop.f32.mrb[0].mxu0
        %v2268 = vadd.f32 0.0, %v2267
        %v2269 = vpop.f32.mrb[0].mxu0
        %2270 = vmatprep.mubr.f32.mxu0 %v2199
        %2271 = vmatmul.mubr.f32.gmra.mrb[0].mxu0 %v2192
        %v2272 = vpop.f32.mrb[0].mxu0
        %v2273 = vadd.f32 0.0, %v2272
        %v2274 = vpop.f32.mrb[0].mxu0
        %2275 = vdwg.mxu0
        %v2276 = vadd.f32 %v2150, %v2268
        %v2277 = vadd.f32 %v2155, %v2273
        %v2279 = vlaneseq
        %v2280 = vshrl.u32 %v2279, 7
        %v2281 = vsub.s32 0, %v2280
        %v2282 = vrot.slane %v1934, %v2281
        %v2284 = vadd.f32 %v2276, %v2282
        %v2285 = vadd.f32 %v2277, %v2282
        %v2286 = vmax.f32 %v2284, 0.0
        %v2287 = vmax.f32 %v2285, 0.0
        %v2290 = vrot.slane %v2286, 7
        %v2291 = vrot.slane %v2287, 7
        %v2292 = vsel %vm810, %v2290, %v2291
        %2293 = vrot.lane.b32.xlu0 %v2290, 8
        %v2294 = vpop.permute.xlu0 %2293
        %2295 = vrot.lane.b32.xlu0 %v2292, 8
        %v2296 = vpop.permute.xlu0 %2295
        %2297 = vrot.lane.b32.xlu0 %v2291, 8
        %v2298 = vpop.permute.xlu0 %2297
        %2302 = vst.msk [vmem:[#allocation3] sm:$0xfe] %vm823, %v2294
        %2303 = vst.msk [vmem:[#allocation3 + $0x8] sm:$0xfe] %vm825, %v2294
        %2304 = vst.msk [vmem:[#allocation3 + $0x10] sm:$0xff] %vm827, %v2296
        %2305 = vst.msk [vmem:[#allocation3 + $0x18] sm:$0xff] %vm389, %v2296
        %2306 = vst.msk [vmem:[#allocation3 + $0x20] sm:$0x1] %vm830, %v2298
        %2307 = vst.msk [vmem:[#allocation3 + $0x28] sm:$0x1] %vm832, %v2298
        %s2308 = scalar_lea.vmem %s7, 3
        %v2309 = vld [vmem:[%s2308] sm:$0x1]
        %v2310 = vld [vmem:[#allocation3] sm:$0xff]
        %v2311 = vld [vmem:[#allocation3 + $0x8] sm:$0xff]
        %v2312 = vld [vmem:[#allocation3 + $0x10] sm:$0xff]
        %v2313 = vld [vmem:[#allocation3 + $0x18] sm:$0xff]
        %s2314 = scalar_lea.vmem [#allocation11], 864
        %v2315 = vld [vmem:[%s2314] sm:$0xff]
        %v2316 = vld [vmem:[%s2314 + $0x8] sm:$0xff]
        %v2317 = vld [vmem:[%s2314 + $0x10] sm:$0xff]
        %v2318 = vld [vmem:[%s2314 + $0x18] sm:$0xff]
        %v2319 = vld [vmem:[%s2314 + $0x20] sm:$0xff]
        %v2320 = vld [vmem:[%s2314 + $0x28] sm:$0xff]
        %v2321 = vld [vmem:[%s2314 + $0x30] sm:$0xff]
        %v2322 = vld [vmem:[%s2314 + $0x38] sm:$0xff]
        %v2323 = vld [vmem:[%s2314 + $0x40] sm:$0xff]
        %v2324 = vld [vmem:[%s2314 + $0x48] sm:$0xff]
        %v2325 = vld [vmem:[%s2314 + $0x50] sm:$0xff]
        %v2326 = vld [vmem:[%s2314 + $0x58] sm:$0xff]
        %v2327 = vld [vmem:[%s2314 + $0x60] sm:$0xff]
        %v2328 = vld [vmem:[%s2314 + $0x68] sm:$0xff]
        %v2329 = vld [vmem:[%s2314 + $0x70] sm:$0xff]
        %v2330 = vld [vmem:[%s2314 + $0x78] sm:$0xff]
        %v2331 = vld [vmem:[%s2314 + $0x80] sm:$0xff]
        %v2332 = vld [vmem:[%s2314 + $0x88] sm:$0xff]
        %v2333 = vld [vmem:[#allocation3] sm:$0xfe]
        %v2334 = vld [vmem:[#allocation3 + $0x8] sm:$0xfe]
        %v2335 = vld [vmem:[#allocation3 + $0x20] sm:$0x1]
        %v2336 = vld [vmem:[#allocation3 + $0x28] sm:$0x1]
        %s2337 = scalar_lea.vmem [#allocation11], 1008
        %v2338 = vld [vmem:[%s2337] sm:$0xff]
        %v2339 = vld [vmem:[%s2337 + $0x8] sm:$0xff]
        %v2340 = vld [vmem:[%s2337 + $0x10] sm:$0xff]
        %v2341 = vld [vmem:[%s2337 + $0x18] sm:$0xff]
        %v2342 = vld [vmem:[%s2337 + $0x20] sm:$0xff]
        %v2343 = vld [vmem:[%s2337 + $0x28] sm:$0xff]
        %v2344 = vld [vmem:[%s2337 + $0x30] sm:$0xff]
        %v2345 = vld [vmem:[%s2337 + $0x38] sm:$0xff]
        %v2346 = vld [vmem:[%s2337 + $0x40] sm:$0xff]
        %v2347 = vld [vmem:[%s2337 + $0x48] sm:$0xff]
        %v2348 = vld [vmem:[%s2337 + $0x50] sm:$0xff]
        %v2349 = vld [vmem:[%s2337 + $0x58] sm:$0xff]
        %v2350 = vld [vmem:[%s2337 + $0x60] sm:$0xff]
        %v2351 = vld [vmem:[%s2337 + $0x68] sm:$0xff]
        %v2352 = vld [vmem:[%s2337 + $0x70] sm:$0xff]
        %v2353 = vld [vmem:[%s2337 + $0x78] sm:$0xff]
        %v2354 = vld [vmem:[%s2337 + $0x80] sm:$0xff]
        %v2355 = vld [vmem:[%s2337 + $0x88] sm:$0xff]
        %v2362 = vrot.slane %v2333, 1
        %v2363 = vrot.slane %v2312, 1
        %v2364 = vsel %vm886, %v2362, %v2363
        %v2365 = vrot.slane %v2334, 1
        %v2366 = vrot.slane %v2313, 1
        %v2367 = vsel %vm886, %v2365, %v2366
        %v2368 = vrot.slane %v2335, 1
        %v2369 = vsel %vm886, %v2363, %v2368
        %v2370 = vrot.slane %v2336, 1
        %v2371 = vsel %vm886, %v2366, %v2370
        %v2374 = vsel %vm899, %v2367, 0
        %v2376 = vsel %vm899, %v2371, 0
        %2378 = vmatprep.subr.mxu0 0.0
        %2379 = vmatpush1.msra.mxu0 %v2338
        %2380 = vmatprep.subr.mxu0 0.0
        %2381 = vmatpush1.msra.mxu0 %v2339
        %2382 = vmatprep.subr.mxu0 0.0
        %2383 = vmatpush1.msra.mxu0 %v2340
        %2384 = vmatprep.subr.mxu0 0.0
        %2385 = vmatpush1.msra.mxu0 %v2341
        %2386 = vmatprep.subr.mxu0 0.0
        %2387 = vmatpush1.msra.mxu0 %v2342
        %2388 = vmatprep.subr.mxu0 0.0
        %2389 = vmatpush1.msra.mxu0 %v2343
        %2390 = vmatprep.subr.mxu0 0.0
        %2391 = vmatpush1.msra.mxu0 %v2344
        %2392 = vmatprep.subr.mxu0 0.0
        %2393 = vmatpush1.msra.mxu0 %v2345
        %2394 = vmatprep.subr.mxu0 0.0
        %2395 = vmatpush1.msra.mxu0 %v2346
        %2396 = vmatprep.subr.mxu0 0.0
        %2397 = vmatpush1.msra.mxu0 %v2347
        %2398 = vmatprep.subr.mxu0 0.0
        %2399 = vmatpush1.msra.mxu0 %v2348
        %2400 = vmatprep.subr.mxu0 0.0
        %2401 = vmatpush1.msra.mxu0 %v2349
        %2402 = vmatprep.subr.mxu0 0.0
        %2403 = vmatpush1.msra.mxu0 %v2350
        %2404 = vmatprep.subr.mxu0 0.0
        %2405 = vmatpush1.msra.mxu0 %v2351
        %2406 = vmatprep.subr.mxu0 0.0
        %2407 = vmatpush1.msra.mxu0 %v2352
        %2408 = vmatprep.subr.mxu0 0.0
        %2409 = vmatpush1.msra.mxu0 %v2353
        %2410 = vmatprep.subr.mxu0 0.0
        %2411 = vmatpush1.msra.mxu0 %v2354
        %2412 = vmatprep.subr.mxu0 0.0
        %2413 = vmatpush1.msra.mxu0 %v2355
        %2414 = vmatprep.subr.mxu0 0.0
        %2415 = vmatpush1.msra.mxu0 0.0
        %2416 = vmatprep.subr.mxu0 0.0
        %2417 = vmatpush1.msra.mxu0 0.0
        %2418 = vmatprep.subr.mxu0 0.0
        %2419 = vmatpush1.msra.mxu0 0.0
        %2420 = vmatprep.subr.mxu0 0.0
        %2421 = vmatpush1.msra.mxu0 0.0
        %2422 = vmatprep.subr.mxu0 0.0
        %2423 = vmatpush1.msra.mxu0 0.0
        %2424 = vmatprep.subr.mxu0 0.0
        %2425 = vmatpush1.msra.mxu0 0.0
        %2426 = vmatprep.subr.mxu0 0.0
        %2427 = vmatpush1.msra.mxu0 0.0
        %2428 = vmatprep.subr.mxu0 0.0
        %2429 = vmatpush1.msra.mxu0 0.0
        %2430 = vmatprep.subr.mxu0 0.0
        %2431 = vmatpush1.msra.mxu0 0.0
        %2432 = vmatprep.subr.mxu0 0.0
        %2433 = vmatpush1.msra.mxu0 0.0
        %2434 = vmatprep.subr.mxu0 0.0
        %2435 = vmatpush1.msra.mxu0 0.0
        %2436 = vmatprep.subr.mxu0 0.0
        %2437 = vmatpush1.msra.mxu0 0.0
        %2438 = vmatprep.subr.mxu0 0.0
        %2439 = vmatpush1.msra.mxu0 0.0
        %2440 = vmatprep.subr.mxu0 0.0
        %2441 = vmatpush1.msra.mxu0 0.0
        %2442 = vmatprep.mubr.f32.mxu0 %v2374
        %2443 = vmatmul.mubr.f32.gmra.mrb[0].mxu0 %v2364
        %v2444 = vpop.f32.mrb[0].mxu0
        %v2445 = vadd.f32 0.0, %v2444
        %v2446 = vpop.f32.mrb[0].mxu0
        %2447 = vmatprep.mubr.f32.mxu0 %v2376
        %2448 = vmatmul.mubr.f32.gmra.mrb[0].mxu0 %v2369
        %v2449 = vpop.f32.mrb[0].mxu0
        %v2450 = vadd.f32 0.0, %v2449
        %v2451 = vpop.f32.mrb[0].mxu0
        %2452 = vdwg.mxu0
        %v2454 = vsel %vm899, %v2311, 0
        %v2456 = vsel %vm899, %v2313, 0
        %2458 = vmatprep.subr.mxu0 0.0
        %2459 = vmatpush1.msra.mxu0 %v2315
        %2460 = vmatprep.subr.mxu0 0.0
        %2461 = vmatpush1.msra.mxu0 %v2316
        %2462 = vmatprep.subr.mxu0 0.0
        %2463 = vmatpush1.msra.mxu0 %v2317
        %2464 = vmatprep.subr.mxu0 0.0
        %2465 = vmatpush1.msra.mxu0 %v2318
        %2466 = vmatprep.subr.mxu0 0.0
        %2467 = vmatpush1.msra.mxu0 %v2319
        %2468 = vmatprep.subr.mxu0 0.0
        %2469 = vmatpush1.msra.mxu0 %v2320
        %2470 = vmatprep.subr.mxu0 0.0
        %2471 = vmatpush1.msra.mxu0 %v2321
        %2472 = vmatprep.subr.mxu0 0.0
        %2473 = vmatpush1.msra.mxu0 %v2322
        %2474 = vmatprep.subr.mxu0 0.0
        %2475 = vmatpush1.msra.mxu0 %v2323
        %2476 = vmatprep.subr.mxu0 0.0
        %2477 = vmatpush1.msra.mxu0 %v2324
        %2478 = vmatprep.subr.mxu0 0.0
        %2479 = vmatpush1.msra.mxu0 %v2325
        %2480 = vmatprep.subr.mxu0 0.0
        %2481 = vmatpush1.msra.mxu0 %v2326
        %2482 = vmatprep.subr.mxu0 0.0
        %2483 = vmatpush1.msra.mxu0 %v2327
        %2484 = vmatprep.subr.mxu0 0.0
        %2485 = vmatpush1.msra.mxu0 %v2328
        %2486 = vmatprep.subr.mxu0 0.0
        %2487 = vmatpush1.msra.mxu0 %v2329
        %2488 = vmatprep.subr.mxu0 0.0
        %2489 = vmatpush1.msra.mxu0 %v2330
        %2490 = vmatprep.subr.mxu0 0.0
        %2491 = vmatpush1.msra.mxu0 %v2331
        %2492 = vmatprep.subr.mxu0 0.0
        %2493 = vmatpush1.msra.mxu0 %v2332
        %2494 = vmatprep.subr.mxu0 0.0
        %2495 = vmatpush1.msra.mxu0 0.0
        %2496 = vmatprep.subr.mxu0 0.0
        %2497 = vmatpush1.msra.mxu0 0.0
        %2498 = vmatprep.subr.mxu0 0.0
        %2499 = vmatpush1.msra.mxu0 0.0
        %2500 = vmatprep.subr.mxu0 0.0
        %2501 = vmatpush1.msra.mxu0 0.0
        %2502 = vmatprep.subr.mxu0 0.0
        %2503 = vmatpush1.msra.mxu0 0.0
        %2504 = vmatprep.subr.mxu0 0.0
        %2505 = vmatpush1.msra.mxu0 0.0
        %2506 = vmatprep.subr.mxu0 0.0
        %2507 = vmatpush1.msra.mxu0 0.0
        %2508 = vmatprep.subr.mxu0 0.0
        %2509 = vmatpush1.msra.mxu0 0.0
        %2510 = vmatprep.subr.mxu0 0.0
        %2511 = vmatpush1.msra.mxu0 0.0
        %2512 = vmatprep.subr.mxu0 0.0
        %2513 = vmatpush1.msra.mxu0 0.0
        %2514 = vmatprep.subr.mxu0 0.0
        %2515 = vmatpush1.msra.mxu0 0.0
        %2516 = vmatprep.subr.mxu0 0.0
        %2517 = vmatpush1.msra.mxu0 0.0
        %2518 = vmatprep.subr.mxu0 0.0
        %2519 = vmatpush1.msra.mxu0 0.0
        %2520 = vmatprep.subr.mxu0 0.0
        %2521 = vmatpush1.msra.mxu0 0.0
        %2522 = vmatprep.mubr.f32.mxu0 %v2454
        %2523 = vmatmul.mubr.f32.gmra.mrb[0].mxu0 %v2310
        %v2524 = vpop.f32.mrb[0].mxu0
        %v2525 = vadd.f32 %v2445, %v2524
        %v2526 = vpop.f32.mrb[0].mxu0
        %2527 = vmatprep.mubr.f32.mxu0 %v2456
        %2528 = vmatmul.mubr.f32.gmra.mrb[0].mxu0 %v2312
        %v2529 = vpop.f32.mrb[0].mxu0
        %v2530 = vadd.f32 %v2450, %v2529
        %v2531 = vpop.f32.mrb[0].mxu0
        %2532 = vdwg.mxu0
        %v2533 = vld [vmem:[#allocation3] sm:$0xfc]
        %v2534 = vld [vmem:[#allocation3 + $0x8] sm:$0xfc]
        %v2535 = vld [vmem:[#allocation3 + $0x20] sm:$0x3]
        %v2536 = vld [vmem:[#allocation3 + $0x28] sm:$0x3]
        %s2537 = scalar_lea.vmem [#allocation11], 1152
        %v2538 = vld [vmem:[%s2537] sm:$0xff]
        %v2539 = vld [vmem:[%s2537 + $0x8] sm:$0xff]
        %v2540 = vld [vmem:[%s2537 + $0x10] sm:$0xff]
        %v2541 = vld [vmem:[%s2537 + $0x18] sm:$0xff]
        %v2542 = vld [vmem:[%s2537 + $0x20] sm:$0xff]
        %v2543 = vld [vmem:[%s2537 + $0x28] sm:$0xff]
        %v2544 = vld [vmem:[%s2537 + $0x30] sm:$0xff]
        %v2545 = vld [vmem:[%s2537 + $0x38] sm:$0xff]
        %v2546 = vld [vmem:[%s2537 + $0x40] sm:$0xff]
        %v2547 = vld [vmem:[%s2537 + $0x48] sm:$0xff]
        %v2548 = vld [vmem:[%s2537 + $0x50] sm:$0xff]
        %v2549 = vld [vmem:[%s2537 + $0x58] sm:$0xff]
        %v2550 = vld [vmem:[%s2537 + $0x60] sm:$0xff]
        %v2551 = vld [vmem:[%s2537 + $0x68] sm:$0xff]
        %v2552 = vld [vmem:[%s2537 + $0x70] sm:$0xff]
        %v2553 = vld [vmem:[%s2537 + $0x78] sm:$0xff]
        %v2554 = vld [vmem:[%s2537 + $0x80] sm:$0xff]
        %v2555 = vld [vmem:[%s2537 + $0x88] sm:$0xff]
        %v2560 = vrot.slane %v2533, 2
        %v2561 = vrot.slane %v2312, 2
        %v2562 = vsel %vm1086, %v2560, %v2561
        %v2563 = vrot.slane %v2534, 2
        %v2564 = vrot.slane %v2313, 2
        %v2565 = vsel %vm1086, %v2563, %v2564
        %v2566 = vrot.slane %v2535, 2
        %v2567 = vsel %vm1086, %v2561, %v2566
        %v2568 = vrot.slane %v2536, 2
        %v2569 = vsel %vm1086, %v2564, %v2568
        %v2572 = vsel %vm899, %v2565, 0
        %v2574 = vsel %vm899, %v2569, 0
        %2576 = vmatprep.subr.mxu0 0.0
        %2577 = vmatpush1.msra.mxu0 %v2538
        %2578 = vmatprep.subr.mxu0 0.0
        %2579 = vmatpush1.msra.mxu0 %v2539
        %2580 = vmatprep.subr.mxu0 0.0
        %2581 = vmatpush1.msra.mxu0 %v2540
        %2582 = vmatprep.subr.mxu0 0.0
        %2583 = vmatpush1.msra.mxu0 %v2541
        %2584 = vmatprep.subr.mxu0 0.0
        %2585 = vmatpush1.msra.mxu0 %v2542
        %2586 = vmatprep.subr.mxu0 0.0
        %2587 = vmatpush1.msra.mxu0 %v2543
        %2588 = vmatprep.subr.mxu0 0.0
        %2589 = vmatpush1.msra.mxu0 %v2544
        %2590 = vmatprep.subr.mxu0 0.0
        %2591 = vmatpush1.msra.mxu0 %v2545
        %2592 = vmatprep.subr.mxu0 0.0
        %2593 = vmatpush1.msra.mxu0 %v2546
        %2594 = vmatprep.subr.mxu0 0.0
        %2595 = vmatpush1.msra.mxu0 %v2547
        %2596 = vmatprep.subr.mxu0 0.0
        %2597 = vmatpush1.msra.mxu0 %v2548
        %2598 = vmatprep.subr.mxu0 0.0
        %2599 = vmatpush1.msra.mxu0 %v2549
        %2600 = vmatprep.subr.mxu0 0.0
        %2601 = vmatpush1.msra.mxu0 %v2550
        %2602 = vmatprep.subr.mxu0 0.0
        %2603 = vmatpush1.msra.mxu0 %v2551
        %2604 = vmatprep.subr.mxu0 0.0
        %2605 = vmatpush1.msra.mxu0 %v2552
        %2606 = vmatprep.subr.mxu0 0.0
        %2607 = vmatpush1.msra.mxu0 %v2553
        %2608 = vmatprep.subr.mxu0 0.0
        %2609 = vmatpush1.msra.mxu0 %v2554
        %2610 = vmatprep.subr.mxu0 0.0
        %2611 = vmatpush1.msra.mxu0 %v2555
        %2612 = vmatprep.subr.mxu0 0.0
        %2613 = vmatpush1.msra.mxu0 0.0
        %2614 = vmatprep.subr.mxu0 0.0
        %2615 = vmatpush1.msra.mxu0 0.0
        %2616 = vmatprep.subr.mxu0 0.0
        %2617 = vmatpush1.msra.mxu0 0.0
        %2618 = vmatprep.subr.mxu0 0.0
        %2619 = vmatpush1.msra.mxu0 0.0
        %2620 = vmatprep.subr.mxu0 0.0
        %2621 = vmatpush1.msra.mxu0 0.0
        %2622 = vmatprep.subr.mxu0 0.0
        %2623 = vmatpush1.msra.mxu0 0.0
        %2624 = vmatprep.subr.mxu0 0.0
        %2625 = vmatpush1.msra.mxu0 0.0
        %2626 = vmatprep.subr.mxu0 0.0
        %2627 = vmatpush1.msra.mxu0 0.0
        %2628 = vmatprep.subr.mxu0 0.0
        %2629 = vmatpush1.msra.mxu0 0.0
        %2630 = vmatprep.subr.mxu0 0.0
        %2631 = vmatpush1.msra.mxu0 0.0
        %2632 = vmatprep.subr.mxu0 0.0
        %2633 = vmatpush1.msra.mxu0 0.0
        %2634 = vmatprep.subr.mxu0 0.0
        %2635 = vmatpush1.msra.mxu0 0.0
        %2636 = vmatprep.subr.mxu0 0.0
        %2637 = vmatpush1.msra.mxu0 0.0
        %2638 = vmatprep.subr.mxu0 0.0
        %2639 = vmatpush1.msra.mxu0 0.0
        %2640 = vmatprep.mubr.f32.mxu0 %v2572
        %2641 = vmatmul.mubr.f32.gmra.mrb[0].mxu0 %v2562
        %v2642 = vpop.f32.mrb[0].mxu0
        %v2643 = vadd.f32 0.0, %v2642
        %v2644 = vpop.f32.mrb[0].mxu0
        %2645 = vmatprep.mubr.f32.mxu0 %v2574
        %2646 = vmatmul.mubr.f32.gmra.mrb[0].mxu0 %v2567
        %v2647 = vpop.f32.mrb[0].mxu0
        %v2648 = vadd.f32 0.0, %v2647
        %v2649 = vpop.f32.mrb[0].mxu0
        %2650 = vdwg.mxu0
        %v2651 = vadd.f32 %v2525, %v2643
        %v2652 = vadd.f32 %v2530, %v2648
        %v2654 = vlaneseq
        %v2655 = vshrl.u32 %v2654, 7
        %v2656 = vsub.s32 0, %v2655
        %v2657 = vrot.slane %v2309, %v2656
        %v2659 = vadd.f32 %v2651, %v2657
        %v2660 = vadd.f32 %v2652, %v2657
        %v2661 = vmax.f32 %v2659, 0.0
        %v2662 = vmax.f32 %v2660, 0.0
        %2663 = vst [vmem:[%s370] sm:$0xff] %v2661
        %2664 = vst [vmem:[%s370 + $0x8] sm:$0xff] %v2662
        %s2665 = sand.u32 %s211, 1
        %s2666 = scalar_lea.sflag [#allocation7], %s2665
        %s2667 = sand.u32 %s211, 1
        %s2668 = smul.addr %s2667, 16
        %s2669 = scalar_lea.vmem [#allocation13], %s2668
        // Predicated region
        $region69: #{tpu_custom_call.1} parent=51 // pred_check
          %p2670 = pneg %p221
        $region70: #{tpu_custom_call.1} parent=51 // pred_check_branch
          %2672 = sbr.rel (%p2670) target = $region72
        $region71: #{tpu_custom_call.1} parent=51 // pred_region
          %s2674 = ssub.s32 256, 256
          %2675 = vsyncadd %s2666, %s2674
          %s2676 = smul.addr %s25, 2
          %s2677 = smul.addr %s2676, 128
          %s2678 = scalar_lea.hbm %s8, %s2677
          %s2679 = sshll.u32 %s2669, 4
          %s2680 = int_to_ptr.vmem [resolvable:$true] %s2679
          %2685 = dma.vmem_to_hbm [thread:$0]  %s2680, 256, %s2678, %s2666, 128, 128, 8
        $region72: #{tpu_custom_call.1} parent=51 // pred_fallthru
          _
      $region52: #{tpu_custom_call.1} parent=5 // pred_fallthru
        _
      %p2686 = scmp.le.s32.totalorder 2, %s20
      // Predicated region
      $region73: #{tpu_custom_call.1} parent=5 // pred_check
        %p2687 = pneg %p2686
      $region74: #{tpu_custom_call.1} parent=5 // pred_check_branch
        %2689 = sbr.rel (%p2687) target = $region76
      $region75: #{tpu_custom_call.1} parent=5 // pred_region
        %s2690 = ssub.s32 %s20, 2
        // Predicated region
        $region77: #{tpu_custom_call.1} parent=75 // pred_check
          %p2691 = pneg %p227
        $region78: #{tpu_custom_call.1} parent=75 // pred_check_branch
          %2693 = sbr.rel (%p2691) target = $region80
        $region79: #{tpu_custom_call.1} parent=75 // pred_region
          %s2694 = sand.u32 %s212, 1
          %s2695 = scalar_lea.sflag [#allocation7], %s2694
          %s2696 = sand.u32 %s212, 1
          %s2697 = smul.addr %s2696, 16
          %s2698 = scalar_lea.vmem [#allocation13], %s2697
          %2699 = dma.done %s2695, 256
        $region80: #{tpu_custom_call.1} parent=75 // pred_fallthru
          _
      $region76: #{tpu_custom_call.1} parent=5 // pred_fallthru
        _
    $region6: #{tpu_custom_call.1} parent=1 // loop_footer
      %s24 = sadd.s32 1, %s20
    $region7: #{tpu_custom_call.1} parent=1 // loop_footer_branch
      %19 = sbr.rel target = $region3
    $region8: #{tpu_custom_call.1} parent=1 // loop_exit
      _
    %2700 = vsyncpa [#allocation6], 1
    %s2701 = scalar_lea.sflag [#allocation6], 1
    %2702 = vsyncpa %s2701, 1
    %2703 = vsyncpa [#allocation9], 1
    %2704 = vsyncpa [#allocation12], 1
    %2705 = vsyncpa [#allocation7], 1
    %s2706 = scalar_lea.sflag [#allocation7], 1
    %2707 = vsyncpa %s2706, 1

</llo_original>
